<compile_context>
chip_gen: v7x
topology: tpu7x:2x2x1
jax: 0.10.0
libtpu: 0.0.40
codegen_flags: <defaults>
</compile_context>

<pallas_src>
import functools

import jax
import jax.numpy as jnp
from jax.experimental import pallas as pl
from jax.experimental.pallas import tpu as pltpu

LANE = 128                       # TPU lane width
TM_MAX = 512                     # max row tile for the fused matmul kernel
TVQ_MAX = 512                    # max row tile for the VQ kernel
VMEM_LIMIT = 32 * 1024 * 1024    # scoped-VMEM budget (safe on v5e/v6e/v7x)


def _round_up(x, m):
    return ((x + m - 1) // m) * m


# ---------------------------------------------------------------------------
# Fused matmul + bias + activation kernel (bf16 inputs, f32 accumulate)
# ---------------------------------------------------------------------------
def _mm_bias_act_kernel(x_ref, w_ref, b_ref, o_ref, *, act):
    acc = jnp.dot(x_ref[...], w_ref[...], preferred_element_type=jnp.float32)
    acc = acc + b_ref[...]
    if act == "leaky_relu":
        acc = jnp.where(acc > 0.0, acc, 0.2 * acc)
    elif act == "tanh":
        acc = jnp.tanh(acc)
    o_ref[...] = acc.astype(o_ref.dtype)


def matmul_bias_act(x, w, b, act="none", out_dtype=jnp.float32):
    """(M,K) @ (K,N) + b, optional activation.

    K and N are zero-padded to multiples of 128 (lane-dense loads / unmasked
    stores, full MXU columns); rows are tiled by up to 512.  Inputs are cast to
    bf16 (padding folded into the same pass); accumulation stays f32.
    """
    M, K = x.shape
    Kw, N = w.shape
    assert K == Kw
    Kp = _round_up(K, LANE)
    Np = _round_up(N, LANE)
    TM = min(TM_MAX, _round_up(M, LANE))
    Mp = _round_up(M, TM)

    xp = jnp.pad(x, ((0, Mp - M), (0, Kp - K))).astype(jnp.bfloat16)
    wp = jnp.pad(w, ((0, Kp - K), (0, Np - N))).astype(jnp.bfloat16)
    bp = jnp.pad(b, (0, Np - N)).astype(jnp.float32).reshape(1, Np)

    out = pl.pallas_call(
        functools.partial(_mm_bias_act_kernel, act=act),
        out_shape=jax.ShapeDtypeStruct((Mp, Np), out_dtype),
        grid=(Mp // TM,),
        in_specs=[
            pl.BlockSpec((TM, Kp), lambda i: (i, 0)),
            pl.BlockSpec((Kp, Np), lambda i: (0, 0)),   # weights stay resident
            pl.BlockSpec((1, Np), lambda i: (0, 0)),
        ],
        out_specs=pl.BlockSpec((TM, Np), lambda i: (i, 0)),
        compiler_params=pltpu.CompilerParams(
            dimension_semantics=("parallel",),
            vmem_limit_bytes=VMEM_LIMIT),
    )(xp, wp, bp)
    return out[:M, :N]


# ---------------------------------------------------------------------------
# Vector quantization kernel (row-tiled, codebook resident, loss accumulator)
# ---------------------------------------------------------------------------
def _vq_kernel(z_ref, cbt_ref, cb_ref, esq_ref, q_ref, idx_ref, cbl_ref,
               cml_ref, acc_ref, *, n_codes, true_m, latent_dim, tvq):
    i = pl.program_id(0)

    @pl.when(i == 0)
    def _():
        acc_ref[...] = jnp.zeros_like(acc_ref)

    z = z_ref[...]                 # (TVQ, Dp) f32, padded cols are zero
    e_t = cbt_ref[...]             # (Dp, Kp)  f32 (codebook transposed)
    e = cb_ref[...]                # (Kp, Dp)  f32
    e_sq = esq_ref[...]            # (1, Kp)   f32, padded codes carry +1e30

    # plain matmul (no in-kernel transpose): cross = z @ e^T
    cross = jnp.dot(z, e_t, preferred_element_type=jnp.float32)       # (TVQ, Kp)
    # argmin_k ||z - e_k||^2 == argmin_k (||e_k||^2 - 2 z.e_k)
    score = e_sq - 2.0 * cross
    iota_k = jax.lax.broadcasted_iota(jnp.int32, score.shape, 1)
    smin = jnp.min(score, axis=1, keepdims=True)
    idx = jnp.min(jnp.where(score <= smin, iota_k, n_codes),
                  axis=1, keepdims=True)                              # (TVQ, 1)
    onehot = (iota_k == idx).astype(jnp.float32)                      # (TVQ, Kp)
    q = jnp.dot(onehot, e, preferred_element_type=jnp.float32)        # (TVQ, Dp)

    q_ref[...] = q
    idx_ref[...] = idx

    # masked per-row squared error (rows beyond true M contribute nothing)
    row = jax.lax.broadcasted_iota(jnp.int32, (tvq, 1), 0)
    valid = (row + i * tvq) < true_m
    err = jnp.sum((q - z) ** 2, axis=1, keepdims=True)                # (TVQ, 1)
    acc_ref[...] = acc_ref[...] + jnp.sum(jnp.where(valid, err, 0.0))

    @pl.when(i == pl.num_programs(0) - 1)
    def _():
        mse = acc_ref[...] / float(true_m * latent_dim)
        # codebook_loss = mean((q - sg(z))^2); commitment_loss = mean((sg(q)-z)^2)
        # (identical forward values; gradients differ only under autodiff)
        cbl_ref[...] = mse
        cml_ref[...] = mse


def vector_quantize(z, codebook):
    M, D = z.shape
    K = codebook.shape[0]
    Dp = _round_up(D, LANE)
    Kp = _round_up(K, LANE)
    TVQ = min(TVQ_MAX, _round_up(M, 8))
    Mp = _round_up(M, TVQ)

    zp = jnp.pad(z.astype(jnp.float32), ((0, Mp - M), (0, Dp - D)))
    cbp = jnp.pad(codebook.astype(jnp.float32), ((0, Kp - K), (0, Dp - D)))
    cbt = cbp.T                                         # (Dp, Kp) for the cross matmul
    # ||e_k||^2 as a (1, Kp) row; padded codes get +1e30 so they never win argmin
    e_sq = jnp.sum(cbp * cbp, axis=1, keepdims=True).T
    e_sq = e_sq + jnp.where(jnp.arange(Kp)[None, :] >= K, 1e30,
                            0.0).astype(jnp.float32)

    q, idx, cbl, cml = pl.pallas_call(
        functools.partial(_vq_kernel, n_codes=K, true_m=M,
                          latent_dim=D, tvq=TVQ),
        out_shape=(
            jax.ShapeDtypeStruct((Mp, Dp), jnp.float32),
            jax.ShapeDtypeStruct((Mp, 1), jnp.int32),
            jax.ShapeDtypeStruct((1, 1), jnp.float32),
            jax.ShapeDtypeStruct((1, 1), jnp.float32),
        ),
        grid=(Mp // TVQ,),
        in_specs=[
            pl.BlockSpec((TVQ, Dp), lambda i: (i, 0)),
            pl.BlockSpec((Dp, Kp), lambda i: (0, 0)),   # codebook^T resident
            pl.BlockSpec((Kp, Dp), lambda i: (0, 0)),   # codebook resident
            pl.BlockSpec((1, Kp), lambda i: (0, 0)),
        ],
        out_specs=(
            pl.BlockSpec((TVQ, Dp), lambda i: (i, 0)),
            pl.BlockSpec((TVQ, 1), lambda i: (i, 0)),
            pl.BlockSpec((1, 1), lambda i: (0, 0)),
            pl.BlockSpec((1, 1), lambda i: (0, 0)),
        ),
        scratch_shapes=[pltpu.VMEM((1, 1), jnp.float32)],
        compiler_params=pltpu.CompilerParams(
            # loss accumulates across the row axis -> "arbitrary"
            # TODO(synk): per-core partial sums + final combine would allow
            # "parallel" here for v7x dual-TensorCore sharding.
            dimension_semantics=("arbitrary",),
            vmem_limit_bytes=VMEM_LIMIT),
    )(zp, cbt, cbp, e_sq)
    return q[:M, :D], idx[:M, 0], cbl[0, 0], cml[0, 0]


# ---------------------------------------------------------------------------
# Conv glue (im2col in bf16, matmul in Pallas)
# ---------------------------------------------------------------------------
def _im2col(x, k, stride, pad):
    """NHWC -> (N*Ho*Wo, k*k*C) patches in bf16 (padding folded into the cast)."""
    N, H, W, C = x.shape
    xp = jnp.pad(x, ((0, 0), (pad, pad), (pad, pad), (0, 0))).astype(jnp.bfloat16)
    Ho = (H + 2 * pad - k) // stride + 1
    Wo = (W + 2 * pad - k) // stride + 1
    cols = []
    for ki in range(k):
        for kj in range(k):
            cols.append(xp[:, ki:ki + stride * Ho:stride,
                           kj:kj + stride * Wo:stride, :])
    patches = jnp.concatenate(cols, axis=-1)           # (N, Ho, Wo, k*k*C)
    return patches.reshape(N * Ho * Wo, k * k * C), (N, Ho, Wo)


def conv2d(x, w_oihw, b, stride, pad, act="none", out_dtype=jnp.float32):
    """NHWC conv with OIHW weights, via bf16 im2col + fused Pallas matmul."""
    Cout, Cin, k, _ = w_oihw.shape
    cols, (N, Ho, Wo) = _im2col(x, k, stride, pad)
    wmat = jnp.transpose(w_oihw, (2, 3, 1, 0)).reshape(k * k * Cin, Cout)
    y = matmul_bias_act(cols, wmat, b, act, out_dtype)
    return y.reshape(N, Ho, Wo, Cout)


def conv_transpose2d_subpixel(x, w_flip_oihw, b, act="none",
                              out_dtype=jnp.float32):
    """ConvTranspose2d(k=4, stride=2, padding=1) via sub-pixel decomposition.

    `w_flip_oihw` is the equivalent regular-conv (spatially flipped) weight.
    Instead of zero-dilating the input (75% zeros, 16x im2col blow-up), a
    single 3x3 stride-1 conv on the undilated input produces all 4 output
    phases at once (stacked along the output channels), then a pixel-shuffle
    interleaves them.
    """
    N, H, W, Cin = x.shape
    Cout = w_flip_oihw.shape[0]
    assert w_flip_oihw.shape == (Cout, Cin, 4, 4)

    cols, _ = _im2col(x, 3, 1, 1)                      # (N*H*W, 9*Cin)

    # tap (dr) in the 3x3 window -> kernel row kh of the flipped 4x4 kernel:
    #   phase 0: dr 0->kh 0, dr 1->kh 2   |   phase 1: dr 1->kh 1, dr 2->kh 3
    taps = {0: {0: 0, 1: 2}, 1: {1: 1, 2: 3}}
    wbig = jnp.zeros((3, 3, Cin, 2, 2, Cout), jnp.float32)
    for ph in (0, 1):
        for pw in (0, 1):
            for dr, kh in taps[ph].items():
                for dc, kw in taps[pw].items():
                    wbig = wbig.at[dr, dc, :, ph, pw, :].set(
                        jnp.transpose(w_flip_oihw[:, :, kh, kw]))
    wmat = wbig.reshape(9 * Cin, 4 * Cout)             # columns ordered (ph,pw,co)
    bstack = jnp.tile(b, 4)                            # same bias for every phase

    y = matmul_bias_act(cols, wmat, bstack, act, out_dtype)   # (N*H*W, 4*Cout)
    y = y.reshape(N, H, W, 2, 2, Cout)
    y = jnp.transpose(y, (0, 1, 3, 2, 4, 5)).reshape(N, 2 * H, 2 * W, Cout)
    return y


# ---------------------------------------------------------------------------
# VQVAE forward
# ---------------------------------------------------------------------------
def vqvae_forward(x_nchw, params):
    x = jnp.transpose(x_nchw, (0, 2, 3, 1))            # NCHW -> NHWC

    # encoder: Conv(3x3, s2, p1) + LeakyReLU blocks (bf16 intermediates)
    h = x
    for (w, b) in params["enc"]:
        h = conv2d(h, w, b, stride=2, pad=1, act="leaky_relu",
                   out_dtype=jnp.bfloat16)

    # pre_quant_conv: 1x1 (f32 output feeds the quantizer)
    h = conv2d(h, params["pre_w"], params["pre_b"], stride=1, pad=0,
               act="none", out_dtype=jnp.float32)

    N, Hl, Wl, D = h.shape
    z = h.reshape(N * Hl * Wl, D)
    q, idx, codebook_loss, commitment_loss = vector_quantize(z, params["codebook"])
    quant_nhwc = q.reshape(N, Hl, Wl, D)

    # post_quant_conv: 1x1
    d = conv2d(quant_nhwc, params["post_w"], params["post_b"], stride=1, pad=0,
               act="none", out_dtype=jnp.bfloat16)

    # decoder: ConvTranspose(4x4, s2, p1) blocks, LeakyReLU then Tanh at the end
    n_dec = len(params["dec"])
    for i, (w, b) in enumerate(params["dec"]):
        last = i == n_dec - 1
        d = conv_transpose2d_subpixel(
            d, w, b,
            act="tanh" if last else "leaky_relu",
            out_dtype=jnp.float32 if last else jnp.bfloat16)

    return {
        "generated_image": jnp.transpose(d, (0, 3, 1, 2)),
        "quantized_output": jnp.transpose(quant_nhwc, (0, 3, 1, 2)),
        "quantized_losses": {"codebook_loss": codebook_loss,
                             "commitment_loss": commitment_loss},
        "quantized_indices": idx.reshape(N, Hl, Wl),
    }


# ---------------------------------------------------------------------------
# Deterministic parameter init + demo
# ---------------------------------------------------------------------------
def _init_conv(key, cout, cin, k):
    wk, bk = jax.random.split(key)
    w = jax.random.normal(wk, (cout, cin, k, k), jnp.float32) / ((cin * k * k) ** 0.5)
    b = 0.01 * jax.random.normal(bk, (cout,), jnp.float32)
    return w, b


def make_params(config, key):
    enc_ch = config["model_params"]["convbn_channels"]
    dec_ch = config["model_params"]["transposebn_channels"]
    latent = config["model_params"]["latent_dim"]
    ncodes = config["model_params"]["codebook_size"]

    keys = iter(jax.random.split(key, 32))
    params = {"enc": [], "dec": []}
    for cin, cout in zip(enc_ch[:-1], enc_ch[1:]):
        params["enc"].append(_init_conv(next(keys), cout, cin, 3))
    params["pre_w"], params["pre_b"] = _init_conv(next(keys), latent, enc_ch[-1], 1)
    params["codebook"] = jax.random.normal(next(keys), (ncodes, latent), jnp.float32)
    params["post_w"], params["post_b"] = _init_conv(next(keys), dec_ch[0], latent, 1)
    for cin, cout in zip(dec_ch[:-1], dec_ch[1:]):
        # stored directly as the equivalent regular-conv (flipped) OIHW weight
        params["dec"].append(_init_conv(next(keys), cout, cin, 4))
    return params


if __name__ == "__main__":
    config = {
        "model_params": {
            "convbn_channels": [4, 16, 32],       # encoder channels (2 downsamples)
            "latent_dim": 8,
            "codebook_size": 64,
            "transposebn_channels": [32, 16, 4],  # decoder channels (2 upsamples)
        }
    }
    key = jax.random.PRNGKey(0)
    kp, kx = jax.random.split(key)
    params = make_params(config, kp)
    x = jax.random.normal(kx, (2, 4, 16, 16), jnp.float32)  # NCHW, like PyTorch

    out = jax.jit(lambda inp: vqvae_forward(inp, params))(x)
    jax.block_until_ready(out)

    assert out["generated_image"].shape == (2, 4, 16, 16)
    assert out["quantized_output"].shape == (2, 8, 4, 4)
    assert out["quantized_indices"].shape == (2, 4, 4)
    assert out["quantized_losses"]["codebook_loss"].shape == ()
    assert out["quantized_losses"]["commitment_loss"].shape == ()
    assert bool(jnp.isfinite(out["generated_image"]).all())
    assert bool(jnp.isfinite(out["quantized_output"]).all())
    assert bool((out["quantized_indices"] >= 0).all())
    assert bool((out["quantized_indices"] < config["model_params"]["codebook_size"]).all())
    print("KERNEL_OK")
</pallas_src>

<mosaic_0001>
module attributes {stable_mosaic.version = 11 : i64} {
  func.func @_mm_bias_act_kernel(%arg0: i32, %arg1: memref<128x128xbf16, #tpu.memory_space<vmem>>, %arg2: memref<128x128xbf16, #tpu.memory_space<vmem>>, %arg3: memref<1x128xf32, #tpu.memory_space<vmem>>, %arg4: memref<128x128xbf16, #tpu.memory_space<vmem>>) attributes {dimension_semantics = [#tpu.dimension_semantics<parallel>], iteration_bounds = array<i64: 1>, scalar_prefetch = 0 : i64, scratch_operands = 0 : i64, tpu.core_type = #tpu.core_type<tc>, window_params = [{transform_indices = @transform_0, window_bounds = array<i64: 128, 128>}, {pipeline_mode = #tpu.pipeline_mode<synchronous>, transform_indices = @transform_1, window_bounds = array<i64: 128, 128>}, {pipeline_mode = #tpu.pipeline_mode<synchronous>, transform_indices = @transform_2, window_bounds = array<i64: 1, 128>}, {transform_indices = @transform_3, window_bounds = array<i64: 128, 128>}]} {
    %c0 = arith.constant 0 : index
    %c0_0 = arith.constant 0 : index
    %0 = vector.load %arg1[%c0, %c0_0] : memref<128x128xbf16, #tpu.memory_space<vmem>>, vector<128x128xbf16>
    %c0_1 = arith.constant 0 : index
    %c0_2 = arith.constant 0 : index
    %1 = vector.load %arg2[%c0_1, %c0_2] : memref<128x128xbf16, #tpu.memory_space<vmem>>, vector<128x128xbf16>
    %cst = arith.constant dense<0.000000e+00> : vector<128x128xf32>
    %2 = tpu.matmul %0, %1, %cst {dimension_numbers = #tpu.dot_dimension_numbers<[1], [0], [0], [1], [0, 0, 1, 1], [], []>} : vector<128x128xbf16>, vector<128x128xbf16>, vector<128x128xf32> -> vector<128x128xf32>
    %c0_3 = arith.constant 0 : index
    %c0_4 = arith.constant 0 : index
    %3 = vector.load %arg3[%c0_3, %c0_4] : memref<1x128xf32, #tpu.memory_space<vmem>>, vector<1x128xf32>
    %4 = vector.broadcast %3 : vector<1x128xf32> to vector<128x128xf32>
    %5 = arith.addf %2, %4 : vector<128x128xf32>
    %cst_5 = arith.constant 0.000000e+00 : f32
    %6 = vector.broadcast %cst_5 : f32 to vector<128x128xf32>
    %7 = arith.cmpf ogt, %5, %6 : vector<128x128xf32>
    %cst_6 = arith.constant 2.000000e-01 : f32
    %8 = vector.broadcast %cst_6 : f32 to vector<128x128xf32>
    %9 = arith.mulf %8, %5 : vector<128x128xf32>
    %10 = arith.select %7, %5, %9 : vector<128x128xi1>, vector<128x128xf32>
    %11 = arith.truncf %10 : vector<128x128xf32> to vector<128x128xbf16>
    %c0_7 = arith.constant 0 : index
    %c0_8 = arith.constant 0 : index
    %12 = vector.load %arg4[%c0_7, %c0_8] : memref<128x128xbf16, #tpu.memory_space<vmem>>, vector<128x128xbf16>
    tpu.vector_store %arg4[%c0_7, %c0_8], %11 {strides = array<i32>} : memref<128x128xbf16, #tpu.memory_space<vmem>>, vector<128x128xbf16>,
    return
  }
  func.func @transform_0(%arg0: i32) -> (i32, i32) {
    %c0_i32 = arith.constant 0 : i32
    %c0_i32_0 = arith.constant 0 : i32
    return %arg0, %c0_i32 : i32, i32
  }
  func.func @transform_1(%arg0: i32) -> (i32, i32) {
    %c0_i32 = arith.constant 0 : i32
    %c0_i32_0 = arith.constant 0 : i32
    %c0_i32_1 = arith.constant 0 : i32
    return %c0_i32, %c0_i32_0 : i32, i32
  }
  func.func @transform_2(%arg0: i32) -> (i32, i32) {
    %c0_i32 = arith.constant 0 : i32
    %c0_i32_0 = arith.constant 0 : i32
    %c0_i32_1 = arith.constant 0 : i32
    return %c0_i32, %c0_i32_0 : i32, i32
  }
  func.func @transform_3(%arg0: i32) -> (i32, i32) {
    %c0_i32 = arith.constant 0 : i32
    %c0_i32_0 = arith.constant 0 : i32
    return %arg0, %c0_i32 : i32, i32
  }
}

module attributes {stable_mosaic.version = 11 : i64} {
  func.func @_mm_bias_act_kernel(%arg0: i32, %arg1: memref<128x256xbf16, #tpu.memory_space<vmem>>, %arg2: memref<256x128xbf16, #tpu.memory_space<vmem>>, %arg3: memref<1x128xf32, #tpu.memory_space<vmem>>, %arg4: memref<128x128xbf16, #tpu.memory_space<vmem>>) attributes {dimension_semantics = [#tpu.dimension_semantics<parallel>], iteration_bounds = array<i64: 1>, scalar_prefetch = 0 : i64, scratch_operands = 0 : i64, tpu.core_type = #tpu.core_type<tc>, window_params = [{transform_indices = @transform_0, window_bounds = array<i64: 128, 256>}, {pipeline_mode = #tpu.pipeline_mode<synchronous>, transform_indices = @transform_1, window_bounds = array<i64: 256, 128>}, {pipeline_mode = #tpu.pipeline_mode<synchronous>, transform_indices = @transform_2, window_bounds = array<i64: 1, 128>}, {transform_indices = @transform_3, window_bounds = array<i64: 128, 128>}]} {
    %c0 = arith.constant 0 : index
    %c0_0 = arith.constant 0 : index
    %0 = vector.load %arg1[%c0, %c0_0] : memref<128x256xbf16, #tpu.memory_space<vmem>>, vector<128x256xbf16>
    %c0_1 = arith.constant 0 : index
    %c0_2 = arith.constant 0 : index
    %1 = vector.load %arg2[%c0_1, %c0_2] : memref<256x128xbf16, #tpu.memory_space<vmem>>, vector<256x128xbf16>
    %cst = arith.constant dense<0.000000e+00> : vector<128x128xf32>
    %2 = tpu.matmul %0, %1, %cst {dimension_numbers = #tpu.dot_dimension_numbers<[1], [0], [0], [1], [0, 0, 1, 1], [], []>} : vector<128x256xbf16>, vector<256x128xbf16>, vector<128x128xf32> -> vector<128x128xf32>
    %c0_3 = arith.constant 0 : index
    %c0_4 = arith.constant 0 : index
    %3 = vector.load %arg3[%c0_3, %c0_4] : memref<1x128xf32, #tpu.memory_space<vmem>>, vector<1x128xf32>
    %4 = vector.broadcast %3 : vector<1x128xf32> to vector<128x128xf32>
    %5 = arith.addf %2, %4 : vector<128x128xf32>
    %cst_5 = arith.constant 0.000000e+00 : f32
    %6 = vector.broadcast %cst_5 : f32 to vector<128x128xf32>
    %7 = arith.cmpf ogt, %5, %6 : vector<128x128xf32>
    %cst_6 = arith.constant 2.000000e-01 : f32
    %8 = vector.broadcast %cst_6 : f32 to vector<128x128xf32>
    %9 = arith.mulf %8, %5 : vector<128x128xf32>
    %10 = arith.select %7, %5, %9 : vector<128x128xi1>, vector<128x128xf32>
    %11 = arith.truncf %10 : vector<128x128xf32> to vector<128x128xbf16>
    %c0_7 = arith.constant 0 : index
    %c0_8 = arith.constant 0 : index
    %12 = vector.load %arg4[%c0_7, %c0_8] : memref<128x128xbf16, #tpu.memory_space<vmem>>, vector<128x128xbf16>
    tpu.vector_store %arg4[%c0_7, %c0_8], %11 {strides = array<i32>} : memref<128x128xbf16, #tpu.memory_space<vmem>>, vector<128x128xbf16>,
    return
  }
  func.func @transform_0(%arg0: i32) -> (i32, i32) {
    %c0_i32 = arith.constant 0 : i32
    %c0_i32_0 = arith.constant 0 : i32
    return %arg0, %c0_i32 : i32, i32
  }
  func.func @transform_1(%arg0: i32) -> (i32, i32) {
    %c0_i32 = arith.constant 0 : i32
    %c0_i32_0 = arith.constant 0 : i32
    %c0_i32_1 = arith.constant 0 : i32
    return %c0_i32, %c0_i32_0 : i32, i32
  }
  func.func @transform_2(%arg0: i32) -> (i32, i32) {
    %c0_i32 = arith.constant 0 : i32
    %c0_i32_0 = arith.constant 0 : i32
    %c0_i32_1 = arith.constant 0 : i32
    return %c0_i32, %c0_i32_0 : i32, i32
  }
  func.func @transform_3(%arg0: i32) -> (i32, i32) {
    %c0_i32 = arith.constant 0 : i32
    %c0_i32_0 = arith.constant 0 : i32
    return %arg0, %c0_i32 : i32, i32
  }
}

module attributes {stable_mosaic.version = 11 : i64} {
  func.func @_mm_bias_act_kernel(%arg0: i32, %arg1: memref<128x128xbf16, #tpu.memory_space<vmem>>, %arg2: memref<128x128xbf16, #tpu.memory_space<vmem>>, %arg3: memref<1x128xf32, #tpu.memory_space<vmem>>, %arg4: memref<128x128xf32, #tpu.memory_space<vmem>>) attributes {dimension_semantics = [#tpu.dimension_semantics<parallel>], iteration_bounds = array<i64: 1>, scalar_prefetch = 0 : i64, scratch_operands = 0 : i64, tpu.core_type = #tpu.core_type<tc>, window_params = [{transform_indices = @transform_0, window_bounds = array<i64: 128, 128>}, {pipeline_mode = #tpu.pipeline_mode<synchronous>, transform_indices = @transform_1, window_bounds = array<i64: 128, 128>}, {pipeline_mode = #tpu.pipeline_mode<synchronous>, transform_indices = @transform_2, window_bounds = array<i64: 1, 128>}, {transform_indices = @transform_3, window_bounds = array<i64: 128, 128>}]} {
    %c0 = arith.constant 0 : index
    %c0_0 = arith.constant 0 : index
    %0 = vector.load %arg1[%c0, %c0_0] : memref<128x128xbf16, #tpu.memory_space<vmem>>, vector<128x128xbf16>
    %c0_1 = arith.constant 0 : index
    %c0_2 = arith.constant 0 : index
    %1 = vector.load %arg2[%c0_1, %c0_2] : memref<128x128xbf16, #tpu.memory_space<vmem>>, vector<128x128xbf16>
    %cst = arith.constant dense<0.000000e+00> : vector<128x128xf32>
    %2 = tpu.matmul %0, %1, %cst {dimension_numbers = #tpu.dot_dimension_numbers<[1], [0], [0], [1], [0, 0, 1, 1], [], []>} : vector<128x128xbf16>, vector<128x128xbf16>, vector<128x128xf32> -> vector<128x128xf32>
    %c0_3 = arith.constant 0 : index
    %c0_4 = arith.constant 0 : index
    %3 = vector.load %arg3[%c0_3, %c0_4] : memref<1x128xf32, #tpu.memory_space<vmem>>, vector<1x128xf32>
    %4 = vector.broadcast %3 : vector<1x128xf32> to vector<128x128xf32>
    %5 = arith.addf %2, %4 : vector<128x128xf32>
    %c0_5 = arith.constant 0 : index
    %c0_6 = arith.constant 0 : index
    %6 = vector.load %arg4[%c0_5, %c0_6] : memref<128x128xf32, #tpu.memory_space<vmem>>, vector<128x128xf32>
    tpu.vector_store %arg4[%c0_5, %c0_6], %5 {strides = array<i32>} : memref<128x128xf32, #tpu.memory_space<vmem>>, vector<128x128xf32>,
    return
  }
  func.func @transform_0(%arg0: i32) -> (i32, i32) {
    %c0_i32 = arith.constant 0 : i32
    %c0_i32_0 = arith.constant 0 : i32
    return %arg0, %c0_i32 : i32, i32
  }
  func.func @transform_1(%arg0: i32) -> (i32, i32) {
    %c0_i32 = arith.constant 0 : i32
    %c0_i32_0 = arith.constant 0 : i32
    %c0_i32_1 = arith.constant 0 : i32
    return %c0_i32, %c0_i32_0 : i32, i32
  }
  func.func @transform_2(%arg0: i32) -> (i32, i32) {
    %c0_i32 = arith.constant 0 : i32
    %c0_i32_0 = arith.constant 0 : i32
    %c0_i32_1 = arith.constant 0 : i32
    return %c0_i32, %c0_i32_0 : i32, i32
  }
  func.func @transform_3(%arg0: i32) -> (i32, i32) {
    %c0_i32 = arith.constant 0 : i32
    %c0_i32_0 = arith.constant 0 : i32
    return %arg0, %c0_i32 : i32, i32
  }
}

module attributes {stable_mosaic.version = 11 : i64} {
  func.func @_vq_kernel(%arg0: i32, %arg1: memref<32x128xf32, #tpu.memory_space<vmem>>, %arg2: memref<128x128xf32, #tpu.memory_space<vmem>>, %arg3: memref<128x128xf32, #tpu.memory_space<vmem>>, %arg4: memref<1x128xf32, #tpu.memory_space<vmem>>, %arg5: memref<32x128xf32, #tpu.memory_space<vmem>>, %arg6: memref<32x1xi32, #tpu.memory_space<vmem>>, %arg7: memref<1x1xf32, #tpu.memory_space<vmem>>, %arg8: memref<1x1xf32, #tpu.memory_space<vmem>>, %arg9: memref<1x1xf32, #tpu.memory_space<vmem>>) attributes {dimension_semantics = [#tpu.dimension_semantics<arbitrary>], iteration_bounds = array<i64: 1>, scalar_prefetch = 0 : i64, scratch_operands = 1 : i64, tpu.core_type = #tpu.core_type<tc>, window_params = [{transform_indices = @transform_0, window_bounds = array<i64: 32, 128>}, {pipeline_mode = #tpu.pipeline_mode<synchronous>, transform_indices = @transform_1, window_bounds = array<i64: 128, 128>}, {pipeline_mode = #tpu.pipeline_mode<synchronous>, transform_indices = @transform_2, window_bounds = array<i64: 128, 128>}, {pipeline_mode = #tpu.pipeline_mode<synchronous>, transform_indices = @transform_3, window_bounds = array<i64: 1, 128>}, {transform_indices = @transform_4, window_bounds = array<i64: 32, 128>}, {transform_indices = @transform_5, window_bounds = array<i64: 32, 1>}, {pipeline_mode = #tpu.pipeline_mode<synchronous>, transform_indices = @transform_6, window_bounds = array<i64: 1, 1>}, {pipeline_mode = #tpu.pipeline_mode<synchronous>, transform_indices = @transform_7, window_bounds = array<i64: 1, 1>}]} {
    %c0_i32 = arith.constant 0 : i32
    %0 = arith.cmpi eq, %arg0, %c0_i32 : i32
    %1 = arith.extui %0 : i1 to i32
    %c0_i32_0 = arith.constant 0 : i32
    %2 = arith.cmpi ne, %1, %c0_i32_0 : i32
    scf.if %2 {
      %cst_26 = arith.constant 0.000000e+00 : f32
      %51 = vector.broadcast %cst_26 : f32 to vector<1x1xf32>
      %c0_27 = arith.constant 0 : index
      %c0_28 = arith.constant 0 : index
      %52 = vector.load %arg9[%c0_27, %c0_28] : memref<1x1xf32, #tpu.memory_space<vmem>>, vector<1x1xf32>
      tpu.vector_store %arg9[%c0_27, %c0_28], %51 {strides = array<i32>} : memref<1x1xf32, #tpu.memory_space<vmem>>, vector<1x1xf32>,
    } else {
    }
    %c0 = arith.constant 0 : index
    %c0_1 = arith.constant 0 : index
    %3 = vector.load %arg1[%c0, %c0_1] : memref<32x128xf32, #tpu.memory_space<vmem>>, vector<32x128xf32>
    %c0_2 = arith.constant 0 : index
    %c0_3 = arith.constant 0 : index
    %4 = vector.load %arg2[%c0_2, %c0_3] : memref<128x128xf32, #tpu.memory_space<vmem>>, vector<128x128xf32>
    %c0_4 = arith.constant 0 : index
    %c0_5 = arith.constant 0 : index
    %5 = vector.load %arg3[%c0_4, %c0_5] : memref<128x128xf32, #tpu.memory_space<vmem>>, vector<128x128xf32>
    %c0_6 = arith.constant 0 : index
    %c0_7 = arith.constant 0 : index
    %6 = vector.load %arg4[%c0_6, %c0_7] : memref<1x128xf32, #tpu.memory_space<vmem>>, vector<1x128xf32>
    %cst = arith.constant dense<0.000000e+00> : vector<32x128xf32>
    %7 = tpu.matmul %3, %4, %cst {dimension_numbers = #tpu.dot_dimension_numbers<[1], [0], [0], [1], [0, 0, 1, 1], [], []>} : vector<32x128xf32>, vector<128x128xf32>, vector<32x128xf32> -> vector<32x128xf32>
    %cst_8 = arith.constant 2.000000e+00 : f32
    %8 = vector.broadcast %cst_8 : f32 to vector<32x128xf32>
    %9 = arith.mulf %8, %7 : vector<32x128xf32>
    %10 = vector.broadcast %6 : vector<1x128xf32> to vector<32x128xf32>
    %11 = arith.subf %10, %9 : vector<32x128xf32>
    %12 = tpu.iota {dimensions = array<i32: 1>} : vector<32x128xi32>
    %cst_9 = arith.constant dense<0x7F800000> : vector<32xf32>
    %13 = vector.multi_reduction <minimumf>, %11, %cst_9 [1] : vector<32x128xf32> to vector<32xf32>
    %14 = vector.shape_cast %13 : vector<32xf32> to vector<32x1xf32>
    %15 = vector.broadcast %14 : vector<32x1xf32> to vector<32x128xf32>
    %16 = arith.cmpf ole, %11, %15 : vector<32x128xf32>
    %c64_i32 = arith.constant 64 : i32
    %17 = vector.broadcast %c64_i32 : i32 to vector<32x128xi32>
    %18 = arith.select %16, %12, %17 : vector<32x128xi1>, vector<32x128xi32>
    %cst_10 = arith.constant dense<2147483647> : vector<32xi32>
    %19 = vector.multi_reduction <minsi>, %18, %cst_10 [1] : vector<32x128xi32> to vector<32xi32>
    %20 = vector.shape_cast %19 : vector<32xi32> to vector<32x1xi32>
    %21 = vector.broadcast %20 : vector<32x1xi32> to vector<32x128xi32>
    %22 = arith.cmpi eq, %12, %21 : vector<32x128xi32>
    %23 = arith.extui %22 : vector<32x128xi1> to vector<32x128xi32>
    %24 = arith.sitofp %23 : vector<32x128xi32> to vector<32x128xf32>
    %cst_11 = arith.constant dense<0.000000e+00> : vector<32x128xf32>
    %25 = tpu.matmul %24, %5, %cst_11 {dimension_numbers = #tpu.dot_dimension_numbers<[1], [0], [0], [1], [0, 0, 1, 1], [], []>} : vector<32x128xf32>, vector<128x128xf32>, vector<32x128xf32> -> vector<32x128xf32>
    %c0_12 = arith.constant 0 : index
    %c0_13 = arith.constant 0 : index
    %26 = vector.load %arg5[%c0_12, %c0_13] : memref<32x128xf32, #tpu.memory_space<vmem>>, vector<32x128xf32>
    tpu.vector_store %arg5[%c0_12, %c0_13], %25 {strides = array<i32>} : memref<32x128xf32, #tpu.memory_space<vmem>>, vector<32x128xf32>,
    %c0_14 = arith.constant 0 : index
    %c0_15 = arith.constant 0 : index
    %27 = vector.load %arg6[%c0_14, %c0_15] : memref<32x1xi32, #tpu.memory_space<vmem>>, vector<32x1xi32>
    tpu.vector_store %arg6[%c0_14, %c0_15], %20 {strides = array<i32>} : memref<32x1xi32, #tpu.memory_space<vmem>>, vector<32x1xi32>,
    %28 = tpu.iota {dimensions = array<i32: 0>} : vector<32x1xi32>
    %c32_i32 = arith.constant 32 : i32
    %29 = arith.muli %arg0, %c32_i32 : i32
    %30 = vector.broadcast %29 : i32 to vector<32x1xi32>
    %31 = arith.addi %28, %30 : vector<32x1xi32>
    %c32_i32_16 = arith.constant 32 : i32
    %32 = vector.broadcast %c32_i32_16 : i32 to vector<32x1xi32>
    %33 = arith.cmpi slt, %31, %32 : vector<32x1xi32>
    %34 = arith.subf %25, %3 : vector<32x128xf32>
    %35 = arith.mulf %34, %34 : vector<32x128xf32>
    %cst_17 = arith.constant dense<0.000000e+00> : vector<32xf32>
    %36 = vector.multi_reduction <add>, %35, %cst_17 [1] : vector<32x128xf32> to vector<32xf32>
    %37 = vector.shape_cast %36 : vector<32xf32> to vector<32x1xf32>
    %c0_18 = arith.constant 0 : index
    %c0_19 = arith.constant 0 : index
    %38 = vector.load %arg9[%c0_18, %c0_19] : memref<1x1xf32, #tpu.memory_space<vmem>>, vector<1x1xf32>
    %cst_20 = arith.constant 0.000000e+00 : f32
    %39 = vector.broadcast %cst_20 : f32 to vector<32x1xf32>
    %40 = arith.select %33, %37, %39 : vector<32x1xi1>, vector<32x1xf32>
    %41 = vector.shape_cast %40 : vector<32x1xf32> to vector<1x32x1xf32>
    %cst_21 = arith.constant dense<0.000000e+00> : vector<1xf32>
    %42 = vector.multi_reduction <add>, %41, %cst_21 [1, 2] : vector<1x32x1xf32> to vector<1xf32>
    %43 = vector.shape_cast %42 : vector<1xf32> to vector<1x1x1xf32>
    %44 = vector.extract %43[0, 0, 0] : f32 from vector<1x1x1xf32>
    %45 = vector.broadcast %44 : f32 to vector<1x1xf32>
    %46 = arith.addf %38, %45 : vector<1x1xf32>
    %c0_22 = arith.constant 0 : index
    %c0_23 = arith.constant 0 : index
    %47 = vector.load %arg9[%c0_22, %c0_23] : memref<1x1xf32, #tpu.memory_space<vmem>>, vector<1x1xf32>
    tpu.vector_store %arg9[%c0_22, %c0_23], %46 {strides = array<i32>} : memref<1x1xf32, #tpu.memory_space<vmem>>, vector<1x1xf32>,
    %c0_i32_24 = arith.constant 0 : i32
    %48 = arith.cmpi eq, %arg0, %c0_i32_24 : i32
    %49 = arith.extui %48 : i1 to i32
    %c0_i32_25 = arith.constant 0 : i32
    %50 = arith.cmpi ne, %49, %c0_i32_25 : i32
    scf.if %50 {
      %c0_26 = arith.constant 0 : index
      %c0_27 = arith.constant 0 : index
      %51 = vector.load %arg9[%c0_26, %c0_27] : memref<1x1xf32, #tpu.memory_space<vmem>>, vector<1x1xf32>
      %cst_28 = arith.constant 2.560000e+02 : f32
      %52 = vector.broadcast %cst_28 : f32 to vector<1x1xf32>
      %53 = arith.divf %51, %52 : vector<1x1xf32>
      %c0_29 = arith.constant 0 : index
      %c0_30 = arith.constant 0 : index
      %54 = vector.load %arg7[%c0_29, %c0_30] : memref<1x1xf32, #tpu.memory_space<vmem>>, vector<1x1xf32>
      tpu.vector_store %arg7[%c0_29, %c0_30], %53 {strides = array<i32>} : memref<1x1xf32, #tpu.memory_space<vmem>>, vector<1x1xf32>,
      %c0_31 = arith.constant 0 : index
      %c0_32 = arith.constant 0 : index
      %55 = vector.load %arg8[%c0_31, %c0_32] : memref<1x1xf32, #tpu.memory_space<vmem>>, vector<1x1xf32>
      tpu.vector_store %arg8[%c0_31, %c0_32], %53 {strides = array<i32>} : memref<1x1xf32, #tpu.memory_space<vmem>>, vector<1x1xf32>,
    } else {
    }
    return
  }
  func.func @transform_0(%arg0: i32) -> (i32, i32) {
    %c0_i32 = arith.constant 0 : i32
    %c0_i32_0 = arith.constant 0 : i32
    return %arg0, %c0_i32 : i32, i32
  }
  func.func @transform_1(%arg0: i32) -> (i32, i32) {
    %c0_i32 = arith.constant 0 : i32
    %c0_i32_0 = arith.constant 0 : i32
    %c0_i32_1 = arith.constant 0 : i32
    return %c0_i32, %c0_i32_0 : i32, i32
  }
  func.func @transform_2(%arg0: i32) -> (i32, i32) {
    %c0_i32 = arith.constant 0 : i32
    %c0_i32_0 = arith.constant 0 : i32
    %c0_i32_1 = arith.constant 0 : i32
    return %c0_i32, %c0_i32_0 : i32, i32
  }
  func.func @transform_3(%arg0: i32) -> (i32, i32) {
    %c0_i32 = arith.constant 0 : i32
    %c0_i32_0 = arith.constant 0 : i32
    %c0_i32_1 = arith.constant 0 : i32
    return %c0_i32, %c0_i32_0 : i32, i32
  }
  func.func @transform_4(%arg0: i32) -> (i32, i32) {
    %c0_i32 = arith.constant 0 : i32
    %c0_i32_0 = arith.constant 0 : i32
    return %arg0, %c0_i32 : i32, i32
  }
  func.func @transform_5(%arg0: i32) -> (i32, i32) {
    %c0_i32 = arith.constant 0 : i32
    %c0_i32_0 = arith.constant 0 : i32
    return %arg0, %c0_i32 : i32, i32
  }
  func.func @transform_6(%arg0: i32) -> (i32, i32) {
    %c0_i32 = arith.constant 0 : i32
    %c0_i32_0 = arith.constant 0 : i32
    %c0_i32_1 = arith.constant 0 : i32
    return %c0_i32, %c0_i32_0 : i32, i32
  }
  func.func @transform_7(%arg0: i32) -> (i32, i32) {
    %c0_i32 = arith.constant 0 : i32
    %c0_i32_0 = arith.constant 0 : i32
    %c0_i32_1 = arith.constant 0 : i32
    return %c0_i32, %c0_i32_0 : i32, i32
  }
}

module attributes {stable_mosaic.version = 11 : i64} {
  func.func @_mm_bias_act_kernel(%arg0: i32, %arg1: memref<128x128xbf16, #tpu.memory_space<vmem>>, %arg2: memref<128x128xbf16, #tpu.memory_space<vmem>>, %arg3: memref<1x128xf32, #tpu.memory_space<vmem>>, %arg4: memref<128x128xbf16, #tpu.memory_space<vmem>>) attributes {dimension_semantics = [#tpu.dimension_semantics<parallel>], iteration_bounds = array<i64: 1>, scalar_prefetch = 0 : i64, scratch_operands = 0 : i64, tpu.core_type = #tpu.core_type<tc>, window_params = [{transform_indices = @transform_0, window_bounds = array<i64: 128, 128>}, {pipeline_mode = #tpu.pipeline_mode<synchronous>, transform_indices = @transform_1, window_bounds = array<i64: 128, 128>}, {pipeline_mode = #tpu.pipeline_mode<synchronous>, transform_indices = @transform_2, window_bounds = array<i64: 1, 128>}, {transform_indices = @transform_3, window_bounds = array<i64: 128, 128>}]} {
    %c0 = arith.constant 0 : index
    %c0_0 = arith.constant 0 : index
    %0 = vector.load %arg1[%c0, %c0_0] : memref<128x128xbf16, #tpu.memory_space<vmem>>, vector<128x128xbf16>
    %c0_1 = arith.constant 0 : index
    %c0_2 = arith.constant 0 : index
    %1 = vector.load %arg2[%c0_1, %c0_2] : memref<128x128xbf16, #tpu.memory_space<vmem>>, vector<128x128xbf16>
    %cst = arith.constant dense<0.000000e+00> : vector<128x128xf32>
    %2 = tpu.matmul %0, %1, %cst {dimension_numbers = #tpu.dot_dimension_numbers<[1], [0], [0], [1], [0, 0, 1, 1], [], []>} : vector<128x128xbf16>, vector<128x128xbf16>, vector<128x128xf32> -> vector<128x128xf32>
    %c0_3 = arith.constant 0 : index
    %c0_4 = arith.constant 0 : index
    %3 = vector.load %arg3[%c0_3, %c0_4] : memref<1x128xf32, #tpu.memory_space<vmem>>, vector<1x128xf32>
    %4 = vector.broadcast %3 : vector<1x128xf32> to vector<128x128xf32>
    %5 = arith.addf %2, %4 : vector<128x128xf32>
    %6 = arith.truncf %5 : vector<128x128xf32> to vector<128x128xbf16>
    %c0_5 = arith.constant 0 : index
    %c0_6 = arith.constant 0 : index
    %7 = vector.load %arg4[%c0_5, %c0_6] : memref<128x128xbf16, #tpu.memory_space<vmem>>, vector<128x128xbf16>
    tpu.vector_store %arg4[%c0_5, %c0_6], %6 {strides = array<i32>} : memref<128x128xbf16, #tpu.memory_space<vmem>>, vector<128x128xbf16>,
    return
  }
  func.func @transform_0(%arg0: i32) -> (i32, i32) {
    %c0_i32 = arith.constant 0 : i32
    %c0_i32_0 = arith.constant 0 : i32
    return %arg0, %c0_i32 : i32, i32
  }
  func.func @transform_1(%arg0: i32) -> (i32, i32) {
    %c0_i32 = arith.constant 0 : i32
    %c0_i32_0 = arith.constant 0 : i32
    %c0_i32_1 = arith.constant 0 : i32
    return %c0_i32, %c0_i32_0 : i32, i32
  }
  func.func @transform_2(%arg0: i32) -> (i32, i32) {
    %c0_i32 = arith.constant 0 : i32
    %c0_i32_0 = arith.constant 0 : i32
    %c0_i32_1 = arith.constant 0 : i32
    return %c0_i32, %c0_i32_0 : i32, i32
  }
  func.func @transform_3(%arg0: i32) -> (i32, i32) {
    %c0_i32 = arith.constant 0 : i32
    %c0_i32_0 = arith.constant 0 : i32
    return %arg0, %c0_i32 : i32, i32
  }
}

module attributes {stable_mosaic.version = 11 : i64} {
  func.func @_mm_bias_act_kernel(%arg0: i32, %arg1: memref<128x384xbf16, #tpu.memory_space<vmem>>, %arg2: memref<384x128xbf16, #tpu.memory_space<vmem>>, %arg3: memref<1x128xf32, #tpu.memory_space<vmem>>, %arg4: memref<128x128xbf16, #tpu.memory_space<vmem>>) attributes {dimension_semantics = [#tpu.dimension_semantics<parallel>], iteration_bounds = array<i64: 1>, scalar_prefetch = 0 : i64, scratch_operands = 0 : i64, tpu.core_type = #tpu.core_type<tc>, window_params = [{transform_indices = @transform_0, window_bounds = array<i64: 128, 384>}, {pipeline_mode = #tpu.pipeline_mode<synchronous>, transform_indices = @transform_1, window_bounds = array<i64: 384, 128>}, {pipeline_mode = #tpu.pipeline_mode<synchronous>, transform_indices = @transform_2, window_bounds = array<i64: 1, 128>}, {transform_indices = @transform_3, window_bounds = array<i64: 128, 128>}]} {
    %c0 = arith.constant 0 : index
    %c0_0 = arith.constant 0 : index
    %0 = vector.load %arg1[%c0, %c0_0] : memref<128x384xbf16, #tpu.memory_space<vmem>>, vector<128x384xbf16>
    %c0_1 = arith.constant 0 : index
    %c0_2 = arith.constant 0 : index
    %1 = vector.load %arg2[%c0_1, %c0_2] : memref<384x128xbf16, #tpu.memory_space<vmem>>, vector<384x128xbf16>
    %cst = arith.constant dense<0.000000e+00> : vector<128x128xf32>
    %2 = tpu.matmul %0, %1, %cst {dimension_numbers = #tpu.dot_dimension_numbers<[1], [0], [0], [1], [0, 0, 1, 1], [], []>} : vector<128x384xbf16>, vector<384x128xbf16>, vector<128x128xf32> -> vector<128x128xf32>
    %c0_3 = arith.constant 0 : index
    %c0_4 = arith.constant 0 : index
    %3 = vector.load %arg3[%c0_3, %c0_4] : memref<1x128xf32, #tpu.memory_space<vmem>>, vector<1x128xf32>
    %4 = vector.broadcast %3 : vector<1x128xf32> to vector<128x128xf32>
    %5 = arith.addf %2, %4 : vector<128x128xf32>
    %cst_5 = arith.constant 0.000000e+00 : f32
    %6 = vector.broadcast %cst_5 : f32 to vector<128x128xf32>
    %7 = arith.cmpf ogt, %5, %6 : vector<128x128xf32>
    %cst_6 = arith.constant 2.000000e-01 : f32
    %8 = vector.broadcast %cst_6 : f32 to vector<128x128xf32>
    %9 = arith.mulf %8, %5 : vector<128x128xf32>
    %10 = arith.select %7, %5, %9 : vector<128x128xi1>, vector<128x128xf32>
    %11 = arith.truncf %10 : vector<128x128xf32> to vector<128x128xbf16>
    %c0_7 = arith.constant 0 : index
    %c0_8 = arith.constant 0 : index
    %12 = vector.load %arg4[%c0_7, %c0_8] : memref<128x128xbf16, #tpu.memory_space<vmem>>, vector<128x128xbf16>
    tpu.vector_store %arg4[%c0_7, %c0_8], %11 {strides = array<i32>} : memref<128x128xbf16, #tpu.memory_space<vmem>>, vector<128x128xbf16>,
    return
  }
  func.func @transform_0(%arg0: i32) -> (i32, i32) {
    %c0_i32 = arith.constant 0 : i32
    %c0_i32_0 = arith.constant 0 : i32
    return %arg0, %c0_i32 : i32, i32
  }
  func.func @transform_1(%arg0: i32) -> (i32, i32) {
    %c0_i32 = arith.constant 0 : i32
    %c0_i32_0 = arith.constant 0 : i32
    %c0_i32_1 = arith.constant 0 : i32
    return %c0_i32, %c0_i32_0 : i32, i32
  }
  func.func @transform_2(%arg0: i32) -> (i32, i32) {
    %c0_i32 = arith.constant 0 : i32
    %c0_i32_0 = arith.constant 0 : i32
    %c0_i32_1 = arith.constant 0 : i32
    return %c0_i32, %c0_i32_0 : i32, i32
  }
  func.func @transform_3(%arg0: i32) -> (i32, i32) {
    %c0_i32 = arith.constant 0 : i32
    %c0_i32_0 = arith.constant 0 : i32
    return %arg0, %c0_i32 : i32, i32
  }
}

module attributes {stable_mosaic.version = 11 : i64} {
  func.func @_mm_bias_act_kernel(%arg0: i32, %arg1: memref<128x256xbf16, #tpu.memory_space<vmem>>, %arg2: memref<256x128xbf16, #tpu.memory_space<vmem>>, %arg3: memref<1x128xf32, #tpu.memory_space<vmem>>, %arg4: memref<128x128xf32, #tpu.memory_space<vmem>>) attributes {dimension_semantics = [#tpu.dimension_semantics<parallel>], iteration_bounds = array<i64: 1>, scalar_prefetch = 0 : i64, scratch_operands = 0 : i64, tpu.core_type = #tpu.core_type<tc>, window_params = [{transform_indices = @transform_0, window_bounds = array<i64: 128, 256>}, {pipeline_mode = #tpu.pipeline_mode<synchronous>, transform_indices = @transform_1, window_bounds = array<i64: 256, 128>}, {pipeline_mode = #tpu.pipeline_mode<synchronous>, transform_indices = @transform_2, window_bounds = array<i64: 1, 128>}, {transform_indices = @transform_3, window_bounds = array<i64: 128, 128>}]} {
    %c0 = arith.constant 0 : index
    %c0_0 = arith.constant 0 : index
    %0 = vector.load %arg1[%c0, %c0_0] : memref<128x256xbf16, #tpu.memory_space<vmem>>, vector<128x256xbf16>
    %c0_1 = arith.constant 0 : index
    %c0_2 = arith.constant 0 : index
    %1 = vector.load %arg2[%c0_1, %c0_2] : memref<256x128xbf16, #tpu.memory_space<vmem>>, vector<256x128xbf16>
    %cst = arith.constant dense<0.000000e+00> : vector<128x128xf32>
    %2 = tpu.matmul %0, %1, %cst {dimension_numbers = #tpu.dot_dimension_numbers<[1], [0], [0], [1], [0, 0, 1, 1], [], []>} : vector<128x256xbf16>, vector<256x128xbf16>, vector<128x128xf32> -> vector<128x128xf32>
    %c0_3 = arith.constant 0 : index
    %c0_4 = arith.constant 0 : index
    %3 = vector.load %arg3[%c0_3, %c0_4] : memref<1x128xf32, #tpu.memory_space<vmem>>, vector<1x128xf32>
    %4 = vector.broadcast %3 : vector<1x128xf32> to vector<128x128xf32>
    %5 = arith.addf %2, %4 : vector<128x128xf32>
    %6 = math.tanh %5 : vector<128x128xf32>
    %c0_5 = arith.constant 0 : index
    %c0_6 = arith.constant 0 : index
    %7 = vector.load %arg4[%c0_5, %c0_6] : memref<128x128xf32, #tpu.memory_space<vmem>>, vector<128x128xf32>
    tpu.vector_store %arg4[%c0_5, %c0_6], %6 {strides = array<i32>} : memref<128x128xf32, #tpu.memory_space<vmem>>, vector<128x128xf32>,
    return
  }
  func.func @transform_0(%arg0: i32) -> (i32, i32) {
    %c0_i32 = arith.constant 0 : i32
    %c0_i32_0 = arith.constant 0 : i32
    return %arg0, %c0_i32 : i32, i32
  }
  func.func @transform_1(%arg0: i32) -> (i32, i32) {
    %c0_i32 = arith.constant 0 : i32
    %c0_i32_0 = arith.constant 0 : i32
    %c0_i32_1 = arith.constant 0 : i32
    return %c0_i32, %c0_i32_0 : i32, i32
  }
  func.func @transform_2(%arg0: i32) -> (i32, i32) {
    %c0_i32 = arith.constant 0 : i32
    %c0_i32_0 = arith.constant 0 : i32
    %c0_i32_1 = arith.constant 0 : i32
    return %c0_i32, %c0_i32_0 : i32, i32
  }
  func.func @transform_3(%arg0: i32) -> (i32, i32) {
    %c0_i32 = arith.constant 0 : i32
    %c0_i32_0 = arith.constant 0 : i32
    return %arg0, %c0_i32 : i32, i32
  }
}

</mosaic_0001>

<llo_original>
// kernel: tile.10
$region0: #{tile.10}
  #allocation0 [shape = 's32[1]{0}', space=sflag, size = 0x4, scoped, tag = 'scoped memory for tile.10']
  %s0 = inlined_call_operand.vmem [shape: f32[16], index: 0, kind: input, shape index: {}]
  %s1 = inlined_call_operand.vmem [shape: f32[4,16], index: 1, kind: output, shape index: {}]
  // Predicated region
  $region2: #{tile.10} parent=0 // pred_check
    _
  $region3: #{tile.10} parent=0 // pred_check_branch
    %3 = sbr.rel (0) target = $region5
  $region4: #{tile.10} parent=0 // pred_region
    _
  $region5: #{tile.10} parent=0 // pred_fallthru
    _
  %v4 = vld [vmem:[%s0] ss:$0 sm:$0xff]
  %5 = vst [vmem:[%s1] sm:$0xf] %v4

// kernel: tile.11
$region0: #{tile.11}
  %s0 = inlined_call_operand.vmem [shape: f32[4,16], index: 0, kind: input, shape index: {}]
  %s1 = inlined_call_operand.vmem [shape: f32[64], index: 1, kind: output, shape index: {}]
  $region1: #{tile.11} parent=0
    #allocation0 [shape = 'u8[4096]{0}', space=vmem, size = 0x1000, scoped, tag = 'scoped mem for output reshape']
    #allocation1 [shape = 'u8[4096]{0}', space=vmem, size = 0x1000, scoped, tag = 'scoped mem for input reshape']
    %s3 = sshllo.u32 0, 4
    %v4 = vld [vmem:[%s0] sm:%s3]
    %5 = vst [vmem:[#allocation1] sm:%s3] %v4
    %v6 = vld [vmem:[#allocation1] sm:$0x1]
    %vm7 = vcmask 130048
    %8 = vst.msk [vmem:[#allocation0] sm:$0x1] %vm7, %v6
    %s9 = scalar_lea.vmem [#allocation1], 3
    %v10 = vld [vmem:[%s9] sm:$0x1]
    %11 = vrot.lane.b32.xlu0 %v10, 48
    %v12 = vpop.permute.xlu0 %11
    %vm13 = vcmask 523648
    %14 = vst.msk [vmem:[#allocation0] sm:$0x1] %vm13, %v12
    %s15 = scalar_lea.vmem [#allocation1], 2
    %v16 = vld [vmem:[%s15] sm:$0x1]
    %17 = vrot.lane.b32.xlu0 %v16, 32
    %v18 = vpop.permute.xlu0 %17
    %vm19 = vcmask 392448
    %20 = vst.msk [vmem:[#allocation0] sm:$0x1] %vm19, %v18
    %s21 = scalar_lea.vmem [#allocation1], 1
    %v22 = vld [vmem:[%s21] sm:$0x1]
    %23 = vrot.lane.b32.xlu0 %v22, 16
    %v24 = vpop.permute.xlu0 %23
    %vm25 = vcmask 261248
    %26 = vst.msk [vmem:[#allocation0] sm:$0x1] %vm25, %v24
    %s28 = sshllo.u32 0, 1
    %v30 = vld [vmem:[#allocation0] sm:%s28]
    %s31 = sshllo.u32 0, 1
    %32 = vst [vmem:[%s1] sm:%s31] %v30

// kernel: tile.14
$region0: #{tile.14}
  #allocation0 [shape = 's32[1]{0}', space=sflag, size = 0x4, scoped, tag = 'scoped memory for tile.14']
  %s0 = inlined_call_operand.vmem [shape: f32[4], index: 0, kind: input, shape index: {}]
  %s1 = inlined_call_operand.vmem [shape: f32[4,4], index: 1, kind: output, shape index: {}]
  // Predicated region
  $region2: #{tile.14} parent=0 // pred_check
    _
  $region3: #{tile.14} parent=0 // pred_check_branch
    %3 = sbr.rel (0) target = $region5
  $region4: #{tile.14} parent=0 // pred_region
    _
  $region5: #{tile.14} parent=0 // pred_fallthru
    _
  %v4 = vld [vmem:[%s0] ss:$0 sm:$0xff]
  %5 = vst [vmem:[%s1] sm:$0xf] %v4

// kernel: tile.15
$region0: #{tile.15}
  %s0 = inlined_call_operand.vmem [shape: f32[4,4], index: 0, kind: input, shape index: {}]
  %s1 = inlined_call_operand.vmem [shape: f32[16], index: 1, kind: output, shape index: {}]
  $region1: #{tile.15} parent=0
    #allocation0 [shape = 'u8[4096]{0}', space=vmem, size = 0x1000, scoped, tag = 'scoped mem for output reshape']
    #allocation1 [shape = 'u8[4096]{0}', space=vmem, size = 0x1000, scoped, tag = 'scoped mem for input reshape']
    %s3 = sshllo.u32 0, 4
    %v4 = vld [vmem:[%s0] sm:%s3]
    %5 = vst [vmem:[#allocation1] sm:%s3] %v4
    %v6 = vld [vmem:[#allocation1] sm:$0x1]
    %vm7 = vcmask 31744
    %8 = vst.msk [vmem:[#allocation0] sm:$0x1] %vm7, %v6
    %s9 = scalar_lea.vmem [#allocation1], 3
    %v10 = vld [vmem:[%s9] sm:$0x1]
    %11 = vrot.lane.b32.xlu0 %v10, 12
    %v12 = vpop.permute.xlu0 %11
    %vm13 = vcmask 130144
    %14 = vst.msk [vmem:[#allocation0] sm:$0x1] %vm13, %v12
    %s15 = scalar_lea.vmem [#allocation1], 2
    %v16 = vld [vmem:[%s15] sm:$0x1]
    %17 = vrot.lane.b32.xlu0 %v16, 8
    %v18 = vpop.permute.xlu0 %17
    %vm19 = vcmask 97344
    %20 = vst.msk [vmem:[#allocation0] sm:$0x1] %vm19, %v18
    %s21 = scalar_lea.vmem [#allocation1], 1
    %v22 = vld [vmem:[%s21] sm:$0x1]
    %23 = vrot.lane.b32.xlu0 %v22, 4
    %v24 = vpop.permute.xlu0 %23
    %vm25 = vcmask 64544
    %26 = vst.msk [vmem:[#allocation0] sm:$0x1] %vm25, %v24
    %s28 = sshllo.u32 0, 1
    %v30 = vld [vmem:[#allocation0] sm:%s28]
    %s31 = sshllo.u32 0, 1
    %32 = vst [vmem:[%s1] sm:%s31] %v30

// kernel: _lambda_.7
$region0: #{_lambda_.7}
  #allocation0 [shape = 'u32[]', space=smem, size = 0x4, offset = 0x4, fixed_abs, tag = 'smem constant byte address 0x4 - core index']
  #allocation1 [shape = 'u32[144,128]{1,0:T(1,128)}', space=vmem, size = 0x12000, scoped, tag = 'internal scratch']
  %s0 = inlined_call_operand.vmem [shape: bf16[128,128], index: 0, kind: input, shape index: {}]
  %s1 = inlined_call_operand.vmem [shape: bf16[128,128], index: 1, kind: input, shape index: {}]
  %s2 = inlined_call_operand.vmem [shape: f32[1,128], index: 2, kind: input, shape index: {}]
  %s3 = inlined_call_operand.vmem [shape: bf16[128,128], index: 3, kind: output, shape index: {}]
  %s4 = sld [smem:[#allocation0]]
  $region22: #{_lambda_.7} parent=0
    _
  %s6 = ssub.s32 1, %s4
  %s7 = scalar_select 0, %s6, %s4
  // Predicated region
  $region2: #{_lambda_.7} parent=0 // pred_check
    _
  $region3: #{_lambda_.7} parent=0 // pred_check_branch
    %9 = sbr.rel (0) target = $region5
  $region4: #{_lambda_.7} parent=0 // pred_region
    _
  $region5: #{_lambda_.7} parent=0 // pred_fallthru
    _
  // Predicated region
  $region6: #{_lambda_.7} parent=0 // pred_check
    _
  $region7: #{_lambda_.7} parent=0 // pred_check_branch
    %11 = sbr.rel (0) target = $region9
  $region8: #{_lambda_.7} parent=0 // pred_region
    _
  $region9: #{_lambda_.7} parent=0 // pred_fallthru
    _
  // Predicated region
  $region10: #{_lambda_.7} parent=0 // pred_check
    _
  $region11: #{_lambda_.7} parent=0 // pred_check_branch
    %13 = sbr.rel (0) target = $region13
  $region12: #{_lambda_.7} parent=0 // pred_region
    _
  $region13: #{_lambda_.7} parent=0 // pred_fallthru
    _
  %v15 = vld [vmem:[%s0] sm:$0xf]
  %v16 = vld [vmem:[%s0 + $0x4] sm:$0xf]
  %v17 = vld [vmem:[%s0 + $0x8] sm:$0xf]
  %v18 = vld [vmem:[%s0 + $0xc] sm:$0xf]
  %v19 = vld [vmem:[%s0 + $0x10] sm:$0xf]
  %v20 = vld [vmem:[%s0 + $0x14] sm:$0xf]
  %v21 = vld [vmem:[%s0 + $0x18] sm:$0xf]
  %v22 = vld [vmem:[%s0 + $0x1c] sm:$0xf]
  %v23 = vld [vmem:[%s0 + $0x20] sm:$0xf]
  %v24 = vld [vmem:[%s0 + $0x24] sm:$0xf]
  %v25 = vld [vmem:[%s0 + $0x28] sm:$0xf]
  %v26 = vld [vmem:[%s0 + $0x2c] sm:$0xf]
  %v27 = vld [vmem:[%s0 + $0x30] sm:$0xf]
  %v28 = vld [vmem:[%s0 + $0x34] sm:$0xf]
  %v29 = vld [vmem:[%s0 + $0x38] sm:$0xf]
  %v30 = vld [vmem:[%s0 + $0x3c] sm:$0xf]
  %v31 = vld [vmem:[%s1] sm:$0xf]
  %v32 = vld [vmem:[%s1 + $0x4] sm:$0xf]
  %v33 = vld [vmem:[%s1 + $0x8] sm:$0xf]
  %v34 = vld [vmem:[%s1 + $0xc] sm:$0xf]
  %v35 = vld [vmem:[%s1 + $0x10] sm:$0xf]
  %v36 = vld [vmem:[%s1 + $0x14] sm:$0xf]
  %v37 = vld [vmem:[%s1 + $0x18] sm:$0xf]
  %v38 = vld [vmem:[%s1 + $0x1c] sm:$0xf]
  %v39 = vld [vmem:[%s1 + $0x20] sm:$0xf]
  %v40 = vld [vmem:[%s1 + $0x24] sm:$0xf]
  %v41 = vld [vmem:[%s1 + $0x28] sm:$0xf]
  %v42 = vld [vmem:[%s1 + $0x2c] sm:$0xf]
  %v43 = vld [vmem:[%s1 + $0x30] sm:$0xf]
  %v44 = vld [vmem:[%s1 + $0x34] sm:$0xf]
  %v45 = vld [vmem:[%s1 + $0x38] sm:$0xf]
  %v46 = vld [vmem:[%s1 + $0x3c] sm:$0xf]
  %v47 = vld [vmem:[%s2] sm:$0x1]
  %v49 = vlaneseq
  %v50 = vshrl.u32 %v49, 7
  %v51 = vsub.s32 0, %v50
  %v52 = vrot.slane %v47, %v51
  %v70 = vunpack.c.l.b16 %v15
  %v71 = vunpack.c.l.b16 %v16
  %v72 = vunpack.c.l.b16 %v17
  %v73 = vunpack.c.l.b16 %v18
  %v74 = vunpack.c.l.b16 %v19
  %v75 = vunpack.c.l.b16 %v20
  %v76 = vunpack.c.l.b16 %v21
  %v77 = vunpack.c.l.b16 %v22
  %v78 = vunpack.c.l.b16 %v23
  %v79 = vunpack.c.l.b16 %v24
  %v80 = vunpack.c.l.b16 %v25
  %v81 = vunpack.c.l.b16 %v26
  %v82 = vunpack.c.l.b16 %v27
  %v83 = vunpack.c.l.b16 %v28
  %v84 = vunpack.c.l.b16 %v29
  %v85 = vunpack.c.l.b16 %v30
  %v86 = vpack.c.b16 %v71, %v70
  %v87 = vpack.c.b16 %v73, %v72
  %v88 = vpack.c.b16 %v75, %v74
  %v89 = vpack.c.b16 %v77, %v76
  %v90 = vpack.c.b16 %v79, %v78
  %v91 = vpack.c.b16 %v81, %v80
  %v92 = vpack.c.b16 %v83, %v82
  %v93 = vpack.c.b16 %v85, %v84
  %v118 = vunpack.c.l.b16 %v31
  %v119 = vunpack.c.l.b16 %v32
  %v120 = vunpack.c.l.b16 %v33
  %v121 = vunpack.c.l.b16 %v34
  %v122 = vunpack.c.l.b16 %v35
  %v123 = vunpack.c.l.b16 %v36
  %v124 = vunpack.c.l.b16 %v37
  %v125 = vunpack.c.l.b16 %v38
  %v126 = vunpack.c.l.b16 %v39
  %v127 = vunpack.c.l.b16 %v40
  %v128 = vunpack.c.l.b16 %v41
  %v129 = vunpack.c.l.b16 %v42
  %v130 = vunpack.c.l.b16 %v43
  %v131 = vunpack.c.l.b16 %v44
  %v132 = vunpack.c.l.b16 %v45
  %v133 = vunpack.c.l.b16 %v46
  %v134 = vpack.c.b16 %v119, %v118
  %v135 = vpack.c.b16 %v121, %v120
  %v136 = vpack.c.b16 %v123, %v122
  %v137 = vpack.c.b16 %v125, %v124
  %v138 = vpack.c.b16 %v127, %v126
  %v139 = vpack.c.b16 %v129, %v128
  %v140 = vpack.c.b16 %v131, %v130
  %v141 = vpack.c.b16 %v133, %v132
  %150 = vmatprep.subr.bf16.mxu0 0
  %151 = vmatpush1.bf16.msra.mxu0 %v134
  %152 = vmatprep.subr.bf16.mxu0 0
  %153 = vmatpush1.bf16.msra.mxu0 %v135
  %154 = vmatprep.subr.bf16.mxu0 0
  %155 = vmatpush1.bf16.msra.mxu0 %v136
  %156 = vmatprep.subr.bf16.mxu0 0
  %157 = vmatpush1.bf16.msra.mxu0 %v137
  %158 = vmatprep.subr.bf16.mxu0 0
  %159 = vmatpush1.bf16.msra.mxu0 %v138
  %160 = vmatprep.subr.bf16.mxu0 0
  %161 = vmatpush1.bf16.msra.mxu0 %v139
  %162 = vmatprep.subr.bf16.mxu0 0
  %163 = vmatpush1.bf16.msra.mxu0 %v140
  %164 = vmatprep.subr.bf16.mxu0 0
  %165 = vmatpush1.bf16.msra.mxu0 %v141
  %166 = vmatprep.subr.bf16.mxu0 0
  %167 = vmatpush1.bf16.msra.mxu0 0
  %168 = vmatprep.subr.bf16.mxu0 0
  %169 = vmatpush1.bf16.msra.mxu0 0
  %170 = vmatprep.subr.bf16.mxu0 0
  %171 = vmatpush1.bf16.msra.mxu0 0
  %172 = vmatprep.subr.bf16.mxu0 0
  %173 = vmatpush1.bf16.msra.mxu0 0
  %174 = vmatprep.subr.bf16.mxu0 0
  %175 = vmatpush1.bf16.msra.mxu0 0
  %176 = vmatprep.subr.bf16.mxu0 0
  %177 = vmatpush1.bf16.msra.mxu0 0
  %178 = vmatprep.subr.bf16.mxu0 0
  %179 = vmatpush1.bf16.msra.mxu0 0
  %180 = vmatprep.subr.bf16.mxu0 0
  %181 = vmatpush1.bf16.msra.mxu0 0
  %182 = vmatprep.mubr.bf16.mxu0 0
  %183 = vmatmul.mubr.bf16.gmra.mrb[0].mxu0 %v86
  %v184 = vpop.f32.mrb[0].mxu0
  %v185 = vadd.f32 %v52, %v184
  %v186 = vpop.f32.mrb[0].mxu0
  %v187 = vpop.f32.mrb[0].mxu0
  %v188 = vadd.f32 %v52, %v187
  %v189 = vpop.f32.mrb[0].mxu0
  %190 = vmatprep.mubr.bf16.mxu0 0
  %191 = vmatmul.mubr.bf16.gmra.mrb[0].mxu0 %v87
  %v192 = vpop.f32.mrb[0].mxu0
  %v193 = vadd.f32 %v52, %v192
  %v194 = vpop.f32.mrb[0].mxu0
  %v195 = vpop.f32.mrb[0].mxu0
  %v196 = vadd.f32 %v52, %v195
  %v197 = vpop.f32.mrb[0].mxu0
  %198 = vmatprep.mubr.bf16.mxu0 0
  %199 = vmatmul.mubr.bf16.gmra.mrb[0].mxu0 %v88
  %v200 = vpop.f32.mrb[0].mxu0
  %v201 = vadd.f32 %v52, %v200
  %v202 = vpop.f32.mrb[0].mxu0
  %v203 = vpop.f32.mrb[0].mxu0
  %v204 = vadd.f32 %v52, %v203
  %v205 = vpop.f32.mrb[0].mxu0
  %206 = vmatprep.mubr.bf16.mxu0 0
  %207 = vmatmul.mubr.bf16.gmra.mrb[0].mxu0 %v89
  %v208 = vpop.f32.mrb[0].mxu0
  %v209 = vadd.f32 %v52, %v208
  %v210 = vpop.f32.mrb[0].mxu0
  %v211 = vpop.f32.mrb[0].mxu0
  %v212 = vadd.f32 %v52, %v211
  %v213 = vpop.f32.mrb[0].mxu0
  %214 = vmatprep.mubr.bf16.mxu0 0
  %215 = vmatmul.mubr.bf16.gmra.mrb[0].mxu0 %v90
  %v216 = vpop.f32.mrb[0].mxu0
  %v217 = vadd.f32 %v52, %v216
  %v218 = vpop.f32.mrb[0].mxu0
  %v219 = vpop.f32.mrb[0].mxu0
  %v220 = vadd.f32 %v52, %v219
  %v221 = vpop.f32.mrb[0].mxu0
  %222 = vmatprep.mubr.bf16.mxu0 0
  %223 = vmatmul.mubr.bf16.gmra.mrb[0].mxu0 %v91
  %v224 = vpop.f32.mrb[0].mxu0
  %v225 = vadd.f32 %v52, %v224
  %v226 = vpop.f32.mrb[0].mxu0
  %v227 = vpop.f32.mrb[0].mxu0
  %v228 = vadd.f32 %v52, %v227
  %v229 = vpop.f32.mrb[0].mxu0
  %230 = vmatprep.mubr.bf16.mxu0 0
  %231 = vmatmul.mubr.bf16.gmra.mrb[0].mxu0 %v92
  %v232 = vpop.f32.mrb[0].mxu0
  %v233 = vadd.f32 %v52, %v232
  %v234 = vpop.f32.mrb[0].mxu0
  %v235 = vpop.f32.mrb[0].mxu0
  %v236 = vadd.f32 %v52, %v235
  %v237 = vpop.f32.mrb[0].mxu0
  %238 = vmatprep.mubr.bf16.mxu0 0
  %239 = vmatmul.mubr.bf16.gmra.mrb[0].mxu0 %v93
  %v240 = vpop.f32.mrb[0].mxu0
  %v241 = vadd.f32 %v52, %v240
  %v242 = vpop.f32.mrb[0].mxu0
  %v243 = vpop.f32.mrb[0].mxu0
  %v244 = vadd.f32 %v52, %v243
  %v245 = vpop.f32.mrb[0].mxu0
  %246 = vdwg.mxu0
  %vm247 = vcmp.gt.f32.partialorder %v185, 0.0
  %vm248 = vcmp.gt.f32.partialorder %v188, 0.0
  %vm249 = vcmp.gt.f32.partialorder %v193, 0.0
  %vm250 = vcmp.gt.f32.partialorder %v196, 0.0
  %vm251 = vcmp.gt.f32.partialorder %v201, 0.0
  %vm252 = vcmp.gt.f32.partialorder %v204, 0.0
  %vm253 = vcmp.gt.f32.partialorder %v209, 0.0
  %vm254 = vcmp.gt.f32.partialorder %v212, 0.0
  %vm255 = vcmp.gt.f32.partialorder %v217, 0.0
  %vm256 = vcmp.gt.f32.partialorder %v220, 0.0
  %vm257 = vcmp.gt.f32.partialorder %v225, 0.0
  %vm258 = vcmp.gt.f32.partialorder %v228, 0.0
  %vm259 = vcmp.gt.f32.partialorder %v233, 0.0
  %vm260 = vcmp.gt.f32.partialorder %v236, 0.0
  %vm261 = vcmp.gt.f32.partialorder %v241, 0.0
  %vm262 = vcmp.gt.f32.partialorder %v244, 0.0
  %v263 = vmul.f32 %v185, 0.2
  %v264 = vmul.f32 %v188, 0.2
  %v265 = vmul.f32 %v193, 0.2
  %v266 = vmul.f32 %v196, 0.2
  %v267 = vmul.f32 %v201, 0.2
  %v268 = vmul.f32 %v204, 0.2
  %v269 = vmul.f32 %v209, 0.2
  %v270 = vmul.f32 %v212, 0.2
  %v271 = vmul.f32 %v217, 0.2
  %v272 = vmul.f32 %v220, 0.2
  %v273 = vmul.f32 %v225, 0.2
  %v274 = vmul.f32 %v228, 0.2
  %v275 = vmul.f32 %v233, 0.2
  %v276 = vmul.f32 %v236, 0.2
  %v277 = vmul.f32 %v241, 0.2
  %v278 = vmul.f32 %v244, 0.2
  %v279 = vsel %vm247, %v185, %v263
  %v280 = vsel %vm248, %v188, %v264
  %v281 = vsel %vm249, %v193, %v265
  %v282 = vsel %vm250, %v196, %v266
  %v283 = vsel %vm251, %v201, %v267
  %v284 = vsel %vm252, %v204, %v268
  %v285 = vsel %vm253, %v209, %v269
  %v286 = vsel %vm254, %v212, %v270
  %v287 = vsel %vm255, %v217, %v271
  %v288 = vsel %vm256, %v220, %v272
  %v289 = vsel %vm257, %v225, %v273
  %v290 = vsel %vm258, %v228, %v274
  %v291 = vsel %vm259, %v233, %v275
  %v292 = vsel %vm260, %v236, %v276
  %v293 = vsel %vm261, %v241, %v277
  %v294 = vsel %vm262, %v244, %v278
  %v295 = vpack.c.bf16 %v280, %v279
  %v296 = vpack.c.bf16 %v282, %v281
  %v297 = vpack.c.bf16 %v284, %v283
  %v298 = vpack.c.bf16 %v286, %v285
  %v299 = vpack.c.bf16 %v288, %v287
  %v300 = vpack.c.bf16 %v290, %v289
  %v301 = vpack.c.bf16 %v292, %v291
  %v302 = vpack.c.bf16 %v294, %v293
  %v311 = vunpack.c.l.b16 %v295
  %v312 = vunpack.c.h.b16 %v295
  %v313 = vunpack.c.l.b16 %v296
  %v314 = vunpack.c.h.b16 %v296
  %v315 = vunpack.c.l.b16 %v297
  %v316 = vunpack.c.h.b16 %v297
  %v317 = vunpack.c.l.b16 %v298
  %v318 = vunpack.c.h.b16 %v298
  %v319 = vunpack.c.l.b16 %v299
  %v320 = vunpack.c.h.b16 %v299
  %v321 = vunpack.c.l.b16 %v300
  %v322 = vunpack.c.h.b16 %v300
  %v323 = vunpack.c.l.b16 %v301
  %v324 = vunpack.c.h.b16 %v301
  %v325 = vunpack.c.l.b16 %v302
  %v326 = vunpack.c.h.b16 %v302
  %v327 = vpack.c.b16 %v311, %v311
  %v328 = vpack.c.b16 %v312, %v312
  %v329 = vpack.c.b16 %v313, %v313
  %v330 = vpack.c.b16 %v314, %v314
  %v331 = vpack.c.b16 %v315, %v315
  %v332 = vpack.c.b16 %v316, %v316
  %v333 = vpack.c.b16 %v317, %v317
  %v334 = vpack.c.b16 %v318, %v318
  %v335 = vpack.c.b16 %v319, %v319
  %v336 = vpack.c.b16 %v320, %v320
  %v337 = vpack.c.b16 %v321, %v321
  %v338 = vpack.c.b16 %v322, %v322
  %v339 = vpack.c.b16 %v323, %v323
  %v340 = vpack.c.b16 %v324, %v324
  %v341 = vpack.c.b16 %v325, %v325
  %v342 = vpack.c.b16 %v326, %v326
  %359 = vst [vmem:[%s3] sm:$0xf] %v327
  %360 = vst [vmem:[%s3 + $0x4] sm:$0xf] %v328
  %361 = vst [vmem:[%s3 + $0x8] sm:$0xf] %v329
  %362 = vst [vmem:[%s3 + $0xc] sm:$0xf] %v330
  %363 = vst [vmem:[%s3 + $0x10] sm:$0xf] %v331
  %364 = vst [vmem:[%s3 + $0x14] sm:$0xf] %v332
  %365 = vst [vmem:[%s3 + $0x18] sm:$0xf] %v333
  %366 = vst [vmem:[%s3 + $0x1c] sm:$0xf] %v334
  %367 = vst [vmem:[%s3 + $0x20] sm:$0xf] %v335
  %368 = vst [vmem:[%s3 + $0x24] sm:$0xf] %v336
  %369 = vst [vmem:[%s3 + $0x28] sm:$0xf] %v337
  %370 = vst [vmem:[%s3 + $0x2c] sm:$0xf] %v338
  %371 = vst [vmem:[%s3 + $0x30] sm:$0xf] %v339
  %372 = vst [vmem:[%s3 + $0x34] sm:$0xf] %v340
  %373 = vst [vmem:[%s3 + $0x38] sm:$0xf] %v341
  %374 = vst [vmem:[%s3 + $0x3c] sm:$0xf] %v342
  // Predicated region
  $region14: #{_lambda_.7} parent=0 // pred_check
    _
  $region15: #{_lambda_.7} parent=0 // pred_check_branch
    %376 = sbr.rel (0) target = $region17
  $region16: #{_lambda_.7} parent=0 // pred_region
    _
  $region17: #{_lambda_.7} parent=0 // pred_fallthru
    _
  // Predicated region
  $region18: #{_lambda_.7} parent=0 // pred_check
    _
  $region19: #{_lambda_.7} parent=0 // pred_check_branch
    %378 = sbr.rel (0) target = $region21
  $region20: #{_lambda_.7} parent=0 // pred_region
    _
  $region21: #{_lambda_.7} parent=0 // pred_fallthru
    _

// kernel: _lambda_.8
$region0: #{_lambda_.8}
  #allocation0 [shape = 'u32[]', space=smem, size = 0x4, offset = 0x4, fixed_abs, tag = 'smem constant byte address 0x4 - core index']
  #allocation1 [shape = 'u32[144,128]{1,0:T(1,128)}', space=vmem, size = 0x12000, scoped, tag = 'internal scratch']
  %s0 = inlined_call_operand.vmem [shape: bf16[128,256], index: 0, kind: input, shape index: {}]
  %s1 = inlined_call_operand.vmem [shape: bf16[256,128], index: 1, kind: input, shape index: {}]
  %s2 = inlined_call_operand.vmem [shape: f32[1,128], index: 2, kind: input, shape index: {}]
  %s3 = inlined_call_operand.vmem [shape: bf16[128,128], index: 3, kind: output, shape index: {}]
  %s4 = sld [smem:[#allocation0]]
  $region22: #{_lambda_.8} parent=0
    _
  %s6 = ssub.s32 1, %s4
  %s7 = scalar_select 0, %s6, %s4
  // Predicated region
  $region2: #{_lambda_.8} parent=0 // pred_check
    _
  $region3: #{_lambda_.8} parent=0 // pred_check_branch
    %9 = sbr.rel (0) target = $region5
  $region4: #{_lambda_.8} parent=0 // pred_region
    _
  $region5: #{_lambda_.8} parent=0 // pred_fallthru
    _
  // Predicated region
  $region6: #{_lambda_.8} parent=0 // pred_check
    _
  $region7: #{_lambda_.8} parent=0 // pred_check_branch
    %11 = sbr.rel (0) target = $region9
  $region8: #{_lambda_.8} parent=0 // pred_region
    _
  $region9: #{_lambda_.8} parent=0 // pred_fallthru
    _
  // Predicated region
  $region10: #{_lambda_.8} parent=0 // pred_check
    _
  $region11: #{_lambda_.8} parent=0 // pred_check_branch
    %13 = sbr.rel (0) target = $region13
  $region12: #{_lambda_.8} parent=0 // pred_region
    _
  $region13: #{_lambda_.8} parent=0 // pred_fallthru
    _
  %v15 = vld [vmem:[%s0] sm:$0xff]
  %v16 = vld [vmem:[%s0 + $0x8] sm:$0xff]
  %v17 = vld [vmem:[%s0 + $0x10] sm:$0xff]
  %v18 = vld [vmem:[%s0 + $0x18] sm:$0xff]
  %v19 = vld [vmem:[%s0 + $0x20] sm:$0xff]
  %v20 = vld [vmem:[%s0 + $0x28] sm:$0xff]
  %v21 = vld [vmem:[%s0 + $0x30] sm:$0xff]
  %v22 = vld [vmem:[%s0 + $0x38] sm:$0xff]
  %v23 = vld [vmem:[%s0 + $0x40] sm:$0xff]
  %v24 = vld [vmem:[%s0 + $0x48] sm:$0xff]
  %v25 = vld [vmem:[%s0 + $0x50] sm:$0xff]
  %v26 = vld [vmem:[%s0 + $0x58] sm:$0xff]
  %v27 = vld [vmem:[%s0 + $0x60] sm:$0xff]
  %v28 = vld [vmem:[%s0 + $0x68] sm:$0xff]
  %v29 = vld [vmem:[%s0 + $0x70] sm:$0xff]
  %v30 = vld [vmem:[%s0 + $0x78] sm:$0xff]
  %v31 = vld [vmem:[%s1] sm:$0xf]
  %v32 = vld [vmem:[%s1 + $0x4] sm:$0xf]
  %v33 = vld [vmem:[%s1 + $0x8] sm:$0xf]
  %v34 = vld [vmem:[%s1 + $0xc] sm:$0xf]
  %v35 = vld [vmem:[%s1 + $0x10] sm:$0xf]
  %v36 = vld [vmem:[%s1 + $0x14] sm:$0xf]
  %v37 = vld [vmem:[%s1 + $0x18] sm:$0xf]
  %v38 = vld [vmem:[%s1 + $0x1c] sm:$0xf]
  %v39 = vld [vmem:[%s1 + $0x20] sm:$0xf]
  %v40 = vld [vmem:[%s1 + $0x24] sm:$0xf]
  %v41 = vld [vmem:[%s1 + $0x28] sm:$0xf]
  %v42 = vld [vmem:[%s1 + $0x2c] sm:$0xf]
  %v43 = vld [vmem:[%s1 + $0x30] sm:$0xf]
  %v44 = vld [vmem:[%s1 + $0x34] sm:$0xf]
  %v45 = vld [vmem:[%s1 + $0x38] sm:$0xf]
  %v46 = vld [vmem:[%s1 + $0x3c] sm:$0xf]
  %v47 = vld [vmem:[%s1 + $0x40] sm:$0xf]
  %v48 = vld [vmem:[%s1 + $0x44] sm:$0xf]
  %v49 = vld [vmem:[%s1 + $0x48] sm:$0xf]
  %v50 = vld [vmem:[%s1 + $0x4c] sm:$0xf]
  %v51 = vld [vmem:[%s1 + $0x50] sm:$0xf]
  %v52 = vld [vmem:[%s1 + $0x54] sm:$0xf]
  %v53 = vld [vmem:[%s1 + $0x58] sm:$0xf]
  %v54 = vld [vmem:[%s1 + $0x5c] sm:$0xf]
  %v55 = vld [vmem:[%s1 + $0x60] sm:$0xf]
  %v56 = vld [vmem:[%s1 + $0x64] sm:$0xf]
  %v57 = vld [vmem:[%s1 + $0x68] sm:$0xf]
  %v58 = vld [vmem:[%s1 + $0x6c] sm:$0xf]
  %v59 = vld [vmem:[%s1 + $0x70] sm:$0xf]
  %v60 = vld [vmem:[%s1 + $0x74] sm:$0xf]
  %v61 = vld [vmem:[%s1 + $0x78] sm:$0xf]
  %v62 = vld [vmem:[%s1 + $0x7c] sm:$0xf]
  %v63 = vld [vmem:[%s2] sm:$0x1]
  %v65 = vlaneseq
  %v66 = vshrl.u32 %v65, 7
  %v67 = vsub.s32 0, %v66
  %v68 = vrot.slane %v63, %v67
  %v86 = vunpack.c.l.b16 %v15
  %v87 = vunpack.c.h.b16 %v15
  %v88 = vunpack.c.l.b16 %v16
  %v89 = vunpack.c.h.b16 %v16
  %v90 = vunpack.c.l.b16 %v17
  %v91 = vunpack.c.h.b16 %v17
  %v92 = vunpack.c.l.b16 %v18
  %v93 = vunpack.c.h.b16 %v18
  %v94 = vunpack.c.l.b16 %v19
  %v95 = vunpack.c.h.b16 %v19
  %v96 = vunpack.c.l.b16 %v20
  %v97 = vunpack.c.h.b16 %v20
  %v98 = vunpack.c.l.b16 %v21
  %v99 = vunpack.c.h.b16 %v21
  %v100 = vunpack.c.l.b16 %v22
  %v101 = vunpack.c.h.b16 %v22
  %v102 = vunpack.c.l.b16 %v23
  %v103 = vunpack.c.h.b16 %v23
  %v104 = vunpack.c.l.b16 %v24
  %v105 = vunpack.c.h.b16 %v24
  %v106 = vunpack.c.l.b16 %v25
  %v107 = vunpack.c.h.b16 %v25
  %v108 = vunpack.c.l.b16 %v26
  %v109 = vunpack.c.h.b16 %v26
  %v110 = vunpack.c.l.b16 %v27
  %v111 = vunpack.c.h.b16 %v27
  %v112 = vunpack.c.l.b16 %v28
  %v113 = vunpack.c.h.b16 %v28
  %v114 = vunpack.c.l.b16 %v29
  %v115 = vunpack.c.h.b16 %v29
  %v116 = vunpack.c.l.b16 %v30
  %v117 = vunpack.c.h.b16 %v30
  %v118 = vpack.c.b16 %v88, %v86
  %v119 = vpack.c.b16 %v89, %v87
  %v120 = vpack.c.b16 %v92, %v90
  %v121 = vpack.c.b16 %v93, %v91
  %v122 = vpack.c.b16 %v96, %v94
  %v123 = vpack.c.b16 %v97, %v95
  %v124 = vpack.c.b16 %v100, %v98
  %v125 = vpack.c.b16 %v101, %v99
  %v126 = vpack.c.b16 %v104, %v102
  %v127 = vpack.c.b16 %v105, %v103
  %v128 = vpack.c.b16 %v108, %v106
  %v129 = vpack.c.b16 %v109, %v107
  %v130 = vpack.c.b16 %v112, %v110
  %v131 = vpack.c.b16 %v113, %v111
  %v132 = vpack.c.b16 %v116, %v114
  %v133 = vpack.c.b16 %v117, %v115
  %v182 = vunpack.c.l.b16 %v31
  %v183 = vunpack.c.l.b16 %v32
  %v184 = vunpack.c.l.b16 %v33
  %v185 = vunpack.c.l.b16 %v34
  %v186 = vunpack.c.l.b16 %v35
  %v187 = vunpack.c.l.b16 %v36
  %v188 = vunpack.c.l.b16 %v37
  %v189 = vunpack.c.l.b16 %v38
  %v190 = vunpack.c.l.b16 %v39
  %v191 = vunpack.c.l.b16 %v40
  %v192 = vunpack.c.l.b16 %v41
  %v193 = vunpack.c.l.b16 %v42
  %v194 = vunpack.c.l.b16 %v43
  %v195 = vunpack.c.l.b16 %v44
  %v196 = vunpack.c.l.b16 %v45
  %v197 = vunpack.c.l.b16 %v46
  %v198 = vunpack.c.l.b16 %v47
  %v199 = vunpack.c.l.b16 %v48
  %v200 = vunpack.c.l.b16 %v49
  %v201 = vunpack.c.l.b16 %v50
  %v202 = vunpack.c.l.b16 %v51
  %v203 = vunpack.c.l.b16 %v52
  %v204 = vunpack.c.l.b16 %v53
  %v205 = vunpack.c.l.b16 %v54
  %v206 = vunpack.c.l.b16 %v55
  %v207 = vunpack.c.l.b16 %v56
  %v208 = vunpack.c.l.b16 %v57
  %v209 = vunpack.c.l.b16 %v58
  %v210 = vunpack.c.l.b16 %v59
  %v211 = vunpack.c.l.b16 %v60
  %v212 = vunpack.c.l.b16 %v61
  %v213 = vunpack.c.l.b16 %v62
  %v214 = vpack.c.b16 %v183, %v182
  %v215 = vpack.c.b16 %v185, %v184
  %v216 = vpack.c.b16 %v187, %v186
  %v217 = vpack.c.b16 %v189, %v188
  %v218 = vpack.c.b16 %v191, %v190
  %v219 = vpack.c.b16 %v193, %v192
  %v220 = vpack.c.b16 %v195, %v194
  %v221 = vpack.c.b16 %v197, %v196
  %v222 = vpack.c.b16 %v199, %v198
  %v223 = vpack.c.b16 %v201, %v200
  %v224 = vpack.c.b16 %v203, %v202
  %v225 = vpack.c.b16 %v205, %v204
  %v226 = vpack.c.b16 %v207, %v206
  %v227 = vpack.c.b16 %v209, %v208
  %v228 = vpack.c.b16 %v211, %v210
  %v229 = vpack.c.b16 %v213, %v212
  %246 = vmatprep.subr.bf16.mxu0 0
  %247 = vmatpush1.bf16.msra.mxu0 %v214
  %248 = vmatprep.subr.bf16.mxu0 0
  %249 = vmatpush1.bf16.msra.mxu0 %v215
  %250 = vmatprep.subr.bf16.mxu0 0
  %251 = vmatpush1.bf16.msra.mxu0 %v216
  %252 = vmatprep.subr.bf16.mxu0 0
  %253 = vmatpush1.bf16.msra.mxu0 %v217
  %254 = vmatprep.subr.bf16.mxu0 0
  %255 = vmatpush1.bf16.msra.mxu0 %v218
  %256 = vmatprep.subr.bf16.mxu0 0
  %257 = vmatpush1.bf16.msra.mxu0 %v219
  %258 = vmatprep.subr.bf16.mxu0 0
  %259 = vmatpush1.bf16.msra.mxu0 %v220
  %260 = vmatprep.subr.bf16.mxu0 0
  %261 = vmatpush1.bf16.msra.mxu0 %v221
  %262 = vmatprep.subr.bf16.mxu0 0
  %263 = vmatpush1.bf16.msra.mxu0 %v222
  %264 = vmatprep.subr.bf16.mxu0 0
  %265 = vmatpush1.bf16.msra.mxu0 %v223
  %266 = vmatprep.subr.bf16.mxu0 0
  %267 = vmatpush1.bf16.msra.mxu0 %v224
  %268 = vmatprep.subr.bf16.mxu0 0
  %269 = vmatpush1.bf16.msra.mxu0 %v225
  %270 = vmatprep.subr.bf16.mxu0 0
  %271 = vmatpush1.bf16.msra.mxu0 %v226
  %272 = vmatprep.subr.bf16.mxu0 0
  %273 = vmatpush1.bf16.msra.mxu0 %v227
  %274 = vmatprep.subr.bf16.mxu0 0
  %275 = vmatpush1.bf16.msra.mxu0 %v228
  %276 = vmatprep.subr.bf16.mxu0 0
  %277 = vmatpush1.bf16.msra.mxu0 %v229
  %278 = vmatprep.mubr.bf16.mxu0 %v119
  %279 = vmatmul.mubr.bf16.gmra.mrb[0].mxu0 %v118
  %v280 = vpop.f32.mrb[0].mxu0
  %v281 = vadd.f32 %v68, %v280
  %v282 = vpop.f32.mrb[0].mxu0
  %v283 = vpop.f32.mrb[0].mxu0
  %v284 = vadd.f32 %v68, %v283
  %v285 = vpop.f32.mrb[0].mxu0
  %286 = vmatprep.mubr.bf16.mxu0 %v121
  %287 = vmatmul.mubr.bf16.gmra.mrb[0].mxu0 %v120
  %v288 = vpop.f32.mrb[0].mxu0
  %v289 = vadd.f32 %v68, %v288
  %v290 = vpop.f32.mrb[0].mxu0
  %v291 = vpop.f32.mrb[0].mxu0
  %v292 = vadd.f32 %v68, %v291
  %v293 = vpop.f32.mrb[0].mxu0
  %294 = vmatprep.mubr.bf16.mxu0 %v123
  %295 = vmatmul.mubr.bf16.gmra.mrb[0].mxu0 %v122
  %v296 = vpop.f32.mrb[0].mxu0
  %v297 = vadd.f32 %v68, %v296
  %v298 = vpop.f32.mrb[0].mxu0
  %v299 = vpop.f32.mrb[0].mxu0
  %v300 = vadd.f32 %v68, %v299
  %v301 = vpop.f32.mrb[0].mxu0
  %302 = vmatprep.mubr.bf16.mxu0 %v125
  %303 = vmatmul.mubr.bf16.gmra.mrb[0].mxu0 %v124
  %v304 = vpop.f32.mrb[0].mxu0
  %v305 = vadd.f32 %v68, %v304
  %v306 = vpop.f32.mrb[0].mxu0
  %v307 = vpop.f32.mrb[0].mxu0
  %v308 = vadd.f32 %v68, %v307
  %v309 = vpop.f32.mrb[0].mxu0
  %310 = vmatprep.mubr.bf16.mxu0 %v127
  %311 = vmatmul.mubr.bf16.gmra.mrb[0].mxu0 %v126
  %v312 = vpop.f32.mrb[0].mxu0
  %v313 = vadd.f32 %v68, %v312
  %v314 = vpop.f32.mrb[0].mxu0
  %v315 = vpop.f32.mrb[0].mxu0
  %v316 = vadd.f32 %v68, %v315
  %v317 = vpop.f32.mrb[0].mxu0
  %318 = vmatprep.mubr.bf16.mxu0 %v129
  %319 = vmatmul.mubr.bf16.gmra.mrb[0].mxu0 %v128
  %v320 = vpop.f32.mrb[0].mxu0
  %v321 = vadd.f32 %v68, %v320
  %v322 = vpop.f32.mrb[0].mxu0
  %v323 = vpop.f32.mrb[0].mxu0
  %v324 = vadd.f32 %v68, %v323
  %v325 = vpop.f32.mrb[0].mxu0
  %326 = vmatprep.mubr.bf16.mxu0 %v131
  %327 = vmatmul.mubr.bf16.gmra.mrb[0].mxu0 %v130
  %v328 = vpop.f32.mrb[0].mxu0
  %v329 = vadd.f32 %v68, %v328
  %v330 = vpop.f32.mrb[0].mxu0
  %v331 = vpop.f32.mrb[0].mxu0
  %v332 = vadd.f32 %v68, %v331
  %v333 = vpop.f32.mrb[0].mxu0
  %334 = vmatprep.mubr.bf16.mxu0 %v133
  %335 = vmatmul.mubr.bf16.gmra.mrb[0].mxu0 %v132
  %v336 = vpop.f32.mrb[0].mxu0
  %v337 = vadd.f32 %v68, %v336
  %v338 = vpop.f32.mrb[0].mxu0
  %v339 = vpop.f32.mrb[0].mxu0
  %v340 = vadd.f32 %v68, %v339
  %v341 = vpop.f32.mrb[0].mxu0
  %342 = vdwg.mxu0
  %vm343 = vcmp.gt.f32.partialorder %v281, 0.0
  %vm344 = vcmp.gt.f32.partialorder %v284, 0.0
  %vm345 = vcmp.gt.f32.partialorder %v289, 0.0
  %vm346 = vcmp.gt.f32.partialorder %v292, 0.0
  %vm347 = vcmp.gt.f32.partialorder %v297, 0.0
  %vm348 = vcmp.gt.f32.partialorder %v300, 0.0
  %vm349 = vcmp.gt.f32.partialorder %v305, 0.0
  %vm350 = vcmp.gt.f32.partialorder %v308, 0.0
  %vm351 = vcmp.gt.f32.partialorder %v313, 0.0
  %vm352 = vcmp.gt.f32.partialorder %v316, 0.0
  %vm353 = vcmp.gt.f32.partialorder %v321, 0.0
  %vm354 = vcmp.gt.f32.partialorder %v324, 0.0
  %vm355 = vcmp.gt.f32.partialorder %v329, 0.0
  %vm356 = vcmp.gt.f32.partialorder %v332, 0.0
  %vm357 = vcmp.gt.f32.partialorder %v337, 0.0
  %vm358 = vcmp.gt.f32.partialorder %v340, 0.0
  %v359 = vmul.f32 %v281, 0.2
  %v360 = vmul.f32 %v284, 0.2
  %v361 = vmul.f32 %v289, 0.2
  %v362 = vmul.f32 %v292, 0.2
  %v363 = vmul.f32 %v297, 0.2
  %v364 = vmul.f32 %v300, 0.2
  %v365 = vmul.f32 %v305, 0.2
  %v366 = vmul.f32 %v308, 0.2
  %v367 = vmul.f32 %v313, 0.2
  %v368 = vmul.f32 %v316, 0.2
  %v369 = vmul.f32 %v321, 0.2
  %v370 = vmul.f32 %v324, 0.2
  %v371 = vmul.f32 %v329, 0.2
  %v372 = vmul.f32 %v332, 0.2
  %v373 = vmul.f32 %v337, 0.2
  %v374 = vmul.f32 %v340, 0.2
  %v375 = vsel %vm343, %v281, %v359
  %v376 = vsel %vm344, %v284, %v360
  %v377 = vsel %vm345, %v289, %v361
  %v378 = vsel %vm346, %v292, %v362
  %v379 = vsel %vm347, %v297, %v363
  %v380 = vsel %vm348, %v300, %v364
  %v381 = vsel %vm349, %v305, %v365
  %v382 = vsel %vm350, %v308, %v366
  %v383 = vsel %vm351, %v313, %v367
  %v384 = vsel %vm352, %v316, %v368
  %v385 = vsel %vm353, %v321, %v369
  %v386 = vsel %vm354, %v324, %v370
  %v387 = vsel %vm355, %v329, %v371
  %v388 = vsel %vm356, %v332, %v372
  %v389 = vsel %vm357, %v337, %v373
  %v390 = vsel %vm358, %v340, %v374
  %v391 = vpack.c.bf16 %v376, %v375
  %v392 = vpack.c.bf16 %v378, %v377
  %v393 = vpack.c.bf16 %v380, %v379
  %v394 = vpack.c.bf16 %v382, %v381
  %v395 = vpack.c.bf16 %v384, %v383
  %v396 = vpack.c.bf16 %v386, %v385
  %v397 = vpack.c.bf16 %v388, %v387
  %v398 = vpack.c.bf16 %v390, %v389
  %v407 = vunpack.c.l.b16 %v391
  %v408 = vunpack.c.h.b16 %v391
  %v409 = vunpack.c.l.b16 %v392
  %v410 = vunpack.c.h.b16 %v392
  %v411 = vunpack.c.l.b16 %v393
  %v412 = vunpack.c.h.b16 %v393
  %v413 = vunpack.c.l.b16 %v394
  %v414 = vunpack.c.h.b16 %v394
  %v415 = vunpack.c.l.b16 %v395
  %v416 = vunpack.c.h.b16 %v395
  %v417 = vunpack.c.l.b16 %v396
  %v418 = vunpack.c.h.b16 %v396
  %v419 = vunpack.c.l.b16 %v397
  %v420 = vunpack.c.h.b16 %v397
  %v421 = vunpack.c.l.b16 %v398
  %v422 = vunpack.c.h.b16 %v398
  %v423 = vpack.c.b16 %v407, %v407
  %v424 = vpack.c.b16 %v408, %v408
  %v425 = vpack.c.b16 %v409, %v409
  %v426 = vpack.c.b16 %v410, %v410
  %v427 = vpack.c.b16 %v411, %v411
  %v428 = vpack.c.b16 %v412, %v412
  %v429 = vpack.c.b16 %v413, %v413
  %v430 = vpack.c.b16 %v414, %v414
  %v431 = vpack.c.b16 %v415, %v415
  %v432 = vpack.c.b16 %v416, %v416
  %v433 = vpack.c.b16 %v417, %v417
  %v434 = vpack.c.b16 %v418, %v418
  %v435 = vpack.c.b16 %v419, %v419
  %v436 = vpack.c.b16 %v420, %v420
  %v437 = vpack.c.b16 %v421, %v421
  %v438 = vpack.c.b16 %v422, %v422
  %455 = vst [vmem:[%s3] sm:$0xf] %v423
  %456 = vst [vmem:[%s3 + $0x4] sm:$0xf] %v424
  %457 = vst [vmem:[%s3 + $0x8] sm:$0xf] %v425
  %458 = vst [vmem:[%s3 + $0xc] sm:$0xf] %v426
  %459 = vst [vmem:[%s3 + $0x10] sm:$0xf] %v427
  %460 = vst [vmem:[%s3 + $0x14] sm:$0xf] %v428
  %461 = vst [vmem:[%s3 + $0x18] sm:$0xf] %v429
  %462 = vst [vmem:[%s3 + $0x1c] sm:$0xf] %v430
  %463 = vst [vmem:[%s3 + $0x20] sm:$0xf] %v431
  %464 = vst [vmem:[%s3 + $0x24] sm:$0xf] %v432
  %465 = vst [vmem:[%s3 + $0x28] sm:$0xf] %v433
  %466 = vst [vmem:[%s3 + $0x2c] sm:$0xf] %v434
  %467 = vst [vmem:[%s3 + $0x30] sm:$0xf] %v435
  %468 = vst [vmem:[%s3 + $0x34] sm:$0xf] %v436
  %469 = vst [vmem:[%s3 + $0x38] sm:$0xf] %v437
  %470 = vst [vmem:[%s3 + $0x3c] sm:$0xf] %v438
  // Predicated region
  $region14: #{_lambda_.8} parent=0 // pred_check
    _
  $region15: #{_lambda_.8} parent=0 // pred_check_branch
    %472 = sbr.rel (0) target = $region17
  $region16: #{_lambda_.8} parent=0 // pred_region
    _
  $region17: #{_lambda_.8} parent=0 // pred_fallthru
    _
  // Predicated region
  $region18: #{_lambda_.8} parent=0 // pred_check
    _
  $region19: #{_lambda_.8} parent=0 // pred_check_branch
    %474 = sbr.rel (0) target = $region21
  $region20: #{_lambda_.8} parent=0 // pred_region
    _
  $region21: #{_lambda_.8} parent=0 // pred_fallthru
    _

// kernel: _lambda_.9
$region0: #{_lambda_.9}
  #allocation0 [shape = 'u32[]', space=smem, size = 0x4, offset = 0x4, fixed_abs, tag = 'smem constant byte address 0x4 - core index']
  #allocation1 [shape = 'u32[144,128]{1,0:T(1,128)}', space=vmem, size = 0x12000, scoped, tag = 'internal scratch']
  %s0 = inlined_call_operand.vmem [shape: bf16[128,128], index: 0, kind: input, shape index: {}]
  %s1 = inlined_call_operand.vmem [shape: bf16[128,128], index: 1, kind: input, shape index: {}]
  %s2 = inlined_call_operand.vmem [shape: f32[1,128], index: 2, kind: input, shape index: {}]
  %s3 = inlined_call_operand.vmem [shape: f32[128,128], index: 3, kind: output, shape index: {}]
  %s4 = sld [smem:[#allocation0]]
  $region22: #{_lambda_.9} parent=0
    _
  %s6 = ssub.s32 1, %s4
  %s7 = scalar_select 0, %s6, %s4
  // Predicated region
  $region2: #{_lambda_.9} parent=0 // pred_check
    _
  $region3: #{_lambda_.9} parent=0 // pred_check_branch
    %9 = sbr.rel (0) target = $region5
  $region4: #{_lambda_.9} parent=0 // pred_region
    _
  $region5: #{_lambda_.9} parent=0 // pred_fallthru
    _
  // Predicated region
  $region6: #{_lambda_.9} parent=0 // pred_check
    _
  $region7: #{_lambda_.9} parent=0 // pred_check_branch
    %11 = sbr.rel (0) target = $region9
  $region8: #{_lambda_.9} parent=0 // pred_region
    _
  $region9: #{_lambda_.9} parent=0 // pred_fallthru
    _
  // Predicated region
  $region10: #{_lambda_.9} parent=0 // pred_check
    _
  $region11: #{_lambda_.9} parent=0 // pred_check_branch
    %13 = sbr.rel (0) target = $region13
  $region12: #{_lambda_.9} parent=0 // pred_region
    _
  $region13: #{_lambda_.9} parent=0 // pred_fallthru
    _
  %v15 = vld [vmem:[%s0] sm:$0xf]
  %v16 = vld [vmem:[%s0 + $0x4] sm:$0xf]
  %v17 = vld [vmem:[%s0 + $0x8] sm:$0xf]
  %v18 = vld [vmem:[%s0 + $0xc] sm:$0xf]
  %v19 = vld [vmem:[%s0 + $0x10] sm:$0xf]
  %v20 = vld [vmem:[%s0 + $0x14] sm:$0xf]
  %v21 = vld [vmem:[%s0 + $0x18] sm:$0xf]
  %v22 = vld [vmem:[%s0 + $0x1c] sm:$0xf]
  %v23 = vld [vmem:[%s0 + $0x20] sm:$0xf]
  %v24 = vld [vmem:[%s0 + $0x24] sm:$0xf]
  %v25 = vld [vmem:[%s0 + $0x28] sm:$0xf]
  %v26 = vld [vmem:[%s0 + $0x2c] sm:$0xf]
  %v27 = vld [vmem:[%s0 + $0x30] sm:$0xf]
  %v28 = vld [vmem:[%s0 + $0x34] sm:$0xf]
  %v29 = vld [vmem:[%s0 + $0x38] sm:$0xf]
  %v30 = vld [vmem:[%s0 + $0x3c] sm:$0xf]
  %v31 = vld [vmem:[%s1] sm:$0xf]
  %v32 = vld [vmem:[%s1 + $0x4] sm:$0xf]
  %v33 = vld [vmem:[%s1 + $0x8] sm:$0xf]
  %v34 = vld [vmem:[%s1 + $0xc] sm:$0xf]
  %v35 = vld [vmem:[%s1 + $0x10] sm:$0xf]
  %v36 = vld [vmem:[%s1 + $0x14] sm:$0xf]
  %v37 = vld [vmem:[%s1 + $0x18] sm:$0xf]
  %v38 = vld [vmem:[%s1 + $0x1c] sm:$0xf]
  %v39 = vld [vmem:[%s1 + $0x20] sm:$0xf]
  %v40 = vld [vmem:[%s1 + $0x24] sm:$0xf]
  %v41 = vld [vmem:[%s1 + $0x28] sm:$0xf]
  %v42 = vld [vmem:[%s1 + $0x2c] sm:$0xf]
  %v43 = vld [vmem:[%s1 + $0x30] sm:$0xf]
  %v44 = vld [vmem:[%s1 + $0x34] sm:$0xf]
  %v45 = vld [vmem:[%s1 + $0x38] sm:$0xf]
  %v46 = vld [vmem:[%s1 + $0x3c] sm:$0xf]
  %v47 = vld [vmem:[%s2] sm:$0x1]
  %v49 = vlaneseq
  %v50 = vshrl.u32 %v49, 7
  %v51 = vsub.s32 0, %v50
  %v52 = vrot.slane %v47, %v51
  %v70 = vunpack.c.l.b16 %v15
  %v71 = vunpack.c.l.b16 %v16
  %v72 = vunpack.c.l.b16 %v17
  %v73 = vunpack.c.l.b16 %v18
  %v74 = vunpack.c.l.b16 %v19
  %v75 = vunpack.c.l.b16 %v20
  %v76 = vunpack.c.l.b16 %v21
  %v77 = vunpack.c.l.b16 %v22
  %v78 = vunpack.c.l.b16 %v23
  %v79 = vunpack.c.l.b16 %v24
  %v80 = vunpack.c.l.b16 %v25
  %v81 = vunpack.c.l.b16 %v26
  %v82 = vunpack.c.l.b16 %v27
  %v83 = vunpack.c.l.b16 %v28
  %v84 = vunpack.c.l.b16 %v29
  %v85 = vunpack.c.l.b16 %v30
  %v86 = vpack.c.b16 %v71, %v70
  %v87 = vpack.c.b16 %v73, %v72
  %v88 = vpack.c.b16 %v75, %v74
  %v89 = vpack.c.b16 %v77, %v76
  %v90 = vpack.c.b16 %v79, %v78
  %v91 = vpack.c.b16 %v81, %v80
  %v92 = vpack.c.b16 %v83, %v82
  %v93 = vpack.c.b16 %v85, %v84
  %v118 = vunpack.c.l.b16 %v31
  %v119 = vunpack.c.l.b16 %v32
  %v120 = vunpack.c.l.b16 %v33
  %v121 = vunpack.c.l.b16 %v34
  %v122 = vunpack.c.l.b16 %v35
  %v123 = vunpack.c.l.b16 %v36
  %v124 = vunpack.c.l.b16 %v37
  %v125 = vunpack.c.l.b16 %v38
  %v126 = vunpack.c.l.b16 %v39
  %v127 = vunpack.c.l.b16 %v40
  %v128 = vunpack.c.l.b16 %v41
  %v129 = vunpack.c.l.b16 %v42
  %v130 = vunpack.c.l.b16 %v43
  %v131 = vunpack.c.l.b16 %v44
  %v132 = vunpack.c.l.b16 %v45
  %v133 = vunpack.c.l.b16 %v46
  %v134 = vpack.c.b16 %v119, %v118
  %v135 = vpack.c.b16 %v121, %v120
  %v136 = vpack.c.b16 %v123, %v122
  %v137 = vpack.c.b16 %v125, %v124
  %v138 = vpack.c.b16 %v127, %v126
  %v139 = vpack.c.b16 %v129, %v128
  %v140 = vpack.c.b16 %v131, %v130
  %v141 = vpack.c.b16 %v133, %v132
  %150 = vmatprep.subr.bf16.mxu0 0
  %151 = vmatpush1.bf16.msra.mxu0 %v134
  %152 = vmatprep.subr.bf16.mxu0 0
  %153 = vmatpush1.bf16.msra.mxu0 %v135
  %154 = vmatprep.subr.bf16.mxu0 0
  %155 = vmatpush1.bf16.msra.mxu0 %v136
  %156 = vmatprep.subr.bf16.mxu0 0
  %157 = vmatpush1.bf16.msra.mxu0 %v137
  %158 = vmatprep.subr.bf16.mxu0 0
  %159 = vmatpush1.bf16.msra.mxu0 %v138
  %160 = vmatprep.subr.bf16.mxu0 0
  %161 = vmatpush1.bf16.msra.mxu0 %v139
  %162 = vmatprep.subr.bf16.mxu0 0
  %163 = vmatpush1.bf16.msra.mxu0 %v140
  %164 = vmatprep.subr.bf16.mxu0 0
  %165 = vmatpush1.bf16.msra.mxu0 %v141
  %166 = vmatprep.subr.bf16.mxu0 0
  %167 = vmatpush1.bf16.msra.mxu0 0
  %168 = vmatprep.subr.bf16.mxu0 0
  %169 = vmatpush1.bf16.msra.mxu0 0
  %170 = vmatprep.subr.bf16.mxu0 0
  %171 = vmatpush1.bf16.msra.mxu0 0
  %172 = vmatprep.subr.bf16.mxu0 0
  %173 = vmatpush1.bf16.msra.mxu0 0
  %174 = vmatprep.subr.bf16.mxu0 0
  %175 = vmatpush1.bf16.msra.mxu0 0
  %176 = vmatprep.subr.bf16.mxu0 0
  %177 = vmatpush1.bf16.msra.mxu0 0
  %178 = vmatprep.subr.bf16.mxu0 0
  %179 = vmatpush1.bf16.msra.mxu0 0
  %180 = vmatprep.subr.bf16.mxu0 0
  %181 = vmatpush1.bf16.msra.mxu0 0
  %182 = vmatprep.mubr.bf16.mxu0 0
  %183 = vmatmul.mubr.bf16.gmra.mrb[0].mxu0 %v86
  %v184 = vpop.f32.mrb[0].mxu0
  %v185 = vadd.f32 %v52, %v184
  %v186 = vpop.f32.mrb[0].mxu0
  %v187 = vpop.f32.mrb[0].mxu0
  %v188 = vadd.f32 %v52, %v187
  %v189 = vpop.f32.mrb[0].mxu0
  %190 = vmatprep.mubr.bf16.mxu0 0
  %191 = vmatmul.mubr.bf16.gmra.mrb[0].mxu0 %v87
  %v192 = vpop.f32.mrb[0].mxu0
  %v193 = vadd.f32 %v52, %v192
  %v194 = vpop.f32.mrb[0].mxu0
  %v195 = vpop.f32.mrb[0].mxu0
  %v196 = vadd.f32 %v52, %v195
  %v197 = vpop.f32.mrb[0].mxu0
  %198 = vmatprep.mubr.bf16.mxu0 0
  %199 = vmatmul.mubr.bf16.gmra.mrb[0].mxu0 %v88
  %v200 = vpop.f32.mrb[0].mxu0
  %v201 = vadd.f32 %v52, %v200
  %v202 = vpop.f32.mrb[0].mxu0
  %v203 = vpop.f32.mrb[0].mxu0
  %v204 = vadd.f32 %v52, %v203
  %v205 = vpop.f32.mrb[0].mxu0
  %206 = vmatprep.mubr.bf16.mxu0 0
  %207 = vmatmul.mubr.bf16.gmra.mrb[0].mxu0 %v89
  %v208 = vpop.f32.mrb[0].mxu0
  %v209 = vadd.f32 %v52, %v208
  %v210 = vpop.f32.mrb[0].mxu0
  %v211 = vpop.f32.mrb[0].mxu0
  %v212 = vadd.f32 %v52, %v211
  %v213 = vpop.f32.mrb[0].mxu0
  %214 = vmatprep.mubr.bf16.mxu0 0
  %215 = vmatmul.mubr.bf16.gmra.mrb[0].mxu0 %v90
  %v216 = vpop.f32.mrb[0].mxu0
  %v217 = vadd.f32 %v52, %v216
  %v218 = vpop.f32.mrb[0].mxu0
  %v219 = vpop.f32.mrb[0].mxu0
  %v220 = vadd.f32 %v52, %v219
  %v221 = vpop.f32.mrb[0].mxu0
  %222 = vmatprep.mubr.bf16.mxu0 0
  %223 = vmatmul.mubr.bf16.gmra.mrb[0].mxu0 %v91
  %v224 = vpop.f32.mrb[0].mxu0
  %v225 = vadd.f32 %v52, %v224
  %v226 = vpop.f32.mrb[0].mxu0
  %v227 = vpop.f32.mrb[0].mxu0
  %v228 = vadd.f32 %v52, %v227
  %v229 = vpop.f32.mrb[0].mxu0
  %230 = vmatprep.mubr.bf16.mxu0 0
  %231 = vmatmul.mubr.bf16.gmra.mrb[0].mxu0 %v92
  %v232 = vpop.f32.mrb[0].mxu0
  %v233 = vadd.f32 %v52, %v232
  %v234 = vpop.f32.mrb[0].mxu0
  %v235 = vpop.f32.mrb[0].mxu0
  %v236 = vadd.f32 %v52, %v235
  %v237 = vpop.f32.mrb[0].mxu0
  %238 = vmatprep.mubr.bf16.mxu0 0
  %239 = vmatmul.mubr.bf16.gmra.mrb[0].mxu0 %v93
  %v240 = vpop.f32.mrb[0].mxu0
  %v241 = vadd.f32 %v52, %v240
  %v242 = vpop.f32.mrb[0].mxu0
  %v243 = vpop.f32.mrb[0].mxu0
  %v244 = vadd.f32 %v52, %v243
  %v245 = vpop.f32.mrb[0].mxu0
  %246 = vdwg.mxu0
  %247 = vst [vmem:[%s3] sm:$0xff] %v185
  %248 = vst [vmem:[%s3 + $0x8] sm:$0xff] %v188
  %249 = vst [vmem:[%s3 + $0x10] sm:$0xff] %v193
  %250 = vst [vmem:[%s3 + $0x18] sm:$0xff] %v196
  %251 = vst [vmem:[%s3 + $0x20] sm:$0xff] %v201
  %252 = vst [vmem:[%s3 + $0x28] sm:$0xff] %v204
  %253 = vst [vmem:[%s3 + $0x30] sm:$0xff] %v209
  %254 = vst [vmem:[%s3 + $0x38] sm:$0xff] %v212
  %255 = vst [vmem:[%s3 + $0x40] sm:$0xff] %v217
  %256 = vst [vmem:[%s3 + $0x48] sm:$0xff] %v220
  %257 = vst [vmem:[%s3 + $0x50] sm:$0xff] %v225
  %258 = vst [vmem:[%s3 + $0x58] sm:$0xff] %v228
  %259 = vst [vmem:[%s3 + $0x60] sm:$0xff] %v233
  %260 = vst [vmem:[%s3 + $0x68] sm:$0xff] %v236
  %261 = vst [vmem:[%s3 + $0x70] sm:$0xff] %v241
  %262 = vst [vmem:[%s3 + $0x78] sm:$0xff] %v244
  // Predicated region
  $region14: #{_lambda_.9} parent=0 // pred_check
    _
  $region15: #{_lambda_.9} parent=0 // pred_check_branch
    %264 = sbr.rel (0) target = $region17
  $region16: #{_lambda_.9} parent=0 // pred_region
    _
  $region17: #{_lambda_.9} parent=0 // pred_fallthru
    _
  // Predicated region
  $region18: #{_lambda_.9} parent=0 // pred_check
    _
  $region19: #{_lambda_.9} parent=0 // pred_check_branch
    %266 = sbr.rel (0) target = $region21
  $region20: #{_lambda_.9} parent=0 // pred_region
    _
  $region21: #{_lambda_.9} parent=0 // pred_fallthru
    _

// kernel: squeeze.5
$region0: #{squeeze.5}
  %s0 = inlined_call_operand.vmem [shape: s32[32], index: 0, kind: input, shape index: {}]
  %s1 = inlined_call_operand.hbm [shape: s32[2,4,4], index: 1, kind: output, shape index: {}]
  $region1: #{squeeze.5} parent=0
    #allocation0 [shape = 'u8[4096]{0}', space=vmem, size = 0x1000, scoped, tag = 'operand span for operand 1']
    #allocation1 [shape = 's32[1]{0}', space=sflag, size = 0x4, scoped, tag = 'scoped memory for squeeze.5']
    #allocation2 [shape = 'u8[8192]{0}', space=vmem, size = 0x2000, scoped, tag = 'scoped mem for output reshape']
    #allocation3 [shape = 'u8[4096]{0}', space=vmem, size = 0x1000, scoped, tag = 'scoped mem for input reshape']
    %2 = vsyncpa [#allocation1], 0
    %s4 = sshllo.u32 0, 1
    %v5 = vld [vmem:[%s0] sm:%s4]
    %6 = vst [vmem:[#allocation3] sm:%s4] %v5
    %v7 = vld [vmem:[#allocation3] sm:$0x1]
    %vm8 = vcmask 31744
    %9 = vst.msk [vmem:[#allocation2] sm:$0x1] %vm8, %v7
    %v10 = vld [vmem:[#allocation3] sm:$0x1]
    %11 = vrot.lane.b32.xlu0 %v10, 124
    %v12 = vpop.permute.xlu0 %11
    %vm13 = vcmask 31744
    %s14 = scalar_lea.vmem [#allocation2], 1
    %15 = vst.msk [vmem:[%s14] sm:$0x1] %vm13, %v12
    %v16 = vld [vmem:[#allocation3] sm:$0x1]
    %17 = vrot.lane.b32.xlu0 %v16, 120
    %v18 = vpop.permute.xlu0 %17
    %vm19 = vcmask 31744
    %s20 = scalar_lea.vmem [#allocation2], 2
    %21 = vst.msk [vmem:[%s20] sm:$0x1] %vm19, %v18
    %v22 = vld [vmem:[#allocation3] sm:$0x1]
    %23 = vrot.lane.b32.xlu0 %v22, 116
    %v24 = vpop.permute.xlu0 %23
    %vm25 = vcmask 31744
    %s26 = scalar_lea.vmem [#allocation2], 3
    %27 = vst.msk [vmem:[%s26] sm:$0x1] %vm25, %v24
    %v28 = vld [vmem:[#allocation3] sm:$0x1]
    %29 = vrot.lane.b32.xlu0 %v28, 112
    %v30 = vpop.permute.xlu0 %29
    %vm31 = vcmask 31744
    %s32 = scalar_lea.vmem [#allocation2], 8
    %33 = vst.msk [vmem:[%s32] sm:$0x1] %vm31, %v30
    %v34 = vld [vmem:[#allocation3] sm:$0x1]
    %35 = vrot.lane.b32.xlu0 %v34, 108
    %v36 = vpop.permute.xlu0 %35
    %vm37 = vcmask 31744
    %s38 = scalar_lea.vmem [#allocation2], 9
    %39 = vst.msk [vmem:[%s38] sm:$0x1] %vm37, %v36
    %v40 = vld [vmem:[#allocation3] sm:$0x1]
    %41 = vrot.lane.b32.xlu0 %v40, 104
    %v42 = vpop.permute.xlu0 %41
    %vm43 = vcmask 31744
    %s44 = scalar_lea.vmem [#allocation2], 10
    %45 = vst.msk [vmem:[%s44] sm:$0x1] %vm43, %v42
    %v46 = vld [vmem:[#allocation3] sm:$0x1]
    %47 = vrot.lane.b32.xlu0 %v46, 100
    %v48 = vpop.permute.xlu0 %47
    %vm49 = vcmask 31744
    %s50 = scalar_lea.vmem [#allocation2], 11
    %51 = vst.msk [vmem:[%s50] sm:$0x1] %vm49, %v48
    %s53 = sshllo.u32 0, 4
    %v55 = vld [vmem:[#allocation2] sm:%s53]
    %s56 = sshllo.u32 0, 4
    %57 = vst [vmem:[#allocation0] sm:%s56] %v55
    %s58 = scalar_lea.vmem [#allocation2], 8
    %v59 = vld [vmem:[%s58] sm:%s53]
    %s60 = sshllo.u32 0, 4
    %s61 = scalar_lea.vmem [#allocation0], 4
    %62 = vst [vmem:[%s61] sm:%s60] %v59
    %s64 = ssub.s32 128, 128
    %65 = vsyncadd [#allocation1], %s64
    %s67 = sshll.u32 [#allocation0], 4
    %s68 = int_to_ptr.vmem [resolvable:$true] %s67
    %70 = dma.vmem_to_hbm [thread:$0]  %s68, 128, %s1, [#allocation1]
    %71 = dma.done [#allocation1], 128
    %72 = vsyncpa [#allocation1], 1

// kernel: _lambda_.10
$region0: #{_lambda_.10}
  #allocation0 [shape = 'u32[]', space=smem, size = 0x4, offset = 0x4, fixed_abs, tag = 'smem constant byte address 0x4 - core index']
  #allocation1 [shape = 'u32[144,128]{1,0:T(1,128)}', space=vmem, size = 0x12000, scoped, tag = 'internal scratch']
  #allocation2 [shape = 'f32[1,1]{1,0:T(1,128)}', space=vmem, size = 0x200, scoped, tag = 'scratch operand']
  %s0 = inlined_call_operand.vmem [shape: f32[32,128], index: 0, kind: input, shape index: {}]
  %s1 = inlined_call_operand.vmem [shape: f32[128,128], index: 1, kind: input, shape index: {}]
  %s2 = inlined_call_operand.vmem [shape: f32[128,128], index: 2, kind: input, shape index: {}]
  %s3 = inlined_call_operand.vmem [shape: f32[1,128], index: 3, kind: input, shape index: {}]
  %s4 = inlined_call_operand.vmem [shape: f32[32,128], index: 4, kind: output, shape index: {0}]
  %s5 = inlined_call_operand.vmem [shape: s32[32,1], index: 5, kind: output, shape index: {1}]
  %s6 = inlined_call_operand.hbm [shape: f32[1,1], index: 6, kind: output, shape index: {2}]
  %s7 = inlined_call_operand.hbm [shape: f32[1,1], index: 7, kind: output, shape index: {3}]
  %8 = xla_tuple %s4, %s5, %s6, %s7
  %s9 = sld [smem:[#allocation0]]
  $region58: #{_lambda_.10} parent=0
    _
  %s11 = ssub.s32 1, %s9
  %s12 = scalar_select 0, %s11, %s9
  $region1: #{_lambda_.10} parent=0
    #allocation3 [shape = 'u8[512]{0}', space=vmem, size = 0x400, scoped, tag = 'output window, operand 2, single buffered']
    #allocation4 [shape = 's32[1]{0}', space=sflag, size = 0x4, scoped, tag = 'scoped memory for _lambda_.10']
    #allocation5 [shape = 'u8[512]{0}', space=vmem, size = 0x400, scoped, tag = 'output window, operand 3, single buffered']
    #allocation6 [shape = 's32[1]{0}', space=sflag, size = 0x4, scoped, tag = 'scoped memory for _lambda_.10']
    %13 = vsyncpa [#allocation4], 0
    %14 = vsyncpa [#allocation6], 0
    // Predicated region
    $region2: #{_lambda_.10} parent=1 // pred_check
      _
    $region3: #{_lambda_.10} parent=1 // pred_check_branch
      %16 = sbr.rel (0) target = $region5
    $region4: #{_lambda_.10} parent=1 // pred_region
      _
    $region5: #{_lambda_.10} parent=1 // pred_fallthru
      _
    // Predicated region
    $region6: #{_lambda_.10} parent=1 // pred_check
      _
    $region7: #{_lambda_.10} parent=1 // pred_check_branch
      %18 = sbr.rel (0) target = $region9
    $region8: #{_lambda_.10} parent=1 // pred_region
      _
    $region9: #{_lambda_.10} parent=1 // pred_fallthru
      _
    // Predicated region
    $region10: #{_lambda_.10} parent=1 // pred_check
      _
    $region11: #{_lambda_.10} parent=1 // pred_check_branch
      %20 = sbr.rel (0) target = $region13
    $region12: #{_lambda_.10} parent=1 // pred_region
      _
    $region13: #{_lambda_.10} parent=1 // pred_fallthru
      _
    // Predicated region
    $region14: #{_lambda_.10} parent=1 // pred_check
      _
    $region15: #{_lambda_.10} parent=1 // pred_check_branch
      %22 = sbr.rel (0) target = $region17
    $region16: #{_lambda_.10} parent=1 // pred_region
      _
    $region17: #{_lambda_.10} parent=1 // pred_fallthru
      _
    %p23 = scmp.eq.s32.totalorder 0, 0
    // Predicated region
    $region18: #{_lambda_.10} parent=1 // pred_check
      %p24 = pneg %p23
    $region19: #{_lambda_.10} parent=1 // pred_check_branch
      %26 = sbr.rel (%p24) target = $region21
    $region20: #{_lambda_.10} parent=1 // pred_region
      %vm27 = vcmask 0
      %28 = vst.msk [vmem:[#allocation2] sm:$0x1] %vm27, 0.0
    $region21: #{_lambda_.10} parent=1 // pred_fallthru
      _
    %v29 = vld [vmem:[%s0] sm:$0xff]
    %v30 = vld [vmem:[%s0 + $0x8] sm:$0xff]
    %v31 = vld [vmem:[%s0 + $0x10] sm:$0xff]
    %v32 = vld [vmem:[%s0 + $0x18] sm:$0xff]
    %v33 = vld [vmem:[%s1] sm:$0xff]
    %v34 = vld [vmem:[%s1 + $0x8] sm:$0xff]
    %v35 = vld [vmem:[%s1 + $0x10] sm:$0xff]
    %v36 = vld [vmem:[%s1 + $0x18] sm:$0xff]
    %v37 = vld [vmem:[%s1 + $0x20] sm:$0xff]
    %v38 = vld [vmem:[%s1 + $0x28] sm:$0xff]
    %v39 = vld [vmem:[%s1 + $0x30] sm:$0xff]
    %v40 = vld [vmem:[%s1 + $0x38] sm:$0xff]
    %v41 = vld [vmem:[%s1 + $0x40] sm:$0xff]
    %v42 = vld [vmem:[%s1 + $0x48] sm:$0xff]
    %v43 = vld [vmem:[%s1 + $0x50] sm:$0xff]
    %v44 = vld [vmem:[%s1 + $0x58] sm:$0xff]
    %v45 = vld [vmem:[%s1 + $0x60] sm:$0xff]
    %v46 = vld [vmem:[%s1 + $0x68] sm:$0xff]
    %v47 = vld [vmem:[%s1 + $0x70] sm:$0xff]
    %v48 = vld [vmem:[%s1 + $0x78] sm:$0xff]
    %v49 = vld [vmem:[%s2] sm:$0xff]
    %v50 = vld [vmem:[%s2 + $0x8] sm:$0xff]
    %v51 = vld [vmem:[%s2 + $0x10] sm:$0xff]
    %v52 = vld [vmem:[%s2 + $0x18] sm:$0xff]
    %v53 = vld [vmem:[%s2 + $0x20] sm:$0xff]
    %v54 = vld [vmem:[%s2 + $0x28] sm:$0xff]
    %v55 = vld [vmem:[%s2 + $0x30] sm:$0xff]
    %v56 = vld [vmem:[%s2 + $0x38] sm:$0xff]
    %v57 = vld [vmem:[%s2 + $0x40] sm:$0xff]
    %v58 = vld [vmem:[%s2 + $0x48] sm:$0xff]
    %v59 = vld [vmem:[%s2 + $0x50] sm:$0xff]
    %v60 = vld [vmem:[%s2 + $0x58] sm:$0xff]
    %v61 = vld [vmem:[%s2 + $0x60] sm:$0xff]
    %v62 = vld [vmem:[%s2 + $0x68] sm:$0xff]
    %v63 = vld [vmem:[%s2 + $0x70] sm:$0xff]
    %v64 = vld [vmem:[%s2 + $0x78] sm:$0xff]
    %v65 = vld [vmem:[%s3] sm:$0x1]
    %66 = vmatprep.subr.mxu0 0.0
    %67 = vmatpush1.msra.mxu0 %v33
    %68 = vmatprep.subr.mxu0 0.0
    %69 = vmatpush1.msra.mxu0 %v34
    %70 = vmatprep.subr.mxu0 0.0
    %71 = vmatpush1.msra.mxu0 %v35
    %72 = vmatprep.subr.mxu0 0.0
    %73 = vmatpush1.msra.mxu0 %v36
    %74 = vmatprep.subr.mxu0 0.0
    %75 = vmatpush1.msra.mxu0 %v37
    %76 = vmatprep.subr.mxu0 0.0
    %77 = vmatpush1.msra.mxu0 %v38
    %78 = vmatprep.subr.mxu0 0.0
    %79 = vmatpush1.msra.mxu0 %v39
    %80 = vmatprep.subr.mxu0 0.0
    %81 = vmatpush1.msra.mxu0 %v40
    %82 = vmatprep.subr.mxu0 0.0
    %83 = vmatpush1.msra.mxu0 %v41
    %84 = vmatprep.subr.mxu0 0.0
    %85 = vmatpush1.msra.mxu0 %v42
    %86 = vmatprep.subr.mxu0 0.0
    %87 = vmatpush1.msra.mxu0 %v43
    %88 = vmatprep.subr.mxu0 0.0
    %89 = vmatpush1.msra.mxu0 %v44
    %90 = vmatprep.subr.mxu0 0.0
    %91 = vmatpush1.msra.mxu0 %v45
    %92 = vmatprep.subr.mxu0 0.0
    %93 = vmatpush1.msra.mxu0 %v46
    %94 = vmatprep.subr.mxu0 0.0
    %95 = vmatpush1.msra.mxu0 %v47
    %96 = vmatprep.subr.mxu0 0.0
    %97 = vmatpush1.msra.mxu0 %v48
    %98 = vmatprep.subr.mxu0 0.0
    %99 = vmatpush1.msra.mxu0 0.0
    %100 = vmatprep.subr.mxu0 0.0
    %101 = vmatpush1.msra.mxu0 0.0
    %102 = vmatprep.subr.mxu0 0.0
    %103 = vmatpush1.msra.mxu0 0.0
    %104 = vmatprep.subr.mxu0 0.0
    %105 = vmatpush1.msra.mxu0 0.0
    %106 = vmatprep.subr.mxu0 0.0
    %107 = vmatpush1.msra.mxu0 0.0
    %108 = vmatprep.subr.mxu0 0.0
    %109 = vmatpush1.msra.mxu0 0.0
    %110 = vmatprep.subr.mxu0 0.0
    %111 = vmatpush1.msra.mxu0 0.0
    %112 = vmatprep.subr.mxu0 0.0
    %113 = vmatpush1.msra.mxu0 0.0
    %114 = vmatprep.subr.mxu0 0.0
    %115 = vmatpush1.msra.mxu0 0.0
    %116 = vmatprep.subr.mxu0 0.0
    %117 = vmatpush1.msra.mxu0 0.0
    %118 = vmatprep.subr.mxu0 0.0
    %119 = vmatpush1.msra.mxu0 0.0
    %120 = vmatprep.subr.mxu0 0.0
    %121 = vmatpush1.msra.mxu0 0.0
    %122 = vmatprep.subr.mxu0 0.0
    %123 = vmatpush1.msra.mxu0 0.0
    %124 = vmatprep.subr.mxu0 0.0
    %125 = vmatpush1.msra.mxu0 0.0
    %126 = vmatprep.subr.mxu0 0.0
    %127 = vmatpush1.msra.mxu0 0.0
    %128 = vmatprep.subr.mxu0 0.0
    %129 = vmatpush1.msra.mxu0 0.0
    %130 = vmatprep.mubr.f32.mxu0 0.0
    %131 = vmatmul.mubr.f32.gmra.mrb[0].mxu0 %v29
    %v132 = vpop.f32.mrb[0].mxu0
    %v133 = vadd.f32 0.0, %v132
    %v134 = vpop.f32.mrb[0].mxu0
    %135 = vmatprep.mubr.f32.mxu0 0.0
    %136 = vmatmul.mubr.f32.gmra.mrb[0].mxu0 %v30
    %v137 = vpop.f32.mrb[0].mxu0
    %v138 = vadd.f32 0.0, %v137
    %v139 = vpop.f32.mrb[0].mxu0
    %140 = vmatprep.mubr.f32.mxu0 0.0
    %141 = vmatmul.mubr.f32.gmra.mrb[0].mxu0 %v31
    %v142 = vpop.f32.mrb[0].mxu0
    %v143 = vadd.f32 0.0, %v142
    %v144 = vpop.f32.mrb[0].mxu0
    %145 = vmatprep.mubr.f32.mxu0 0.0
    %146 = vmatmul.mubr.f32.gmra.mrb[0].mxu0 %v32
    %v147 = vpop.f32.mrb[0].mxu0
    %v148 = vadd.f32 0.0, %v147
    %v149 = vpop.f32.mrb[0].mxu0
    %150 = vdwg.mxu0
    %v151 = vmul.f32 %v133, 2.0
    %v152 = vmul.f32 %v138, 2.0
    %v153 = vmul.f32 %v143, 2.0
    %v154 = vmul.f32 %v148, 2.0
    %v156 = vlaneseq
    %v157 = vshrl.u32 %v156, 7
    %v158 = vsub.s32 0, %v157
    %v159 = vrot.slane %v65, %v158
    %v161 = vsub.f32 %v159, %v151
    %v162 = vsub.f32 %v159, %v152
    %v163 = vsub.f32 %v159, %v153
    %v164 = vsub.f32 %v159, %v154
    %v165 = vlaneseq
    %v166 = vand.u32 %v165, 127
    %167 = vmin.xlane.f32.xlu0 %v161
    %v168 = vpop.xlane.xlu0 %167
    %169 = vmin.xlane.f32.xlu0 %v162
    %v170 = vpop.xlane.xlu0 %169
    %171 = vmin.xlane.f32.xlu0 %v163
    %v172 = vpop.xlane.xlu0 %171
    %173 = vmin.xlane.f32.xlu0 %v164
    %v174 = vpop.xlane.xlu0 %173
    %vm175 = vcmp.le.f32.partialorder %v161, %v168
    %vm176 = vcmp.le.f32.partialorder %v162, %v170
    %vm177 = vcmp.le.f32.partialorder %v163, %v172
    %vm178 = vcmp.le.f32.partialorder %v164, %v174
    %v179 = vsel %vm175, %v166, 64
    %v180 = vsel %vm176, %v166, 64
    %v181 = vsel %vm177, %v166, 64
    %v182 = vsel %vm178, %v166, 64
    %v183 = vand.u32 %v179, 65535
    %v184 = vshra.s32 %v179, 16
    %v185 = vcvt.s32.f32 %v183
    %v186 = vcvt.s32.f32 %v184
    %187 = vmin.xlane.f32.xlu0 %v186
    %v188 = vpop.xlane.xlu0 %187
    %vm189 = vcmp.eq.f32.partialorder %v186, %v188
    %v190 = vsel %vm189, %v185, inf
    %191 = vmin.xlane.f32.xlu0 %v190
    %v192 = vpop.xlane.xlu0 %191
    %v193 = vcvt.f32.s32 %v192
    %v194 = vcvt.f32.s32 %v188
    %v195 = vshll.u32 %v194, 16
    %v196 = vadd.s32 %v195, %v193
    %v197 = vand.u32 %v180, 65535
    %v198 = vshra.s32 %v180, 16
    %v199 = vcvt.s32.f32 %v197
    %v200 = vcvt.s32.f32 %v198
    %201 = vmin.xlane.f32.xlu0 %v200
    %v202 = vpop.xlane.xlu0 %201
    %vm203 = vcmp.eq.f32.partialorder %v200, %v202
    %v204 = vsel %vm203, %v199, inf
    %205 = vmin.xlane.f32.xlu0 %v204
    %v206 = vpop.xlane.xlu0 %205
    %v207 = vcvt.f32.s32 %v206
    %v208 = vcvt.f32.s32 %v202
    %v209 = vshll.u32 %v208, 16
    %v210 = vadd.s32 %v209, %v207
    %v211 = vand.u32 %v181, 65535
    %v212 = vshra.s32 %v181, 16
    %v213 = vcvt.s32.f32 %v211
    %v214 = vcvt.s32.f32 %v212
    %215 = vmin.xlane.f32.xlu0 %v214
    %v216 = vpop.xlane.xlu0 %215
    %vm217 = vcmp.eq.f32.partialorder %v214, %v216
    %v218 = vsel %vm217, %v213, inf
    %219 = vmin.xlane.f32.xlu0 %v218
    %v220 = vpop.xlane.xlu0 %219
    %v221 = vcvt.f32.s32 %v220
    %v222 = vcvt.f32.s32 %v216
    %v223 = vshll.u32 %v222, 16
    %v224 = vadd.s32 %v223, %v221
    %v225 = vand.u32 %v182, 65535
    %v226 = vshra.s32 %v182, 16
    %v227 = vcvt.s32.f32 %v225
    %v228 = vcvt.s32.f32 %v226
    %229 = vmin.xlane.f32.xlu0 %v228
    %v230 = vpop.xlane.xlu0 %229
    %vm231 = vcmp.eq.f32.partialorder %v228, %v230
    %v232 = vsel %vm231, %v227, inf
    %233 = vmin.xlane.f32.xlu0 %v232
    %v234 = vpop.xlane.xlu0 %233
    %v235 = vcvt.f32.s32 %v234
    %v236 = vcvt.f32.s32 %v230
    %v237 = vshll.u32 %v236, 16
    %v238 = vadd.s32 %v237, %v235
    %vm239 = vcmp.eq.s32.totalorder %v166, %v196
    %vm240 = vcmp.eq.s32.totalorder %v166, %v210
    %vm241 = vcmp.eq.s32.totalorder %v166, %v224
    %vm242 = vcmp.eq.s32.totalorder %v166, %v238
    %v243 = vsel %vm239, 1, 0
    %v244 = vsel %vm240, 1, 0
    %v245 = vsel %vm241, 1, 0
    %v246 = vsel %vm242, 1, 0
    %v247 = vcvt.s32.f32 %v243
    %v248 = vcvt.s32.f32 %v244
    %v249 = vcvt.s32.f32 %v245
    %v250 = vcvt.s32.f32 %v246
    %251 = vmatprep.subr.mxu0 0.0
    %252 = vmatpush1.msra.mxu0 %v49
    %253 = vmatprep.subr.mxu0 0.0
    %254 = vmatpush1.msra.mxu0 %v50
    %255 = vmatprep.subr.mxu0 0.0
    %256 = vmatpush1.msra.mxu0 %v51
    %257 = vmatprep.subr.mxu0 0.0
    %258 = vmatpush1.msra.mxu0 %v52
    %259 = vmatprep.subr.mxu0 0.0
    %260 = vmatpush1.msra.mxu0 %v53
    %261 = vmatprep.subr.mxu0 0.0
    %262 = vmatpush1.msra.mxu0 %v54
    %263 = vmatprep.subr.mxu0 0.0
    %264 = vmatpush1.msra.mxu0 %v55
    %265 = vmatprep.subr.mxu0 0.0
    %266 = vmatpush1.msra.mxu0 %v56
    %267 = vmatprep.subr.mxu0 0.0
    %268 = vmatpush1.msra.mxu0 %v57
    %269 = vmatprep.subr.mxu0 0.0
    %270 = vmatpush1.msra.mxu0 %v58
    %271 = vmatprep.subr.mxu0 0.0
    %272 = vmatpush1.msra.mxu0 %v59
    %273 = vmatprep.subr.mxu0 0.0
    %274 = vmatpush1.msra.mxu0 %v60
    %275 = vmatprep.subr.mxu0 0.0
    %276 = vmatpush1.msra.mxu0 %v61
    %277 = vmatprep.subr.mxu0 0.0
    %278 = vmatpush1.msra.mxu0 %v62
    %279 = vmatprep.subr.mxu0 0.0
    %280 = vmatpush1.msra.mxu0 %v63
    %281 = vmatprep.subr.mxu0 0.0
    %282 = vmatpush1.msra.mxu0 %v64
    %283 = vmatprep.subr.mxu0 0.0
    %284 = vmatpush1.msra.mxu0 0.0
    %285 = vmatprep.subr.mxu0 0.0
    %286 = vmatpush1.msra.mxu0 0.0
    %287 = vmatprep.subr.mxu0 0.0
    %288 = vmatpush1.msra.mxu0 0.0
    %289 = vmatprep.subr.mxu0 0.0
    %290 = vmatpush1.msra.mxu0 0.0
    %291 = vmatprep.subr.mxu0 0.0
    %292 = vmatpush1.msra.mxu0 0.0
    %293 = vmatprep.subr.mxu0 0.0
    %294 = vmatpush1.msra.mxu0 0.0
    %295 = vmatprep.subr.mxu0 0.0
    %296 = vmatpush1.msra.mxu0 0.0
    %297 = vmatprep.subr.mxu0 0.0
    %298 = vmatpush1.msra.mxu0 0.0
    %299 = vmatprep.subr.mxu0 0.0
    %300 = vmatpush1.msra.mxu0 0.0
    %301 = vmatprep.subr.mxu0 0.0
    %302 = vmatpush1.msra.mxu0 0.0
    %303 = vmatprep.subr.mxu0 0.0
    %304 = vmatpush1.msra.mxu0 0.0
    %305 = vmatprep.subr.mxu0 0.0
    %306 = vmatpush1.msra.mxu0 0.0
    %307 = vmatprep.subr.mxu0 0.0
    %308 = vmatpush1.msra.mxu0 0.0
    %309 = vmatprep.subr.mxu0 0.0
    %310 = vmatpush1.msra.mxu0 0.0
    %311 = vmatprep.subr.mxu0 0.0
    %312 = vmatpush1.msra.mxu0 0.0
    %313 = vmatprep.subr.mxu0 0.0
    %314 = vmatpush1.msra.mxu0 0.0
    %315 = vmatprep.mubr.f32.mxu0 0.0
    %316 = vmatmul.mubr.f32.gmra.mrb[0].mxu0 %v247
    %v317 = vpop.f32.mrb[0].mxu0
    %v318 = vadd.f32 0.0, %v317
    %v319 = vpop.f32.mrb[0].mxu0
    %320 = vmatprep.mubr.f32.mxu0 0.0
    %321 = vmatmul.mubr.f32.gmra.mrb[0].mxu0 %v248
    %v322 = vpop.f32.mrb[0].mxu0
    %v323 = vadd.f32 0.0, %v322
    %v324 = vpop.f32.mrb[0].mxu0
    %325 = vmatprep.mubr.f32.mxu0 0.0
    %326 = vmatmul.mubr.f32.gmra.mrb[0].mxu0 %v249
    %v327 = vpop.f32.mrb[0].mxu0
    %v328 = vadd.f32 0.0, %v327
    %v329 = vpop.f32.mrb[0].mxu0
    %330 = vmatprep.mubr.f32.mxu0 0.0
    %331 = vmatmul.mubr.f32.gmra.mrb[0].mxu0 %v250
    %v332 = vpop.f32.mrb[0].mxu0
    %v333 = vadd.f32 0.0, %v332
    %v334 = vpop.f32.mrb[0].mxu0
    %335 = vdwg.mxu0
    %336 = vst [vmem:[%s4] sm:$0xff] %v318
    %337 = vst [vmem:[%s4 + $0x8] sm:$0xff] %v323
    %338 = vst [vmem:[%s4 + $0x10] sm:$0xff] %v328
    %339 = vst [vmem:[%s4 + $0x18] sm:$0xff] %v333
    %vm340 = vcmask 7168
    %341 = vst.msk [vmem:[%s5] sm:$0xff] %vm340, %v196
    %342 = vst.msk [vmem:[%s5 + $0x8] sm:$0xff] %vm340, %v210
    %343 = vst.msk [vmem:[%s5 + $0x10] sm:$0xff] %vm340, %v224
    %344 = vst.msk [vmem:[%s5 + $0x18] sm:$0xff] %vm340, %v238
    %v345 = vlaneseq
    %v346 = vshrl.u32 %v345, 7
    %v347 = vadd.s32 %v346, 8
    %v348 = vadd.s32 %v346, 16
    %v349 = vadd.s32 %v346, 24
    %s350 = smul.u32 0, 32
    %v351 = vstv %s350
    %v352 = vadd.s32 %v346, %v351
    %v353 = vadd.s32 %v347, %v351
    %v354 = vadd.s32 %v348, %v351
    %v355 = vadd.s32 %v349, %v351
    %vm356 = vcmp.lt.s32.totalorder %v352, 32
    %vm357 = vcmp.lt.s32.totalorder %v353, 32
    %vm358 = vcmp.lt.s32.totalorder %v354, 32
    %vm359 = vcmp.lt.s32.totalorder %v355, 32
    %v360 = vsub.f32 %v318, %v29
    %v361 = vsub.f32 %v323, %v30
    %v362 = vsub.f32 %v328, %v31
    %v363 = vsub.f32 %v333, %v32
    %v364 = vmul.f32 %v360, %v360
    %v365 = vmul.f32 %v361, %v361
    %v366 = vmul.f32 %v362, %v362
    %v367 = vmul.f32 %v363, %v363
    %368 = vadd.xlane.f32.xlu0 %v364
    %v369 = vpop.xlane.xlu0 %368
    %370 = vadd.xlane.f32.xlu0 %v365
    %v371 = vpop.xlane.xlu0 %370
    %372 = vadd.xlane.f32.xlu0 %v366
    %v373 = vpop.xlane.xlu0 %372
    %374 = vadd.xlane.f32.xlu0 %v367
    %v375 = vpop.xlane.xlu0 %374
    %v376 = vld [vmem:[#allocation2] sm:$0x1]
    %v377 = vsel %vm356, %v369, 0.0
    %v378 = vsel %vm357, %v371, 0.0
    %v379 = vsel %vm358, %v373, 0.0
    %v380 = vsel %vm359, %v375, 0.0
    %v381 = vsel %vm340, %v377, 0.0
    %v382 = vsel %vm340, %v378, 0.0
    %v383 = vadd.f32 %v381, %v382
    %v384 = vsel %vm340, %v379, 0.0
    %v385 = vadd.f32 %v383, %v384
    %v386 = vsel %vm340, %v380, 0.0
    %v387 = vadd.f32 %v385, %v386
    %388 = vadd.xlane.f32.xlu0 %v387
    %v389 = vpop.xlane.xlu0 %388
    %v390 = vrot.slane %v389, 4
    %v391 = vadd.f32 %v389, %v390
    %v392 = vrot.slane %v391, 2
    %v393 = vadd.f32 %v391, %v392
    %v394 = vrot.slane %v393, 1
    %v395 = vadd.f32 %v393, %v394
    %s396 = vtos %v395
    %v397 = vstv %s396
    %v398 = vadd.f32 %v376, %v397
    %vm399 = vcmask 0
    %400 = vst.msk [vmem:[#allocation2] sm:$0x1] %vm399, %v398
    // Predicated region
    $region22: #{_lambda_.10} parent=1 // pred_check
      %p401 = pneg %p23
    $region23: #{_lambda_.10} parent=1 // pred_check_branch
      %403 = sbr.rel (%p401) target = $region25
    $region24: #{_lambda_.10} parent=1 // pred_region
      %v404 = vld [vmem:[#allocation2] sm:$0x1]
      %v405 = vrcp.pop 256.0
      %v406 = vmul.f32 %v404, %v405
      %407 = vst.msk [vmem:[#allocation3] sm:$0x1] %vm399, %v406
      %408 = vst.msk [vmem:[#allocation5] sm:$0x1] %vm399, %v406
    $region25: #{_lambda_.10} parent=1 // pred_fallthru
      _
    // Predicated region
    $region26: #{_lambda_.10} parent=1 // pred_check
      _
    $region27: #{_lambda_.10} parent=1 // pred_check_branch
      %410 = sbr.rel (0) target = $region29
    $region28: #{_lambda_.10} parent=1 // pred_region
      _
    $region29: #{_lambda_.10} parent=1 // pred_fallthru
      _
    // Predicated region
    $region30: #{_lambda_.10} parent=1 // pred_check
      _
    $region31: #{_lambda_.10} parent=1 // pred_check_branch
      %412 = sbr.rel (0) target = $region33
    $region32: #{_lambda_.10} parent=1 // pred_region
      _
    $region33: #{_lambda_.10} parent=1 // pred_fallthru
      _
    // Predicated region
    $region34: #{_lambda_.10} parent=1 // pred_check
      _
    $region35: #{_lambda_.10} parent=1 // pred_check_branch
      %414 = sbr.rel (0) target = $region37
    $region36: #{_lambda_.10} parent=1 // pred_region
      %s416 = ssub.s32 16, 16
      %417 = vsyncadd [#allocation4], %s416
      %s419 = sshll.u32 [#allocation3], 4
      %s420 = int_to_ptr.vmem [resolvable:$true] %s419
      %422 = dma.vmem_to_hbm [thread:$0]  %s420, 16, %s6, [#allocation4]
    $region37: #{_lambda_.10} parent=1 // pred_fallthru
      _
    // Predicated region
    $region38: #{_lambda_.10} parent=1 // pred_check
      _
    $region39: #{_lambda_.10} parent=1 // pred_check_branch
      %424 = sbr.rel (0) target = $region41
    $region40: #{_lambda_.10} parent=1 // pred_region
      %s426 = ssub.s32 16, 16
      %427 = vsyncadd [#allocation6], %s426
      %s429 = sshll.u32 [#allocation5], 4
      %s430 = int_to_ptr.vmem [resolvable:$true] %s429
      %432 = dma.vmem_to_hbm [thread:$0]  %s430, 16, %s7, [#allocation6]
    $region41: #{_lambda_.10} parent=1 // pred_fallthru
      _
    // Predicated region
    $region42: #{_lambda_.10} parent=1 // pred_check
      _
    $region43: #{_lambda_.10} parent=1 // pred_check_branch
      %434 = sbr.rel (0) target = $region45
    $region44: #{_lambda_.10} parent=1 // pred_region
      _
    $region45: #{_lambda_.10} parent=1 // pred_fallthru
      _
    // Predicated region
    $region46: #{_lambda_.10} parent=1 // pred_check
      _
    $region47: #{_lambda_.10} parent=1 // pred_check_branch
      %436 = sbr.rel (0) target = $region49
    $region48: #{_lambda_.10} parent=1 // pred_region
      _
    $region49: #{_lambda_.10} parent=1 // pred_fallthru
      _
    // Predicated region
    $region50: #{_lambda_.10} parent=1 // pred_check
      _
    $region51: #{_lambda_.10} parent=1 // pred_check_branch
      %438 = sbr.rel (0) target = $region53
    $region52: #{_lambda_.10} parent=1 // pred_region
      %439 = dma.done [#allocation4], 16
    $region53: #{_lambda_.10} parent=1 // pred_fallthru
      _
    // Predicated region
    $region54: #{_lambda_.10} parent=1 // pred_check
      _
    $region55: #{_lambda_.10} parent=1 // pred_check_branch
      %441 = sbr.rel (0) target = $region57
    $region56: #{_lambda_.10} parent=1 // pred_region
      %442 = dma.done [#allocation6], 16
    $region57: #{_lambda_.10} parent=1 // pred_fallthru
      _
    %443 = vsyncpa [#allocation4], 1
    %444 = vsyncpa [#allocation6], 1

// kernel: _lambda_.11
$region0: #{_lambda_.11}
  #allocation0 [shape = 'u32[]', space=smem, size = 0x4, offset = 0x4, fixed_abs, tag = 'smem constant byte address 0x4 - core index']
  #allocation1 [shape = 'u32[144,128]{1,0:T(1,128)}', space=vmem, size = 0x12000, scoped, tag = 'internal scratch']
  %s0 = inlined_call_operand.vmem [shape: bf16[128,128], index: 0, kind: input, shape index: {}]
  %s1 = inlined_call_operand.vmem [shape: bf16[128,128], index: 1, kind: input, shape index: {}]
  %s2 = inlined_call_operand.vmem [shape: f32[1,128], index: 2, kind: input, shape index: {}]
  %s3 = inlined_call_operand.vmem [shape: bf16[128,128], index: 3, kind: output, shape index: {}]
  %s4 = sld [smem:[#allocation0]]
  $region22: #{_lambda_.11} parent=0
    _
  %s6 = ssub.s32 1, %s4
  %s7 = scalar_select 0, %s6, %s4
  // Predicated region
  $region2: #{_lambda_.11} parent=0 // pred_check
    _
  $region3: #{_lambda_.11} parent=0 // pred_check_branch
    %9 = sbr.rel (0) target = $region5
  $region4: #{_lambda_.11} parent=0 // pred_region
    _
  $region5: #{_lambda_.11} parent=0 // pred_fallthru
    _
  // Predicated region
  $region6: #{_lambda_.11} parent=0 // pred_check
    _
  $region7: #{_lambda_.11} parent=0 // pred_check_branch
    %11 = sbr.rel (0) target = $region9
  $region8: #{_lambda_.11} parent=0 // pred_region
    _
  $region9: #{_lambda_.11} parent=0 // pred_fallthru
    _
  // Predicated region
  $region10: #{_lambda_.11} parent=0 // pred_check
    _
  $region11: #{_lambda_.11} parent=0 // pred_check_branch
    %13 = sbr.rel (0) target = $region13
  $region12: #{_lambda_.11} parent=0 // pred_region
    _
  $region13: #{_lambda_.11} parent=0 // pred_fallthru
    _
  %v15 = vld [vmem:[%s0] sm:$0xf]
  %v16 = vld [vmem:[%s0 + $0x4] sm:$0xf]
  %v17 = vld [vmem:[%s0 + $0x8] sm:$0xf]
  %v18 = vld [vmem:[%s0 + $0xc] sm:$0xf]
  %v19 = vld [vmem:[%s0 + $0x10] sm:$0xf]
  %v20 = vld [vmem:[%s0 + $0x14] sm:$0xf]
  %v21 = vld [vmem:[%s0 + $0x18] sm:$0xf]
  %v22 = vld [vmem:[%s0 + $0x1c] sm:$0xf]
  %v23 = vld [vmem:[%s0 + $0x20] sm:$0xf]
  %v24 = vld [vmem:[%s0 + $0x24] sm:$0xf]
  %v25 = vld [vmem:[%s0 + $0x28] sm:$0xf]
  %v26 = vld [vmem:[%s0 + $0x2c] sm:$0xf]
  %v27 = vld [vmem:[%s0 + $0x30] sm:$0xf]
  %v28 = vld [vmem:[%s0 + $0x34] sm:$0xf]
  %v29 = vld [vmem:[%s0 + $0x38] sm:$0xf]
  %v30 = vld [vmem:[%s0 + $0x3c] sm:$0xf]
  %v31 = vld [vmem:[%s1] sm:$0xf]
  %v32 = vld [vmem:[%s1 + $0x4] sm:$0xf]
  %v33 = vld [vmem:[%s1 + $0x8] sm:$0xf]
  %v34 = vld [vmem:[%s1 + $0xc] sm:$0xf]
  %v35 = vld [vmem:[%s1 + $0x10] sm:$0xf]
  %v36 = vld [vmem:[%s1 + $0x14] sm:$0xf]
  %v37 = vld [vmem:[%s1 + $0x18] sm:$0xf]
  %v38 = vld [vmem:[%s1 + $0x1c] sm:$0xf]
  %v39 = vld [vmem:[%s1 + $0x20] sm:$0xf]
  %v40 = vld [vmem:[%s1 + $0x24] sm:$0xf]
  %v41 = vld [vmem:[%s1 + $0x28] sm:$0xf]
  %v42 = vld [vmem:[%s1 + $0x2c] sm:$0xf]
  %v43 = vld [vmem:[%s1 + $0x30] sm:$0xf]
  %v44 = vld [vmem:[%s1 + $0x34] sm:$0xf]
  %v45 = vld [vmem:[%s1 + $0x38] sm:$0xf]
  %v46 = vld [vmem:[%s1 + $0x3c] sm:$0xf]
  %v47 = vld [vmem:[%s2] sm:$0x1]
  %v49 = vlaneseq
  %v50 = vshrl.u32 %v49, 7
  %v51 = vsub.s32 0, %v50
  %v52 = vrot.slane %v47, %v51
  %v70 = vunpack.c.l.b16 %v15
  %v71 = vunpack.c.l.b16 %v16
  %v72 = vunpack.c.l.b16 %v17
  %v73 = vunpack.c.l.b16 %v18
  %v74 = vunpack.c.l.b16 %v19
  %v75 = vunpack.c.l.b16 %v20
  %v76 = vunpack.c.l.b16 %v21
  %v77 = vunpack.c.l.b16 %v22
  %v78 = vunpack.c.l.b16 %v23
  %v79 = vunpack.c.l.b16 %v24
  %v80 = vunpack.c.l.b16 %v25
  %v81 = vunpack.c.l.b16 %v26
  %v82 = vunpack.c.l.b16 %v27
  %v83 = vunpack.c.l.b16 %v28
  %v84 = vunpack.c.l.b16 %v29
  %v85 = vunpack.c.l.b16 %v30
  %v86 = vpack.c.b16 %v71, %v70
  %v87 = vpack.c.b16 %v73, %v72
  %v88 = vpack.c.b16 %v75, %v74
  %v89 = vpack.c.b16 %v77, %v76
  %v90 = vpack.c.b16 %v79, %v78
  %v91 = vpack.c.b16 %v81, %v80
  %v92 = vpack.c.b16 %v83, %v82
  %v93 = vpack.c.b16 %v85, %v84
  %v118 = vunpack.c.l.b16 %v31
  %v119 = vunpack.c.l.b16 %v32
  %v120 = vunpack.c.l.b16 %v33
  %v121 = vunpack.c.l.b16 %v34
  %v122 = vunpack.c.l.b16 %v35
  %v123 = vunpack.c.l.b16 %v36
  %v124 = vunpack.c.l.b16 %v37
  %v125 = vunpack.c.l.b16 %v38
  %v126 = vunpack.c.l.b16 %v39
  %v127 = vunpack.c.l.b16 %v40
  %v128 = vunpack.c.l.b16 %v41
  %v129 = vunpack.c.l.b16 %v42
  %v130 = vunpack.c.l.b16 %v43
  %v131 = vunpack.c.l.b16 %v44
  %v132 = vunpack.c.l.b16 %v45
  %v133 = vunpack.c.l.b16 %v46
  %v134 = vpack.c.b16 %v119, %v118
  %v135 = vpack.c.b16 %v121, %v120
  %v136 = vpack.c.b16 %v123, %v122
  %v137 = vpack.c.b16 %v125, %v124
  %v138 = vpack.c.b16 %v127, %v126
  %v139 = vpack.c.b16 %v129, %v128
  %v140 = vpack.c.b16 %v131, %v130
  %v141 = vpack.c.b16 %v133, %v132
  %150 = vmatprep.subr.bf16.mxu0 0
  %151 = vmatpush1.bf16.msra.mxu0 %v134
  %152 = vmatprep.subr.bf16.mxu0 0
  %153 = vmatpush1.bf16.msra.mxu0 %v135
  %154 = vmatprep.subr.bf16.mxu0 0
  %155 = vmatpush1.bf16.msra.mxu0 %v136
  %156 = vmatprep.subr.bf16.mxu0 0
  %157 = vmatpush1.bf16.msra.mxu0 %v137
  %158 = vmatprep.subr.bf16.mxu0 0
  %159 = vmatpush1.bf16.msra.mxu0 %v138
  %160 = vmatprep.subr.bf16.mxu0 0
  %161 = vmatpush1.bf16.msra.mxu0 %v139
  %162 = vmatprep.subr.bf16.mxu0 0
  %163 = vmatpush1.bf16.msra.mxu0 %v140
  %164 = vmatprep.subr.bf16.mxu0 0
  %165 = vmatpush1.bf16.msra.mxu0 %v141
  %166 = vmatprep.subr.bf16.mxu0 0
  %167 = vmatpush1.bf16.msra.mxu0 0
  %168 = vmatprep.subr.bf16.mxu0 0
  %169 = vmatpush1.bf16.msra.mxu0 0
  %170 = vmatprep.subr.bf16.mxu0 0
  %171 = vmatpush1.bf16.msra.mxu0 0
  %172 = vmatprep.subr.bf16.mxu0 0
  %173 = vmatpush1.bf16.msra.mxu0 0
  %174 = vmatprep.subr.bf16.mxu0 0
  %175 = vmatpush1.bf16.msra.mxu0 0
  %176 = vmatprep.subr.bf16.mxu0 0
  %177 = vmatpush1.bf16.msra.mxu0 0
  %178 = vmatprep.subr.bf16.mxu0 0
  %179 = vmatpush1.bf16.msra.mxu0 0
  %180 = vmatprep.subr.bf16.mxu0 0
  %181 = vmatpush1.bf16.msra.mxu0 0
  %182 = vmatprep.mubr.bf16.mxu0 0
  %183 = vmatmul.mubr.bf16.gmra.mrb[0].mxu0 %v86
  %v184 = vpop.f32.mrb[0].mxu0
  %v185 = vadd.f32 %v52, %v184
  %v186 = vpop.f32.mrb[0].mxu0
  %v187 = vpop.f32.mrb[0].mxu0
  %v188 = vadd.f32 %v52, %v187
  %v189 = vpop.f32.mrb[0].mxu0
  %190 = vmatprep.mubr.bf16.mxu0 0
  %191 = vmatmul.mubr.bf16.gmra.mrb[0].mxu0 %v87
  %v192 = vpop.f32.mrb[0].mxu0
  %v193 = vadd.f32 %v52, %v192
  %v194 = vpop.f32.mrb[0].mxu0
  %v195 = vpop.f32.mrb[0].mxu0
  %v196 = vadd.f32 %v52, %v195
  %v197 = vpop.f32.mrb[0].mxu0
  %198 = vmatprep.mubr.bf16.mxu0 0
  %199 = vmatmul.mubr.bf16.gmra.mrb[0].mxu0 %v88
  %v200 = vpop.f32.mrb[0].mxu0
  %v201 = vadd.f32 %v52, %v200
  %v202 = vpop.f32.mrb[0].mxu0
  %v203 = vpop.f32.mrb[0].mxu0
  %v204 = vadd.f32 %v52, %v203
  %v205 = vpop.f32.mrb[0].mxu0
  %206 = vmatprep.mubr.bf16.mxu0 0
  %207 = vmatmul.mubr.bf16.gmra.mrb[0].mxu0 %v89
  %v208 = vpop.f32.mrb[0].mxu0
  %v209 = vadd.f32 %v52, %v208
  %v210 = vpop.f32.mrb[0].mxu0
  %v211 = vpop.f32.mrb[0].mxu0
  %v212 = vadd.f32 %v52, %v211
  %v213 = vpop.f32.mrb[0].mxu0
  %214 = vmatprep.mubr.bf16.mxu0 0
  %215 = vmatmul.mubr.bf16.gmra.mrb[0].mxu0 %v90
  %v216 = vpop.f32.mrb[0].mxu0
  %v217 = vadd.f32 %v52, %v216
  %v218 = vpop.f32.mrb[0].mxu0
  %v219 = vpop.f32.mrb[0].mxu0
  %v220 = vadd.f32 %v52, %v219
  %v221 = vpop.f32.mrb[0].mxu0
  %222 = vmatprep.mubr.bf16.mxu0 0
  %223 = vmatmul.mubr.bf16.gmra.mrb[0].mxu0 %v91
  %v224 = vpop.f32.mrb[0].mxu0
  %v225 = vadd.f32 %v52, %v224
  %v226 = vpop.f32.mrb[0].mxu0
  %v227 = vpop.f32.mrb[0].mxu0
  %v228 = vadd.f32 %v52, %v227
  %v229 = vpop.f32.mrb[0].mxu0
  %230 = vmatprep.mubr.bf16.mxu0 0
  %231 = vmatmul.mubr.bf16.gmra.mrb[0].mxu0 %v92
  %v232 = vpop.f32.mrb[0].mxu0
  %v233 = vadd.f32 %v52, %v232
  %v234 = vpop.f32.mrb[0].mxu0
  %v235 = vpop.f32.mrb[0].mxu0
  %v236 = vadd.f32 %v52, %v235
  %v237 = vpop.f32.mrb[0].mxu0
  %238 = vmatprep.mubr.bf16.mxu0 0
  %239 = vmatmul.mubr.bf16.gmra.mrb[0].mxu0 %v93
  %v240 = vpop.f32.mrb[0].mxu0
  %v241 = vadd.f32 %v52, %v240
  %v242 = vpop.f32.mrb[0].mxu0
  %v243 = vpop.f32.mrb[0].mxu0
  %v244 = vadd.f32 %v52, %v243
  %v245 = vpop.f32.mrb[0].mxu0
  %246 = vdwg.mxu0
  %v247 = vpack.c.bf16 %v188, %v185
  %v248 = vpack.c.bf16 %v196, %v193
  %v249 = vpack.c.bf16 %v204, %v201
  %v250 = vpack.c.bf16 %v212, %v209
  %v251 = vpack.c.bf16 %v220, %v217
  %v252 = vpack.c.bf16 %v228, %v225
  %v253 = vpack.c.bf16 %v236, %v233
  %v254 = vpack.c.bf16 %v244, %v241
  %v263 = vunpack.c.l.b16 %v247
  %v264 = vunpack.c.h.b16 %v247
  %v265 = vunpack.c.l.b16 %v248
  %v266 = vunpack.c.h.b16 %v248
  %v267 = vunpack.c.l.b16 %v249
  %v268 = vunpack.c.h.b16 %v249
  %v269 = vunpack.c.l.b16 %v250
  %v270 = vunpack.c.h.b16 %v250
  %v271 = vunpack.c.l.b16 %v251
  %v272 = vunpack.c.h.b16 %v251
  %v273 = vunpack.c.l.b16 %v252
  %v274 = vunpack.c.h.b16 %v252
  %v275 = vunpack.c.l.b16 %v253
  %v276 = vunpack.c.h.b16 %v253
  %v277 = vunpack.c.l.b16 %v254
  %v278 = vunpack.c.h.b16 %v254
  %v279 = vpack.c.b16 %v263, %v263
  %v280 = vpack.c.b16 %v264, %v264
  %v281 = vpack.c.b16 %v265, %v265
  %v282 = vpack.c.b16 %v266, %v266
  %v283 = vpack.c.b16 %v267, %v267
  %v284 = vpack.c.b16 %v268, %v268
  %v285 = vpack.c.b16 %v269, %v269
  %v286 = vpack.c.b16 %v270, %v270
  %v287 = vpack.c.b16 %v271, %v271
  %v288 = vpack.c.b16 %v272, %v272
  %v289 = vpack.c.b16 %v273, %v273
  %v290 = vpack.c.b16 %v274, %v274
  %v291 = vpack.c.b16 %v275, %v275
  %v292 = vpack.c.b16 %v276, %v276
  %v293 = vpack.c.b16 %v277, %v277
  %v294 = vpack.c.b16 %v278, %v278
  %311 = vst [vmem:[%s3] sm:$0xf] %v279
  %312 = vst [vmem:[%s3 + $0x4] sm:$0xf] %v280
  %313 = vst [vmem:[%s3 + $0x8] sm:$0xf] %v281
  %314 = vst [vmem:[%s3 + $0xc] sm:$0xf] %v282
  %315 = vst [vmem:[%s3 + $0x10] sm:$0xf] %v283
  %316 = vst [vmem:[%s3 + $0x14] sm:$0xf] %v284
  %317 = vst [vmem:[%s3 + $0x18] sm:$0xf] %v285
  %318 = vst [vmem:[%s3 + $0x1c] sm:$0xf] %v286
  %319 = vst [vmem:[%s3 + $0x20] sm:$0xf] %v287
  %320 = vst [vmem:[%s3 + $0x24] sm:$0xf] %v288
  %321 = vst [vmem:[%s3 + $0x28] sm:$0xf] %v289
  %322 = vst [vmem:[%s3 + $0x2c] sm:$0xf] %v290
  %323 = vst [vmem:[%s3 + $0x30] sm:$0xf] %v291
  %324 = vst [vmem:[%s3 + $0x34] sm:$0xf] %v292
  %325 = vst [vmem:[%s3 + $0x38] sm:$0xf] %v293
  %326 = vst [vmem:[%s3 + $0x3c] sm:$0xf] %v294
  // Predicated region
  $region14: #{_lambda_.11} parent=0 // pred_check
    _
  $region15: #{_lambda_.11} parent=0 // pred_check_branch
    %328 = sbr.rel (0) target = $region17
  $region16: #{_lambda_.11} parent=0 // pred_region
    _
  $region17: #{_lambda_.11} parent=0 // pred_fallthru
    _
  // Predicated region
  $region18: #{_lambda_.11} parent=0 // pred_check
    _
  $region19: #{_lambda_.11} parent=0 // pred_check_branch
    %330 = sbr.rel (0) target = $region21
  $region20: #{_lambda_.11} parent=0 // pred_region
    _
  $region21: #{_lambda_.11} parent=0 // pred_fallthru
    _

// kernel: _lambda_.12
$region0: #{_lambda_.12}
  #allocation0 [shape = 'u32[]', space=smem, size = 0x4, offset = 0x4, fixed_abs, tag = 'smem constant byte address 0x4 - core index']
  #allocation1 [shape = 'u32[144,128]{1,0:T(1,128)}', space=vmem, size = 0x12000, scoped, tag = 'internal scratch']
  %s0 = inlined_call_operand.vmem [shape: bf16[128,384], index: 0, kind: input, shape index: {}]
  %s1 = inlined_call_operand.vmem [shape: bf16[384,128], index: 1, kind: input, shape index: {}]
  %s2 = inlined_call_operand.vmem [shape: f32[1,128], index: 2, kind: input, shape index: {}]
  %s3 = inlined_call_operand.vmem [shape: bf16[128,128], index: 3, kind: output, shape index: {}]
  %s4 = sld [smem:[#allocation0]]
  $region22: #{_lambda_.12} parent=0
    _
  %s6 = ssub.s32 1, %s4
  %s7 = scalar_select 0, %s6, %s4
  // Predicated region
  $region2: #{_lambda_.12} parent=0 // pred_check
    _
  $region3: #{_lambda_.12} parent=0 // pred_check_branch
    %9 = sbr.rel (0) target = $region5
  $region4: #{_lambda_.12} parent=0 // pred_region
    _
  $region5: #{_lambda_.12} parent=0 // pred_fallthru
    _
  // Predicated region
  $region6: #{_lambda_.12} parent=0 // pred_check
    _
  $region7: #{_lambda_.12} parent=0 // pred_check_branch
    %11 = sbr.rel (0) target = $region9
  $region8: #{_lambda_.12} parent=0 // pred_region
    _
  $region9: #{_lambda_.12} parent=0 // pred_fallthru
    _
  // Predicated region
  $region10: #{_lambda_.12} parent=0 // pred_check
    _
  $region11: #{_lambda_.12} parent=0 // pred_check_branch
    %13 = sbr.rel (0) target = $region13
  $region12: #{_lambda_.12} parent=0 // pred_region
    _
  $region13: #{_lambda_.12} parent=0 // pred_fallthru
    _
  %v15 = vld [vmem:[%s0] sm:$0xff]
  %v16 = vld [vmem:[%s0 + $0x8] sm:$0xf]
  %v17 = vld [vmem:[%s0 + $0xc] sm:$0xff]
  %v18 = vld [vmem:[%s0 + $0x14] sm:$0xf]
  %v19 = vld [vmem:[%s0 + $0x18] sm:$0xff]
  %v20 = vld [vmem:[%s0 + $0x20] sm:$0xf]
  %v21 = vld [vmem:[%s0 + $0x24] sm:$0xff]
  %v22 = vld [vmem:[%s0 + $0x2c] sm:$0xf]
  %v23 = vld [vmem:[%s0 + $0x30] sm:$0xff]
  %v24 = vld [vmem:[%s0 + $0x38] sm:$0xf]
  %v25 = vld [vmem:[%s0 + $0x3c] sm:$0xff]
  %v26 = vld [vmem:[%s0 + $0x44] sm:$0xf]
  %v27 = vld [vmem:[%s0 + $0x48] sm:$0xff]
  %v28 = vld [vmem:[%s0 + $0x50] sm:$0xf]
  %v29 = vld [vmem:[%s0 + $0x54] sm:$0xff]
  %v30 = vld [vmem:[%s0 + $0x5c] sm:$0xf]
  %v31 = vld [vmem:[%s0 + $0x60] sm:$0xff]
  %v32 = vld [vmem:[%s0 + $0x68] sm:$0xf]
  %v33 = vld [vmem:[%s0 + $0x6c] sm:$0xff]
  %v34 = vld [vmem:[%s0 + $0x74] sm:$0xf]
  %v35 = vld [vmem:[%s0 + $0x78] sm:$0xff]
  %v36 = vld [vmem:[%s0 + $0x80] sm:$0xf]
  %v37 = vld [vmem:[%s0 + $0x84] sm:$0xff]
  %v38 = vld [vmem:[%s0 + $0x8c] sm:$0xf]
  %v39 = vld [vmem:[%s0 + $0x90] sm:$0xff]
  %v40 = vld [vmem:[%s0 + $0x98] sm:$0xf]
  %v41 = vld [vmem:[%s0 + $0x9c] sm:$0xff]
  %v42 = vld [vmem:[%s0 + $0xa4] sm:$0xf]
  %v43 = vld [vmem:[%s0 + $0xa8] sm:$0xff]
  %v44 = vld [vmem:[%s0 + $0xb0] sm:$0xf]
  %v45 = vld [vmem:[%s0 + $0xb4] sm:$0xff]
  %v46 = vld [vmem:[%s0 + $0xbc] sm:$0xf]
  %v47 = vld [vmem:[%s1] sm:$0xf]
  %v48 = vld [vmem:[%s1 + $0x4] sm:$0xf]
  %v49 = vld [vmem:[%s1 + $0x8] sm:$0xf]
  %v50 = vld [vmem:[%s1 + $0xc] sm:$0xf]
  %v51 = vld [vmem:[%s1 + $0x10] sm:$0xf]
  %v52 = vld [vmem:[%s1 + $0x14] sm:$0xf]
  %v53 = vld [vmem:[%s1 + $0x18] sm:$0xf]
  %v54 = vld [vmem:[%s1 + $0x1c] sm:$0xf]
  %v55 = vld [vmem:[%s1 + $0x20] sm:$0xf]
  %v56 = vld [vmem:[%s1 + $0x24] sm:$0xf]
  %v57 = vld [vmem:[%s1 + $0x28] sm:$0xf]
  %v58 = vld [vmem:[%s1 + $0x2c] sm:$0xf]
  %v59 = vld [vmem:[%s1 + $0x30] sm:$0xf]
  %v60 = vld [vmem:[%s1 + $0x34] sm:$0xf]
  %v61 = vld [vmem:[%s1 + $0x38] sm:$0xf]
  %v62 = vld [vmem:[%s1 + $0x3c] sm:$0xf]
  %v63 = vld [vmem:[%s1 + $0x40] sm:$0xf]
  %v64 = vld [vmem:[%s1 + $0x44] sm:$0xf]
  %v65 = vld [vmem:[%s1 + $0x48] sm:$0xf]
  %v66 = vld [vmem:[%s1 + $0x4c] sm:$0xf]
  %v67 = vld [vmem:[%s1 + $0x50] sm:$0xf]
  %v68 = vld [vmem:[%s1 + $0x54] sm:$0xf]
  %v69 = vld [vmem:[%s1 + $0x58] sm:$0xf]
  %v70 = vld [vmem:[%s1 + $0x5c] sm:$0xf]
  %v71 = vld [vmem:[%s1 + $0x60] sm:$0xf]
  %v72 = vld [vmem:[%s1 + $0x64] sm:$0xf]
  %v73 = vld [vmem:[%s1 + $0x68] sm:$0xf]
  %v74 = vld [vmem:[%s1 + $0x6c] sm:$0xf]
  %v75 = vld [vmem:[%s1 + $0x70] sm:$0xf]
  %v76 = vld [vmem:[%s1 + $0x74] sm:$0xf]
  %v77 = vld [vmem:[%s1 + $0x78] sm:$0xf]
  %v78 = vld [vmem:[%s1 + $0x7c] sm:$0xf]
  %v79 = vld [vmem:[%s1 + $0x80] sm:$0xf]
  %v80 = vld [vmem:[%s1 + $0x84] sm:$0xf]
  %v81 = vld [vmem:[%s1 + $0x88] sm:$0xf]
  %v82 = vld [vmem:[%s1 + $0x8c] sm:$0xf]
  %v83 = vld [vmem:[%s1 + $0x90] sm:$0xf]
  %v84 = vld [vmem:[%s1 + $0x94] sm:$0xf]
  %v85 = vld [vmem:[%s1 + $0x98] sm:$0xf]
  %v86 = vld [vmem:[%s1 + $0x9c] sm:$0xf]
  %v87 = vld [vmem:[%s1 + $0xa0] sm:$0xf]
  %v88 = vld [vmem:[%s1 + $0xa4] sm:$0xf]
  %v89 = vld [vmem:[%s1 + $0xa8] sm:$0xf]
  %v90 = vld [vmem:[%s1 + $0xac] sm:$0xf]
  %v91 = vld [vmem:[%s1 + $0xb0] sm:$0xf]
  %v92 = vld [vmem:[%s1 + $0xb4] sm:$0xf]
  %v93 = vld [vmem:[%s1 + $0xb8] sm:$0xf]
  %v94 = vld [vmem:[%s1 + $0xbc] sm:$0xf]
  %v95 = vld [vmem:[%s2] sm:$0x1]
  %v97 = vlaneseq
  %v98 = vshrl.u32 %v97, 7
  %v99 = vsub.s32 0, %v98
  %v100 = vrot.slane %v95, %v99
  %v134 = vunpack.c.l.b16 %v15
  %v135 = vunpack.c.h.b16 %v15
  %v136 = vunpack.c.l.b16 %v16
  %v137 = vunpack.c.l.b16 %v17
  %v138 = vunpack.c.h.b16 %v17
  %v139 = vunpack.c.l.b16 %v18
  %v140 = vunpack.c.l.b16 %v19
  %v141 = vunpack.c.h.b16 %v19
  %v142 = vunpack.c.l.b16 %v20
  %v143 = vunpack.c.l.b16 %v21
  %v144 = vunpack.c.h.b16 %v21
  %v145 = vunpack.c.l.b16 %v22
  %v146 = vunpack.c.l.b16 %v23
  %v147 = vunpack.c.h.b16 %v23
  %v148 = vunpack.c.l.b16 %v24
  %v149 = vunpack.c.l.b16 %v25
  %v150 = vunpack.c.h.b16 %v25
  %v151 = vunpack.c.l.b16 %v26
  %v152 = vunpack.c.l.b16 %v27
  %v153 = vunpack.c.h.b16 %v27
  %v154 = vunpack.c.l.b16 %v28
  %v155 = vunpack.c.l.b16 %v29
  %v156 = vunpack.c.h.b16 %v29
  %v157 = vunpack.c.l.b16 %v30
  %v158 = vunpack.c.l.b16 %v31
  %v159 = vunpack.c.h.b16 %v31
  %v160 = vunpack.c.l.b16 %v32
  %v161 = vunpack.c.l.b16 %v33
  %v162 = vunpack.c.h.b16 %v33
  %v163 = vunpack.c.l.b16 %v34
  %v164 = vunpack.c.l.b16 %v35
  %v165 = vunpack.c.h.b16 %v35
  %v166 = vunpack.c.l.b16 %v36
  %v167 = vunpack.c.l.b16 %v37
  %v168 = vunpack.c.h.b16 %v37
  %v169 = vunpack.c.l.b16 %v38
  %v170 = vunpack.c.l.b16 %v39
  %v171 = vunpack.c.h.b16 %v39
  %v172 = vunpack.c.l.b16 %v40
  %v173 = vunpack.c.l.b16 %v41
  %v174 = vunpack.c.h.b16 %v41
  %v175 = vunpack.c.l.b16 %v42
  %v176 = vunpack.c.l.b16 %v43
  %v177 = vunpack.c.h.b16 %v43
  %v178 = vunpack.c.l.b16 %v44
  %v179 = vunpack.c.l.b16 %v45
  %v180 = vunpack.c.h.b16 %v45
  %v181 = vunpack.c.l.b16 %v46
  %v182 = vpack.c.b16 %v137, %v134
  %v183 = vpack.c.b16 %v138, %v135
  %v184 = vpack.c.b16 %v139, %v136
  %v185 = vpack.c.b16 %v143, %v140
  %v186 = vpack.c.b16 %v144, %v141
  %v187 = vpack.c.b16 %v145, %v142
  %v188 = vpack.c.b16 %v149, %v146
  %v189 = vpack.c.b16 %v150, %v147
  %v190 = vpack.c.b16 %v151, %v148
  %v191 = vpack.c.b16 %v155, %v152
  %v192 = vpack.c.b16 %v156, %v153
  %v193 = vpack.c.b16 %v157, %v154
  %v194 = vpack.c.b16 %v161, %v158
  %v195 = vpack.c.b16 %v162, %v159
  %v196 = vpack.c.b16 %v163, %v160
  %v197 = vpack.c.b16 %v167, %v164
  %v198 = vpack.c.b16 %v168, %v165
  %v199 = vpack.c.b16 %v169, %v166
  %v200 = vpack.c.b16 %v173, %v170
  %v201 = vpack.c.b16 %v174, %v171
  %v202 = vpack.c.b16 %v175, %v172
  %v203 = vpack.c.b16 %v179, %v176
  %v204 = vpack.c.b16 %v180, %v177
  %v205 = vpack.c.b16 %v181, %v178
  %v278 = vunpack.c.l.b16 %v47
  %v279 = vunpack.c.l.b16 %v48
  %v280 = vunpack.c.l.b16 %v49
  %v281 = vunpack.c.l.b16 %v50
  %v282 = vunpack.c.l.b16 %v51
  %v283 = vunpack.c.l.b16 %v52
  %v284 = vunpack.c.l.b16 %v53
  %v285 = vunpack.c.l.b16 %v54
  %v286 = vunpack.c.l.b16 %v55
  %v287 = vunpack.c.l.b16 %v56
  %v288 = vunpack.c.l.b16 %v57
  %v289 = vunpack.c.l.b16 %v58
  %v290 = vunpack.c.l.b16 %v59
  %v291 = vunpack.c.l.b16 %v60
  %v292 = vunpack.c.l.b16 %v61
  %v293 = vunpack.c.l.b16 %v62
  %v294 = vunpack.c.l.b16 %v63
  %v295 = vunpack.c.l.b16 %v64
  %v296 = vunpack.c.l.b16 %v65
  %v297 = vunpack.c.l.b16 %v66
  %v298 = vunpack.c.l.b16 %v67
  %v299 = vunpack.c.l.b16 %v68
  %v300 = vunpack.c.l.b16 %v69
  %v301 = vunpack.c.l.b16 %v70
  %v302 = vunpack.c.l.b16 %v71
  %v303 = vunpack.c.l.b16 %v72
  %v304 = vunpack.c.l.b16 %v73
  %v305 = vunpack.c.l.b16 %v74
  %v306 = vunpack.c.l.b16 %v75
  %v307 = vunpack.c.l.b16 %v76
  %v308 = vunpack.c.l.b16 %v77
  %v309 = vunpack.c.l.b16 %v78
  %v310 = vunpack.c.l.b16 %v79
  %v311 = vunpack.c.l.b16 %v80
  %v312 = vunpack.c.l.b16 %v81
  %v313 = vunpack.c.l.b16 %v82
  %v314 = vunpack.c.l.b16 %v83
  %v315 = vunpack.c.l.b16 %v84
  %v316 = vunpack.c.l.b16 %v85
  %v317 = vunpack.c.l.b16 %v86
  %v318 = vunpack.c.l.b16 %v87
  %v319 = vunpack.c.l.b16 %v88
  %v320 = vunpack.c.l.b16 %v89
  %v321 = vunpack.c.l.b16 %v90
  %v322 = vunpack.c.l.b16 %v91
  %v323 = vunpack.c.l.b16 %v92
  %v324 = vunpack.c.l.b16 %v93
  %v325 = vunpack.c.l.b16 %v94
  %v326 = vpack.c.b16 %v279, %v278
  %v327 = vpack.c.b16 %v281, %v280
  %v328 = vpack.c.b16 %v283, %v282
  %v329 = vpack.c.b16 %v285, %v284
  %v330 = vpack.c.b16 %v287, %v286
  %v331 = vpack.c.b16 %v289, %v288
  %v332 = vpack.c.b16 %v291, %v290
  %v333 = vpack.c.b16 %v293, %v292
  %v334 = vpack.c.b16 %v295, %v294
  %v335 = vpack.c.b16 %v297, %v296
  %v336 = vpack.c.b16 %v299, %v298
  %v337 = vpack.c.b16 %v301, %v300
  %v338 = vpack.c.b16 %v303, %v302
  %v339 = vpack.c.b16 %v305, %v304
  %v340 = vpack.c.b16 %v307, %v306
  %v341 = vpack.c.b16 %v309, %v308
  %v342 = vpack.c.b16 %v311, %v310
  %v343 = vpack.c.b16 %v313, %v312
  %v344 = vpack.c.b16 %v315, %v314
  %v345 = vpack.c.b16 %v317, %v316
  %v346 = vpack.c.b16 %v319, %v318
  %v347 = vpack.c.b16 %v321, %v320
  %v348 = vpack.c.b16 %v323, %v322
  %v349 = vpack.c.b16 %v325, %v324
  %374 = vmatprep.subr.bf16.mxu0 0
  %375 = vmatpush1.bf16.msra.mxu0 %v326
  %376 = vmatprep.subr.bf16.mxu0 0
  %377 = vmatpush1.bf16.msra.mxu0 %v327
  %378 = vmatprep.subr.bf16.mxu0 0
  %379 = vmatpush1.bf16.msra.mxu0 %v328
  %380 = vmatprep.subr.bf16.mxu0 0
  %381 = vmatpush1.bf16.msra.mxu0 %v329
  %382 = vmatprep.subr.bf16.mxu0 0
  %383 = vmatpush1.bf16.msra.mxu0 %v330
  %384 = vmatprep.subr.bf16.mxu0 0
  %385 = vmatpush1.bf16.msra.mxu0 %v331
  %386 = vmatprep.subr.bf16.mxu0 0
  %387 = vmatpush1.bf16.msra.mxu0 %v332
  %388 = vmatprep.subr.bf16.mxu0 0
  %389 = vmatpush1.bf16.msra.mxu0 %v333
  %390 = vmatprep.subr.bf16.mxu0 0
  %391 = vmatpush1.bf16.msra.mxu0 %v334
  %392 = vmatprep.subr.bf16.mxu0 0
  %393 = vmatpush1.bf16.msra.mxu0 %v335
  %394 = vmatprep.subr.bf16.mxu0 0
  %395 = vmatpush1.bf16.msra.mxu0 %v336
  %396 = vmatprep.subr.bf16.mxu0 0
  %397 = vmatpush1.bf16.msra.mxu0 %v337
  %398 = vmatprep.subr.bf16.mxu0 0
  %399 = vmatpush1.bf16.msra.mxu0 %v338
  %400 = vmatprep.subr.bf16.mxu0 0
  %401 = vmatpush1.bf16.msra.mxu0 %v339
  %402 = vmatprep.subr.bf16.mxu0 0
  %403 = vmatpush1.bf16.msra.mxu0 %v340
  %404 = vmatprep.subr.bf16.mxu0 0
  %405 = vmatpush1.bf16.msra.mxu0 %v341
  %406 = vmatprep.mubr.bf16.mxu0 %v183
  %407 = vmatmul.mubr.bf16.gmra.mrb[0].mxu0 %v182
  %v408 = vpop.f32.mrb[0].mxu0
  %v409 = vadd.f32 %v100, %v408
  %v410 = vpop.f32.mrb[0].mxu0
  %v411 = vpop.f32.mrb[0].mxu0
  %v412 = vadd.f32 %v100, %v411
  %v413 = vpop.f32.mrb[0].mxu0
  %414 = vmatprep.mubr.bf16.mxu0 %v186
  %415 = vmatmul.mubr.bf16.gmra.mrb[0].mxu0 %v185
  %v416 = vpop.f32.mrb[0].mxu0
  %v417 = vadd.f32 %v100, %v416
  %v418 = vpop.f32.mrb[0].mxu0
  %v419 = vpop.f32.mrb[0].mxu0
  %v420 = vadd.f32 %v100, %v419
  %v421 = vpop.f32.mrb[0].mxu0
  %422 = vmatprep.mubr.bf16.mxu0 %v189
  %423 = vmatmul.mubr.bf16.gmra.mrb[0].mxu0 %v188
  %v424 = vpop.f32.mrb[0].mxu0
  %v425 = vadd.f32 %v100, %v424
  %v426 = vpop.f32.mrb[0].mxu0
  %v427 = vpop.f32.mrb[0].mxu0
  %v428 = vadd.f32 %v100, %v427
  %v429 = vpop.f32.mrb[0].mxu0
  %430 = vmatprep.mubr.bf16.mxu0 %v192
  %431 = vmatmul.mubr.bf16.gmra.mrb[0].mxu0 %v191
  %v432 = vpop.f32.mrb[0].mxu0
  %v433 = vadd.f32 %v100, %v432
  %v434 = vpop.f32.mrb[0].mxu0
  %v435 = vpop.f32.mrb[0].mxu0
  %v436 = vadd.f32 %v100, %v435
  %v437 = vpop.f32.mrb[0].mxu0
  %438 = vmatprep.mubr.bf16.mxu0 %v195
  %439 = vmatmul.mubr.bf16.gmra.mrb[0].mxu0 %v194
  %v440 = vpop.f32.mrb[0].mxu0
  %v441 = vadd.f32 %v100, %v440
  %v442 = vpop.f32.mrb[0].mxu0
  %v443 = vpop.f32.mrb[0].mxu0
  %v444 = vadd.f32 %v100, %v443
  %v445 = vpop.f32.mrb[0].mxu0
  %446 = vmatprep.mubr.bf16.mxu0 %v198
  %447 = vmatmul.mubr.bf16.gmra.mrb[0].mxu0 %v197
  %v448 = vpop.f32.mrb[0].mxu0
  %v449 = vadd.f32 %v100, %v448
  %v450 = vpop.f32.mrb[0].mxu0
  %v451 = vpop.f32.mrb[0].mxu0
  %v452 = vadd.f32 %v100, %v451
  %v453 = vpop.f32.mrb[0].mxu0
  %454 = vmatprep.mubr.bf16.mxu0 %v201
  %455 = vmatmul.mubr.bf16.gmra.mrb[0].mxu0 %v200
  %v456 = vpop.f32.mrb[0].mxu0
  %v457 = vadd.f32 %v100, %v456
  %v458 = vpop.f32.mrb[0].mxu0
  %v459 = vpop.f32.mrb[0].mxu0
  %v460 = vadd.f32 %v100, %v459
  %v461 = vpop.f32.mrb[0].mxu0
  %462 = vmatprep.mubr.bf16.mxu0 %v204
  %463 = vmatmul.mubr.bf16.gmra.mrb[0].mxu0 %v203
  %v464 = vpop.f32.mrb[0].mxu0
  %v465 = vadd.f32 %v100, %v464
  %v466 = vpop.f32.mrb[0].mxu0
  %v467 = vpop.f32.mrb[0].mxu0
  %v468 = vadd.f32 %v100, %v467
  %v469 = vpop.f32.mrb[0].mxu0
  %470 = vdwg.mxu0
  %471 = vmatprep.subr.bf16.mxu0 0
  %472 = vmatpush1.bf16.msra.mxu0 %v342
  %473 = vmatprep.subr.bf16.mxu0 0
  %474 = vmatpush1.bf16.msra.mxu0 %v343
  %475 = vmatprep.subr.bf16.mxu0 0
  %476 = vmatpush1.bf16.msra.mxu0 %v344
  %477 = vmatprep.subr.bf16.mxu0 0
  %478 = vmatpush1.bf16.msra.mxu0 %v345
  %479 = vmatprep.subr.bf16.mxu0 0
  %480 = vmatpush1.bf16.msra.mxu0 %v346
  %481 = vmatprep.subr.bf16.mxu0 0
  %482 = vmatpush1.bf16.msra.mxu0 %v347
  %483 = vmatprep.subr.bf16.mxu0 0
  %484 = vmatpush1.bf16.msra.mxu0 %v348
  %485 = vmatprep.subr.bf16.mxu0 0
  %486 = vmatpush1.bf16.msra.mxu0 %v349
  %487 = vmatprep.subr.bf16.mxu0 0
  %488 = vmatpush1.bf16.msra.mxu0 0
  %489 = vmatprep.subr.bf16.mxu0 0
  %490 = vmatpush1.bf16.msra.mxu0 0
  %491 = vmatprep.subr.bf16.mxu0 0
  %492 = vmatpush1.bf16.msra.mxu0 0
  %493 = vmatprep.subr.bf16.mxu0 0
  %494 = vmatpush1.bf16.msra.mxu0 0
  %495 = vmatprep.subr.bf16.mxu0 0
  %496 = vmatpush1.bf16.msra.mxu0 0
  %497 = vmatprep.subr.bf16.mxu0 0
  %498 = vmatpush1.bf16.msra.mxu0 0
  %499 = vmatprep.subr.bf16.mxu0 0
  %500 = vmatpush1.bf16.msra.mxu0 0
  %501 = vmatprep.subr.bf16.mxu0 0
  %502 = vmatpush1.bf16.msra.mxu0 0
  %503 = vmatprep.mubr.bf16.mxu0 0
  %504 = vmatmul.mubr.bf16.gmra.mrb[0].mxu0 %v184
  %v505 = vpop.f32.mrb[0].mxu0
  %v506 = vadd.f32 %v409, %v505
  %v507 = vpop.f32.mrb[0].mxu0
  %v508 = vpop.f32.mrb[0].mxu0
  %v509 = vadd.f32 %v412, %v508
  %v510 = vpop.f32.mrb[0].mxu0
  %511 = vmatprep.mubr.bf16.mxu0 0
  %512 = vmatmul.mubr.bf16.gmra.mrb[0].mxu0 %v187
  %v513 = vpop.f32.mrb[0].mxu0
  %v514 = vadd.f32 %v417, %v513
  %v515 = vpop.f32.mrb[0].mxu0
  %v516 = vpop.f32.mrb[0].mxu0
  %v517 = vadd.f32 %v420, %v516
  %v518 = vpop.f32.mrb[0].mxu0
  %519 = vmatprep.mubr.bf16.mxu0 0
  %520 = vmatmul.mubr.bf16.gmra.mrb[0].mxu0 %v190
  %v521 = vpop.f32.mrb[0].mxu0
  %v522 = vadd.f32 %v425, %v521
  %v523 = vpop.f32.mrb[0].mxu0
  %v524 = vpop.f32.mrb[0].mxu0
  %v525 = vadd.f32 %v428, %v524
  %v526 = vpop.f32.mrb[0].mxu0
  %527 = vmatprep.mubr.bf16.mxu0 0
  %528 = vmatmul.mubr.bf16.gmra.mrb[0].mxu0 %v193
  %v529 = vpop.f32.mrb[0].mxu0
  %v530 = vadd.f32 %v433, %v529
  %v531 = vpop.f32.mrb[0].mxu0
  %v532 = vpop.f32.mrb[0].mxu0
  %v533 = vadd.f32 %v436, %v532
  %v534 = vpop.f32.mrb[0].mxu0
  %535 = vmatprep.mubr.bf16.mxu0 0
  %536 = vmatmul.mubr.bf16.gmra.mrb[0].mxu0 %v196
  %v537 = vpop.f32.mrb[0].mxu0
  %v538 = vadd.f32 %v441, %v537
  %v539 = vpop.f32.mrb[0].mxu0
  %v540 = vpop.f32.mrb[0].mxu0
  %v541 = vadd.f32 %v444, %v540
  %v542 = vpop.f32.mrb[0].mxu0
  %543 = vmatprep.mubr.bf16.mxu0 0
  %544 = vmatmul.mubr.bf16.gmra.mrb[0].mxu0 %v199
  %v545 = vpop.f32.mrb[0].mxu0
  %v546 = vadd.f32 %v449, %v545
  %v547 = vpop.f32.mrb[0].mxu0
  %v548 = vpop.f32.mrb[0].mxu0
  %v549 = vadd.f32 %v452, %v548
  %v550 = vpop.f32.mrb[0].mxu0
  %551 = vmatprep.mubr.bf16.mxu0 0
  %552 = vmatmul.mubr.bf16.gmra.mrb[0].mxu0 %v202
  %v553 = vpop.f32.mrb[0].mxu0
  %v554 = vadd.f32 %v457, %v553
  %v555 = vpop.f32.mrb[0].mxu0
  %v556 = vpop.f32.mrb[0].mxu0
  %v557 = vadd.f32 %v460, %v556
  %v558 = vpop.f32.mrb[0].mxu0
  %559 = vmatprep.mubr.bf16.mxu0 0
  %560 = vmatmul.mubr.bf16.gmra.mrb[0].mxu0 %v205
  %v561 = vpop.f32.mrb[0].mxu0
  %v562 = vadd.f32 %v465, %v561
  %v563 = vpop.f32.mrb[0].mxu0
  %v564 = vpop.f32.mrb[0].mxu0
  %v565 = vadd.f32 %v468, %v564
  %v566 = vpop.f32.mrb[0].mxu0
  %567 = vdwg.mxu0
  %vm568 = vcmp.gt.f32.partialorder %v506, 0.0
  %vm569 = vcmp.gt.f32.partialorder %v509, 0.0
  %vm570 = vcmp.gt.f32.partialorder %v514, 0.0
  %vm571 = vcmp.gt.f32.partialorder %v517, 0.0
  %vm572 = vcmp.gt.f32.partialorder %v522, 0.0
  %vm573 = vcmp.gt.f32.partialorder %v525, 0.0
  %vm574 = vcmp.gt.f32.partialorder %v530, 0.0
  %vm575 = vcmp.gt.f32.partialorder %v533, 0.0
  %vm576 = vcmp.gt.f32.partialorder %v538, 0.0
  %vm577 = vcmp.gt.f32.partialorder %v541, 0.0
  %vm578 = vcmp.gt.f32.partialorder %v546, 0.0
  %vm579 = vcmp.gt.f32.partialorder %v549, 0.0
  %vm580 = vcmp.gt.f32.partialorder %v554, 0.0
  %vm581 = vcmp.gt.f32.partialorder %v557, 0.0
  %vm582 = vcmp.gt.f32.partialorder %v562, 0.0
  %vm583 = vcmp.gt.f32.partialorder %v565, 0.0
  %v584 = vmul.f32 %v506, 0.2
  %v585 = vmul.f32 %v509, 0.2
  %v586 = vmul.f32 %v514, 0.2
  %v587 = vmul.f32 %v517, 0.2
  %v588 = vmul.f32 %v522, 0.2
  %v589 = vmul.f32 %v525, 0.2
  %v590 = vmul.f32 %v530, 0.2
  %v591 = vmul.f32 %v533, 0.2
  %v592 = vmul.f32 %v538, 0.2
  %v593 = vmul.f32 %v541, 0.2
  %v594 = vmul.f32 %v546, 0.2
  %v595 = vmul.f32 %v549, 0.2
  %v596 = vmul.f32 %v554, 0.2
  %v597 = vmul.f32 %v557, 0.2
  %v598 = vmul.f32 %v562, 0.2
  %v599 = vmul.f32 %v565, 0.2
  %v600 = vsel %vm568, %v506, %v584
  %v601 = vsel %vm569, %v509, %v585
  %v602 = vsel %vm570, %v514, %v586
  %v603 = vsel %vm571, %v517, %v587
  %v604 = vsel %vm572, %v522, %v588
  %v605 = vsel %vm573, %v525, %v589
  %v606 = vsel %vm574, %v530, %v590
  %v607 = vsel %vm575, %v533, %v591
  %v608 = vsel %vm576, %v538, %v592
  %v609 = vsel %vm577, %v541, %v593
  %v610 = vsel %vm578, %v546, %v594
  %v611 = vsel %vm579, %v549, %v595
  %v612 = vsel %vm580, %v554, %v596
  %v613 = vsel %vm581, %v557, %v597
  %v614 = vsel %vm582, %v562, %v598
  %v615 = vsel %vm583, %v565, %v599
  %v616 = vpack.c.bf16 %v601, %v600
  %v617 = vpack.c.bf16 %v603, %v602
  %v618 = vpack.c.bf16 %v605, %v604
  %v619 = vpack.c.bf16 %v607, %v606
  %v620 = vpack.c.bf16 %v609, %v608
  %v621 = vpack.c.bf16 %v611, %v610
  %v622 = vpack.c.bf16 %v613, %v612
  %v623 = vpack.c.bf16 %v615, %v614
  %v632 = vunpack.c.l.b16 %v616
  %v633 = vunpack.c.h.b16 %v616
  %v634 = vunpack.c.l.b16 %v617
  %v635 = vunpack.c.h.b16 %v617
  %v636 = vunpack.c.l.b16 %v618
  %v637 = vunpack.c.h.b16 %v618
  %v638 = vunpack.c.l.b16 %v619
  %v639 = vunpack.c.h.b16 %v619
  %v640 = vunpack.c.l.b16 %v620
  %v641 = vunpack.c.h.b16 %v620
  %v642 = vunpack.c.l.b16 %v621
  %v643 = vunpack.c.h.b16 %v621
  %v644 = vunpack.c.l.b16 %v622
  %v645 = vunpack.c.h.b16 %v622
  %v646 = vunpack.c.l.b16 %v623
  %v647 = vunpack.c.h.b16 %v623
  %v648 = vpack.c.b16 %v632, %v632
  %v649 = vpack.c.b16 %v633, %v633
  %v650 = vpack.c.b16 %v634, %v634
  %v651 = vpack.c.b16 %v635, %v635
  %v652 = vpack.c.b16 %v636, %v636
  %v653 = vpack.c.b16 %v637, %v637
  %v654 = vpack.c.b16 %v638, %v638
  %v655 = vpack.c.b16 %v639, %v639
  %v656 = vpack.c.b16 %v640, %v640
  %v657 = vpack.c.b16 %v641, %v641
  %v658 = vpack.c.b16 %v642, %v642
  %v659 = vpack.c.b16 %v643, %v643
  %v660 = vpack.c.b16 %v644, %v644
  %v661 = vpack.c.b16 %v645, %v645
  %v662 = vpack.c.b16 %v646, %v646
  %v663 = vpack.c.b16 %v647, %v647
  %680 = vst [vmem:[%s3] sm:$0xf] %v648
  %681 = vst [vmem:[%s3 + $0x4] sm:$0xf] %v649
  %682 = vst [vmem:[%s3 + $0x8] sm:$0xf] %v650
  %683 = vst [vmem:[%s3 + $0xc] sm:$0xf] %v651
  %684 = vst [vmem:[%s3 + $0x10] sm:$0xf] %v652
  %685 = vst [vmem:[%s3 + $0x14] sm:$0xf] %v653
  %686 = vst [vmem:[%s3 + $0x18] sm:$0xf] %v654
  %687 = vst [vmem:[%s3 + $0x1c] sm:$0xf] %v655
  %688 = vst [vmem:[%s3 + $0x20] sm:$0xf] %v656
  %689 = vst [vmem:[%s3 + $0x24] sm:$0xf] %v657
  %690 = vst [vmem:[%s3 + $0x28] sm:$0xf] %v658
  %691 = vst [vmem:[%s3 + $0x2c] sm:$0xf] %v659
  %692 = vst [vmem:[%s3 + $0x30] sm:$0xf] %v660
  %693 = vst [vmem:[%s3 + $0x34] sm:$0xf] %v661
  %694 = vst [vmem:[%s3 + $0x38] sm:$0xf] %v662
  %695 = vst [vmem:[%s3 + $0x3c] sm:$0xf] %v663
  // Predicated region
  $region14: #{_lambda_.12} parent=0 // pred_check
    _
  $region15: #{_lambda_.12} parent=0 // pred_check_branch
    %697 = sbr.rel (0) target = $region17
  $region16: #{_lambda_.12} parent=0 // pred_region
    _
  $region17: #{_lambda_.12} parent=0 // pred_fallthru
    _
  // Predicated region
  $region18: #{_lambda_.12} parent=0 // pred_check
    _
  $region19: #{_lambda_.12} parent=0 // pred_check_branch
    %699 = sbr.rel (0) target = $region21
  $region20: #{_lambda_.12} parent=0 // pred_region
    _
  $region21: #{_lambda_.12} parent=0 // pred_fallthru
    _

// kernel: _lambda_.13
$region0: #{_lambda_.13}
  #allocation0 [shape = 'u32[]', space=smem, size = 0x4, offset = 0x4, fixed_abs, tag = 'smem constant byte address 0x4 - core index']
  #allocation1 [shape = 'u32[144,128]{1,0:T(1,128)}', space=vmem, size = 0x12000, scoped, tag = 'internal scratch']
  %s0 = inlined_call_operand.vmem [shape: bf16[128,256], index: 0, kind: input, shape index: {}]
  %s1 = inlined_call_operand.vmem [shape: bf16[256,128], index: 1, kind: input, shape index: {}]
  %s2 = inlined_call_operand.vmem [shape: f32[1,128], index: 2, kind: input, shape index: {}]
  %s3 = inlined_call_operand.vmem [shape: f32[128,128], index: 3, kind: output, shape index: {}]
  %s4 = sld [smem:[#allocation0]]
  $region22: #{_lambda_.13} parent=0
    _
  %s6 = ssub.s32 1, %s4
  %s7 = scalar_select 0, %s6, %s4
  // Predicated region
  $region2: #{_lambda_.13} parent=0 // pred_check
    _
  $region3: #{_lambda_.13} parent=0 // pred_check_branch
    %9 = sbr.rel (0) target = $region5
  $region4: #{_lambda_.13} parent=0 // pred_region
    _
  $region5: #{_lambda_.13} parent=0 // pred_fallthru
    _
  // Predicated region
  $region6: #{_lambda_.13} parent=0 // pred_check
    _
  $region7: #{_lambda_.13} parent=0 // pred_check_branch
    %11 = sbr.rel (0) target = $region9
  $region8: #{_lambda_.13} parent=0 // pred_region
    _
  $region9: #{_lambda_.13} parent=0 // pred_fallthru
    _
  // Predicated region
  $region10: #{_lambda_.13} parent=0 // pred_check
    _
  $region11: #{_lambda_.13} parent=0 // pred_check_branch
    %13 = sbr.rel (0) target = $region13
  $region12: #{_lambda_.13} parent=0 // pred_region
    _
  $region13: #{_lambda_.13} parent=0 // pred_fallthru
    _
  %v15 = vld [vmem:[%s0] sm:$0xff]
  %v16 = vld [vmem:[%s0 + $0x8] sm:$0xff]
  %v17 = vld [vmem:[%s0 + $0x10] sm:$0xff]
  %v18 = vld [vmem:[%s0 + $0x18] sm:$0xff]
  %v19 = vld [vmem:[%s0 + $0x20] sm:$0xff]
  %v20 = vld [vmem:[%s0 + $0x28] sm:$0xff]
  %v21 = vld [vmem:[%s0 + $0x30] sm:$0xff]
  %v22 = vld [vmem:[%s0 + $0x38] sm:$0xff]
  %v23 = vld [vmem:[%s0 + $0x40] sm:$0xff]
  %v24 = vld [vmem:[%s0 + $0x48] sm:$0xff]
  %v25 = vld [vmem:[%s0 + $0x50] sm:$0xff]
  %v26 = vld [vmem:[%s0 + $0x58] sm:$0xff]
  %v27 = vld [vmem:[%s0 + $0x60] sm:$0xff]
  %v28 = vld [vmem:[%s0 + $0x68] sm:$0xff]
  %v29 = vld [vmem:[%s0 + $0x70] sm:$0xff]
  %v30 = vld [vmem:[%s0 + $0x78] sm:$0xff]
  %v31 = vld [vmem:[%s1] sm:$0xf]
  %v32 = vld [vmem:[%s1 + $0x4] sm:$0xf]
  %v33 = vld [vmem:[%s1 + $0x8] sm:$0xf]
  %v34 = vld [vmem:[%s1 + $0xc] sm:$0xf]
  %v35 = vld [vmem:[%s1 + $0x10] sm:$0xf]
  %v36 = vld [vmem:[%s1 + $0x14] sm:$0xf]
  %v37 = vld [vmem:[%s1 + $0x18] sm:$0xf]
  %v38 = vld [vmem:[%s1 + $0x1c] sm:$0xf]
  %v39 = vld [vmem:[%s1 + $0x20] sm:$0xf]
  %v40 = vld [vmem:[%s1 + $0x24] sm:$0xf]
  %v41 = vld [vmem:[%s1 + $0x28] sm:$0xf]
  %v42 = vld [vmem:[%s1 + $0x2c] sm:$0xf]
  %v43 = vld [vmem:[%s1 + $0x30] sm:$0xf]
  %v44 = vld [vmem:[%s1 + $0x34] sm:$0xf]
  %v45 = vld [vmem:[%s1 + $0x38] sm:$0xf]
  %v46 = vld [vmem:[%s1 + $0x3c] sm:$0xf]
  %v47 = vld [vmem:[%s1 + $0x40] sm:$0xf]
  %v48 = vld [vmem:[%s1 + $0x44] sm:$0xf]
  %v49 = vld [vmem:[%s1 + $0x48] sm:$0xf]
  %v50 = vld [vmem:[%s1 + $0x4c] sm:$0xf]
  %v51 = vld [vmem:[%s1 + $0x50] sm:$0xf]
  %v52 = vld [vmem:[%s1 + $0x54] sm:$0xf]
  %v53 = vld [vmem:[%s1 + $0x58] sm:$0xf]
  %v54 = vld [vmem:[%s1 + $0x5c] sm:$0xf]
  %v55 = vld [vmem:[%s1 + $0x60] sm:$0xf]
  %v56 = vld [vmem:[%s1 + $0x64] sm:$0xf]
  %v57 = vld [vmem:[%s1 + $0x68] sm:$0xf]
  %v58 = vld [vmem:[%s1 + $0x6c] sm:$0xf]
  %v59 = vld [vmem:[%s1 + $0x70] sm:$0xf]
  %v60 = vld [vmem:[%s1 + $0x74] sm:$0xf]
  %v61 = vld [vmem:[%s1 + $0x78] sm:$0xf]
  %v62 = vld [vmem:[%s1 + $0x7c] sm:$0xf]
  %v63 = vld [vmem:[%s2] sm:$0x1]
  %v65 = vlaneseq
  %v66 = vshrl.u32 %v65, 7
  %v67 = vsub.s32 0, %v66
  %v68 = vrot.slane %v63, %v67
  %v86 = vunpack.c.l.b16 %v15
  %v87 = vunpack.c.h.b16 %v15
  %v88 = vunpack.c.l.b16 %v16
  %v89 = vunpack.c.h.b16 %v16
  %v90 = vunpack.c.l.b16 %v17
  %v91 = vunpack.c.h.b16 %v17
  %v92 = vunpack.c.l.b16 %v18
  %v93 = vunpack.c.h.b16 %v18
  %v94 = vunpack.c.l.b16 %v19
  %v95 = vunpack.c.h.b16 %v19
  %v96 = vunpack.c.l.b16 %v20
  %v97 = vunpack.c.h.b16 %v20
  %v98 = vunpack.c.l.b16 %v21
  %v99 = vunpack.c.h.b16 %v21
  %v100 = vunpack.c.l.b16 %v22
  %v101 = vunpack.c.h.b16 %v22
  %v102 = vunpack.c.l.b16 %v23
  %v103 = vunpack.c.h.b16 %v23
  %v104 = vunpack.c.l.b16 %v24
  %v105 = vunpack.c.h.b16 %v24
  %v106 = vunpack.c.l.b16 %v25
  %v107 = vunpack.c.h.b16 %v25
  %v108 = vunpack.c.l.b16 %v26
  %v109 = vunpack.c.h.b16 %v26
  %v110 = vunpack.c.l.b16 %v27
  %v111 = vunpack.c.h.b16 %v27
  %v112 = vunpack.c.l.b16 %v28
  %v113 = vunpack.c.h.b16 %v28
  %v114 = vunpack.c.l.b16 %v29
  %v115 = vunpack.c.h.b16 %v29
  %v116 = vunpack.c.l.b16 %v30
  %v117 = vunpack.c.h.b16 %v30
  %v118 = vpack.c.b16 %v88, %v86
  %v119 = vpack.c.b16 %v89, %v87
  %v120 = vpack.c.b16 %v92, %v90
  %v121 = vpack.c.b16 %v93, %v91
  %v122 = vpack.c.b16 %v96, %v94
  %v123 = vpack.c.b16 %v97, %v95
  %v124 = vpack.c.b16 %v100, %v98
  %v125 = vpack.c.b16 %v101, %v99
  %v126 = vpack.c.b16 %v104, %v102
  %v127 = vpack.c.b16 %v105, %v103
  %v128 = vpack.c.b16 %v108, %v106
  %v129 = vpack.c.b16 %v109, %v107
  %v130 = vpack.c.b16 %v112, %v110
  %v131 = vpack.c.b16 %v113, %v111
  %v132 = vpack.c.b16 %v116, %v114
  %v133 = vpack.c.b16 %v117, %v115
  %v182 = vunpack.c.l.b16 %v31
  %v183 = vunpack.c.l.b16 %v32
  %v184 = vunpack.c.l.b16 %v33
  %v185 = vunpack.c.l.b16 %v34
  %v186 = vunpack.c.l.b16 %v35
  %v187 = vunpack.c.l.b16 %v36
  %v188 = vunpack.c.l.b16 %v37
  %v189 = vunpack.c.l.b16 %v38
  %v190 = vunpack.c.l.b16 %v39
  %v191 = vunpack.c.l.b16 %v40
  %v192 = vunpack.c.l.b16 %v41
  %v193 = vunpack.c.l.b16 %v42
  %v194 = vunpack.c.l.b16 %v43
  %v195 = vunpack.c.l.b16 %v44
  %v196 = vunpack.c.l.b16 %v45
  %v197 = vunpack.c.l.b16 %v46
  %v198 = vunpack.c.l.b16 %v47
  %v199 = vunpack.c.l.b16 %v48
  %v200 = vunpack.c.l.b16 %v49
  %v201 = vunpack.c.l.b16 %v50
  %v202 = vunpack.c.l.b16 %v51
  %v203 = vunpack.c.l.b16 %v52
  %v204 = vunpack.c.l.b16 %v53
  %v205 = vunpack.c.l.b16 %v54
  %v206 = vunpack.c.l.b16 %v55
  %v207 = vunpack.c.l.b16 %v56
  %v208 = vunpack.c.l.b16 %v57
  %v209 = vunpack.c.l.b16 %v58
  %v210 = vunpack.c.l.b16 %v59
  %v211 = vunpack.c.l.b16 %v60
  %v212 = vunpack.c.l.b16 %v61
  %v213 = vunpack.c.l.b16 %v62
  %v214 = vpack.c.b16 %v183, %v182
  %v215 = vpack.c.b16 %v185, %v184
  %v216 = vpack.c.b16 %v187, %v186
  %v217 = vpack.c.b16 %v189, %v188
  %v218 = vpack.c.b16 %v191, %v190
  %v219 = vpack.c.b16 %v193, %v192
  %v220 = vpack.c.b16 %v195, %v194
  %v221 = vpack.c.b16 %v197, %v196
  %v222 = vpack.c.b16 %v199, %v198
  %v223 = vpack.c.b16 %v201, %v200
  %v224 = vpack.c.b16 %v203, %v202
  %v225 = vpack.c.b16 %v205, %v204
  %v226 = vpack.c.b16 %v207, %v206
  %v227 = vpack.c.b16 %v209, %v208
  %v228 = vpack.c.b16 %v211, %v210
  %v229 = vpack.c.b16 %v213, %v212
  %246 = vmatprep.subr.bf16.mxu0 0
  %247 = vmatpush1.bf16.msra.mxu0 %v214
  %248 = vmatprep.subr.bf16.mxu0 0
  %249 = vmatpush1.bf16.msra.mxu0 %v215
  %250 = vmatprep.subr.bf16.mxu0 0
  %251 = vmatpush1.bf16.msra.mxu0 %v216
  %252 = vmatprep.subr.bf16.mxu0 0
  %253 = vmatpush1.bf16.msra.mxu0 %v217
  %254 = vmatprep.subr.bf16.mxu0 0
  %255 = vmatpush1.bf16.msra.mxu0 %v218
  %256 = vmatprep.subr.bf16.mxu0 0
  %257 = vmatpush1.bf16.msra.mxu0 %v219
  %258 = vmatprep.subr.bf16.mxu0 0
  %259 = vmatpush1.bf16.msra.mxu0 %v220
  %260 = vmatprep.subr.bf16.mxu0 0
  %261 = vmatpush1.bf16.msra.mxu0 %v221
  %262 = vmatprep.subr.bf16.mxu0 0
  %263 = vmatpush1.bf16.msra.mxu0 %v222
  %264 = vmatprep.subr.bf16.mxu0 0
  %265 = vmatpush1.bf16.msra.mxu0 %v223
  %266 = vmatprep.subr.bf16.mxu0 0
  %267 = vmatpush1.bf16.msra.mxu0 %v224
  %268 = vmatprep.subr.bf16.mxu0 0
  %269 = vmatpush1.bf16.msra.mxu0 %v225
  %270 = vmatprep.subr.bf16.mxu0 0
  %271 = vmatpush1.bf16.msra.mxu0 %v226
  %272 = vmatprep.subr.bf16.mxu0 0
  %273 = vmatpush1.bf16.msra.mxu0 %v227
  %274 = vmatprep.subr.bf16.mxu0 0
  %275 = vmatpush1.bf16.msra.mxu0 %v228
  %276 = vmatprep.subr.bf16.mxu0 0
  %277 = vmatpush1.bf16.msra.mxu0 %v229
  %278 = vmatprep.mubr.bf16.mxu0 %v119
  %279 = vmatmul.mubr.bf16.gmra.mrb[0].mxu0 %v118
  %v280 = vpop.f32.mrb[0].mxu0
  %v281 = vadd.f32 %v68, %v280
  %v282 = vpop.f32.mrb[0].mxu0
  %v283 = vpop.f32.mrb[0].mxu0
  %v284 = vadd.f32 %v68, %v283
  %v285 = vpop.f32.mrb[0].mxu0
  %286 = vmatprep.mubr.bf16.mxu0 %v121
  %287 = vmatmul.mubr.bf16.gmra.mrb[0].mxu0 %v120
  %v288 = vpop.f32.mrb[0].mxu0
  %v289 = vadd.f32 %v68, %v288
  %v290 = vpop.f32.mrb[0].mxu0
  %v291 = vpop.f32.mrb[0].mxu0
  %v292 = vadd.f32 %v68, %v291
  %v293 = vpop.f32.mrb[0].mxu0
  %294 = vmatprep.mubr.bf16.mxu0 %v123
  %295 = vmatmul.mubr.bf16.gmra.mrb[0].mxu0 %v122
  %v296 = vpop.f32.mrb[0].mxu0
  %v297 = vadd.f32 %v68, %v296
  %v298 = vpop.f32.mrb[0].mxu0
  %v299 = vpop.f32.mrb[0].mxu0
  %v300 = vadd.f32 %v68, %v299
  %v301 = vpop.f32.mrb[0].mxu0
  %302 = vmatprep.mubr.bf16.mxu0 %v125
  %303 = vmatmul.mubr.bf16.gmra.mrb[0].mxu0 %v124
  %v304 = vpop.f32.mrb[0].mxu0
  %v305 = vadd.f32 %v68, %v304
  %v306 = vpop.f32.mrb[0].mxu0
  %v307 = vpop.f32.mrb[0].mxu0
  %v308 = vadd.f32 %v68, %v307
  %v309 = vpop.f32.mrb[0].mxu0
  %310 = vmatprep.mubr.bf16.mxu0 %v127
  %311 = vmatmul.mubr.bf16.gmra.mrb[0].mxu0 %v126
  %v312 = vpop.f32.mrb[0].mxu0
  %v313 = vadd.f32 %v68, %v312
  %v314 = vpop.f32.mrb[0].mxu0
  %v315 = vpop.f32.mrb[0].mxu0
  %v316 = vadd.f32 %v68, %v315
  %v317 = vpop.f32.mrb[0].mxu0
  %318 = vmatprep.mubr.bf16.mxu0 %v129
  %319 = vmatmul.mubr.bf16.gmra.mrb[0].mxu0 %v128
  %v320 = vpop.f32.mrb[0].mxu0
  %v321 = vadd.f32 %v68, %v320
  %v322 = vpop.f32.mrb[0].mxu0
  %v323 = vpop.f32.mrb[0].mxu0
  %v324 = vadd.f32 %v68, %v323
  %v325 = vpop.f32.mrb[0].mxu0
  %326 = vmatprep.mubr.bf16.mxu0 %v131
  %327 = vmatmul.mubr.bf16.gmra.mrb[0].mxu0 %v130
  %v328 = vpop.f32.mrb[0].mxu0
  %v329 = vadd.f32 %v68, %v328
  %v330 = vpop.f32.mrb[0].mxu0
  %v331 = vpop.f32.mrb[0].mxu0
  %v332 = vadd.f32 %v68, %v331
  %v333 = vpop.f32.mrb[0].mxu0
  %334 = vmatprep.mubr.bf16.mxu0 %v133
  %335 = vmatmul.mubr.bf16.gmra.mrb[0].mxu0 %v132
  %v336 = vpop.f32.mrb[0].mxu0
  %v337 = vadd.f32 %v68, %v336
  %v338 = vpop.f32.mrb[0].mxu0
  %v339 = vpop.f32.mrb[0].mxu0
  %v340 = vadd.f32 %v68, %v339
  %v341 = vpop.f32.mrb[0].mxu0
  %342 = vdwg.mxu0
  %v343 = vtanh.pop %v281
  %v344 = vtanh.pop %v284
  %v345 = vtanh.pop %v289
  %v346 = vtanh.pop %v292
  %v347 = vtanh.pop %v297
  %v348 = vtanh.pop %v300
  %v349 = vtanh.pop %v305
  %v350 = vtanh.pop %v308
  %v351 = vtanh.pop %v313
  %v352 = vtanh.pop %v316
  %v353 = vtanh.pop %v321
  %v354 = vtanh.pop %v324
  %v355 = vtanh.pop %v329
  %v356 = vtanh.pop %v332
  %v357 = vtanh.pop %v337
  %v358 = vtanh.pop %v340
  %359 = vst [vmem:[%s3] sm:$0xff] %v343
  %360 = vst [vmem:[%s3 + $0x8] sm:$0xff] %v344
  %361 = vst [vmem:[%s3 + $0x10] sm:$0xff] %v345
  %362 = vst [vmem:[%s3 + $0x18] sm:$0xff] %v346
  %363 = vst [vmem:[%s3 + $0x20] sm:$0xff] %v347
  %364 = vst [vmem:[%s3 + $0x28] sm:$0xff] %v348
  %365 = vst [vmem:[%s3 + $0x30] sm:$0xff] %v349
  %366 = vst [vmem:[%s3 + $0x38] sm:$0xff] %v350
  %367 = vst [vmem:[%s3 + $0x40] sm:$0xff] %v351
  %368 = vst [vmem:[%s3 + $0x48] sm:$0xff] %v352
  %369 = vst [vmem:[%s3 + $0x50] sm:$0xff] %v353
  %370 = vst [vmem:[%s3 + $0x58] sm:$0xff] %v354
  %371 = vst [vmem:[%s3 + $0x60] sm:$0xff] %v355
  %372 = vst [vmem:[%s3 + $0x68] sm:$0xff] %v356
  %373 = vst [vmem:[%s3 + $0x70] sm:$0xff] %v357
  %374 = vst [vmem:[%s3 + $0x78] sm:$0xff] %v358
  // Predicated region
  $region14: #{_lambda_.13} parent=0 // pred_check
    _
  $region15: #{_lambda_.13} parent=0 // pred_check_branch
    %376 = sbr.rel (0) target = $region17
  $region16: #{_lambda_.13} parent=0 // pred_region
    _
  $region17: #{_lambda_.13} parent=0 // pred_fallthru
    _
  // Predicated region
  $region18: #{_lambda_.13} parent=0 // pred_check
    _
  $region19: #{_lambda_.13} parent=0 // pred_check_branch
    %378 = sbr.rel (0) target = $region21
  $region20: #{_lambda_.13} parent=0 // pred_region
    _
  $region21: #{_lambda_.13} parent=0 // pred_fallthru
    _

</llo_original>
